<compile_context>
chip_gen: v7x
topology: tpu7x:2x2x1
jax: 0.10.0
libtpu: 0.0.40
codegen_flags: <defaults>
</compile_context>

<pallas_src>
import functools
import math

import jax
import jax.numpy as jnp
from jax.experimental import pallas as pl
from jax.experimental.pallas import tpu as pltpu  # noqa: F401  (TPU backend assumed)

# ----------------------- small synthetic config -----------------------------
VOCAB = 128           # trigram hash vocab size
HIDDEN = 32
NUM_LAYERS = 2
N_HEADS = 4
HEAD_DIM = HIDDEN // N_HEADS
FFN = 64              # SwiGLU intermediate size
SEQ = 8
BATCH = 2
EPS = 1e-5
NORM = "rms"          # config.norm in {"layer", "rms"}
ROPE_BASE = 10000.0
MXU_DTYPE = jnp.bfloat16   # projection/MLP matmul operand dtype (f32 accumulation)


# ----------------------- helpers traced inside the kernel -------------------
def _make_norm(norm_type, eps):
    def norm(x, w, b):
        if norm_type == "layer":
            mu = jnp.mean(x, axis=-1, keepdims=True)
            var = jnp.mean(jnp.square(x - mu), axis=-1, keepdims=True)
            return (x - mu) * jax.lax.rsqrt(var + eps) * w + b
        ms = jnp.mean(jnp.square(x), axis=-1, keepdims=True)
        return x * jax.lax.rsqrt(ms + eps) * w
    return norm


def _mm(a, w):
    # 2-D matmul, operands already in MXU dtype (weights pre-cast on host), f32 acc
    return jnp.dot(a, w, preferred_element_type=jnp.float32)


def _bdot_f32(a, b, contract):
    # head-batched dot_general (single leading batch dim), f32 operands + accumulation
    dims = (((contract[0],), (contract[1],)), ((0,), (0,)))
    return jax.lax.dot_general(a, b, dims, preferred_element_type=jnp.float32)


# ----------------------- single fused forward kernel ------------------------
def _fused_forward_kernel(norm_type, eps, n_heads, head_dim, num_layers, bs,
                          tok_ref, pos_ref, table_ref, mask_ref, cos_ref, sin_ref,
                          ln_ref, watt_ref, wgu_ref, wd_ref, fnorm_ref, out_ref):
    norm = _make_norm(norm_type, eps)

    # ---- trigram embedding (embedding_bag-sum gather + scatter-add) ---------
    tok = tok_ref[...]                                   # (N, 1) int32 trigram ids
    pos = pos_ref[...]                                   # (1, N) int32 flat positions
    table = table_ref[...]                               # (V, H) bf16 (pre-cast)
    n_tri = tok.shape[0]
    vocab = table.shape[0]
    voc_iota = jax.lax.broadcasted_iota(jnp.int32, (n_tri, vocab), 1)
    onehot = (voc_iota == tok).astype(table.dtype)       # 0/1 exact in bf16
    gathered = jnp.dot(onehot, table, preferred_element_type=jnp.float32)   # (N, H)
    pos_iota = jax.lax.broadcasted_iota(jnp.int32, (bs, n_tri), 0)
    scatter = (pos_iota == pos).astype(jnp.float32)      # (BS, N)
    x = jnp.dot(scatter, gathered, preferred_element_type=jnp.float32)      # (BS, H)

    cosf = cos_ref[...]                                  # (BS, H) f32, tiled per head
    sinf = sin_ref[...]                                  # (BS, H) f32
    maskf = mask_ref[...][None]                          # (1, BS, BS) block-diag causal

    # ---- decoder layers, fully unrolled, all weights resident in VMEM -------
    for l in range(num_layers):
        lnp = ln_ref[l]                                  # (4, H): ln1w, ln1b, ln2w, ln2b
        wa = watt_ref[l]                                 # (6, H, H) bf16: Wq, WqR, Wk, WkR, Wv, Wo
        wgu_l = wgu_ref[l]                               # (2, H, F) bf16: gate, up
        wd_l = wd_ref[l]                                 # (F, H) bf16

        # --- attention block (pre-norm, residual) ---
        hb = norm(x, lnp[0:1], lnp[1:2]).astype(wa.dtype)          # (BS, H)
        # rotary + scale folded into the weights: q = (h Wq s) cos + (h Wq R s) sin
        q = _mm(hb, wa[0]) * cosf + _mm(hb, wa[1]) * sinf          # (BS, H) f32
        k = _mm(hb, wa[2]) * cosf + _mm(hb, wa[3]) * sinf
        v = _mm(hb, wa[4])
        # head-batched views (nh, BS, d): static lane slices + leading-axis stack
        qh = jnp.stack([q[:, h * head_dim:(h + 1) * head_dim] for h in range(n_heads)], 0)
        kh = jnp.stack([k[:, h * head_dim:(h + 1) * head_dim] for h in range(n_heads)], 0)
        vh = jnp.stack([v[:, h * head_dim:(h + 1) * head_dim] for h in range(n_heads)], 0)
        # f32 scores over the whole token slab; mask separates batches + causality
        sc = _bdot_f32(qh, kh, (2, 2)) + maskf                     # (nh, BS, BS)
        m = jnp.max(sc, axis=-1, keepdims=True)
        p = jnp.exp(sc - m)
        p = p / jnp.sum(p, axis=-1, keepdims=True)                 # exact softmax
        ctx = _bdot_f32(p, vh, (2, 1))                             # (nh, BS, d)
        ctx_flat = jnp.concatenate([ctx[h] for h in range(n_heads)], axis=-1)  # (BS, H)
        x = x + _mm(ctx_flat.astype(wa.dtype), wa[5])              # single (BS,H)@(H,H)

        # --- MLP block (SwiGLU, pre-norm, residual) ---
        h2 = norm(x, lnp[2:3], lnp[3:4]).astype(wgu_l.dtype)
        gate = _mm(h2, wgu_l[0])                                   # (BS, F)
        up = _mm(h2, wgu_l[1])                                     # (BS, F)
        x = x + _mm((jax.nn.silu(gate) * up).astype(wd_l.dtype), wd_l)

    # ---- final norm ----------------------------------------------------------
    fn = fnorm_ref[...]                                  # (2, H)
    out_ref[...] = norm(x, fn[0:1], fn[1:2])


# ----------------------- one-time weight packing (hoisted out of forward) ----
def pack_params(table, layer_params, norm_w, norm_b, n_heads=N_HEADS):
    hidden = table.shape[1]
    head_dim = hidden // n_heads
    half = head_dim // 2
    scale = 1.0 / math.sqrt(head_dim)
    # rotate_half as a matrix: (q @ R)[j] = -q[j+half] for j<half, q[j-half] otherwise
    eye_h = jnp.eye(half, dtype=jnp.float32)
    zer_h = jnp.zeros((half, half), jnp.float32)
    r_d = jnp.concatenate([jnp.concatenate([zer_h, eye_h], axis=1),
                           jnp.concatenate([-eye_h, zer_h], axis=1)], axis=0)
    r_full = jnp.kron(jnp.eye(n_heads, dtype=jnp.float32), r_d)    # block-diag (H, H)

    watt, wgu, wd, ln = [], [], [], []
    for p in layer_params:
        wq_a = p["wq"] * scale                    # attention scale folded into Q
        wq_b = (p["wq"] @ r_full) * scale
        wk_a = p["wk"]
        wk_b = p["wk"] @ r_full
        watt.append(jnp.stack([wq_a, wq_b, wk_a, wk_b, p["wv"], p["wo"]], axis=0))
        wgu.append(jnp.stack([p["wg"], p["wu"]], axis=0))
        wd.append(p["wd"])
        ln.append(jnp.concatenate([p["ln1w"], p["ln1b"], p["ln2w"], p["ln2b"]], axis=0))
    return dict(
        table=table.astype(MXU_DTYPE),                             # (V, H)
        watt=jnp.stack(watt).astype(MXU_DTYPE),                    # (L, 6, H, H)
        wgu=jnp.stack(wgu).astype(MXU_DTYPE),                      # (L, 2, H, F)
        wd=jnp.stack(wd).astype(MXU_DTYPE),                        # (L, F, H)
        ln=jnp.stack(ln).astype(jnp.float32),                      # (L, 4, H)
        fnorm=jnp.concatenate([norm_w, norm_b], axis=0).astype(jnp.float32),  # (2, H)
    )


# ----------------------- forward (== TransformerModel.forward) --------------
@jax.jit
def _forward_jit(packed, trigram_set_position_ids, trigram_token_ids,
                 trigram_token_ids_offsets, position_ids, attention_mask):
    batch, seq_len = position_ids.shape
    num_layers, _, hidden, _ = packed["watt"].shape
    n_heads = N_HEADS
    head_dim = hidden // n_heads
    bs = batch * seq_len
    n_tri = trigram_token_ids.shape[0]

    # glue: embedding_bag bag index -> flat (b * seq_len + s) target position
    bag_idx = jnp.searchsorted(trigram_token_ids_offsets,
                               jnp.arange(n_tri, dtype=jnp.int32), side="right") - 1
    flat_pos = trigram_set_position_ids[bag_idx]
    tok = trigram_token_ids.reshape(n_tri, 1).astype(jnp.int32)
    pos = flat_pos.reshape(1, n_tri).astype(jnp.int32)

    # glue: rotary cos/sin tiled across heads to (BS, H) (head-contiguous columns)
    inv_freq = 1.0 / (ROPE_BASE ** (jnp.arange(0, head_dim, 2, dtype=jnp.float32)
                                    / head_dim))
    freqs = position_ids.astype(jnp.float32).reshape(bs, 1) * inv_freq[None, :]
    emb = jnp.concatenate([freqs, freqs], axis=-1)                 # (BS, d)
    cosf = jnp.tile(jnp.cos(emb), (1, n_heads))                    # (BS, H)
    sinf = jnp.tile(jnp.sin(emb), (1, n_heads))

    # glue: block-diagonal additive causal mask over the flat BS token axis
    am = attention_mask[:, 0, :, :].astype(jnp.float32)            # (B, S, S)
    ridx = jnp.arange(bs, dtype=jnp.int32)
    bidx = ridx // seq_len
    sidx = ridx % seq_len
    blk = am[bidx[:, None], sidx[:, None], sidx[None, :]]          # (BS, BS)
    mask_full = jnp.where(bidx[:, None] == bidx[None, :], blk, jnp.float32(-1e9))

    kern = functools.partial(_fused_forward_kernel, NORM, EPS, n_heads, head_dim,
                             num_layers, bs)
    # Single gridless pallas_call: all weights + activations resident in VMEM.
    out = pl.pallas_call(
        kern,
        out_shape=jax.ShapeDtypeStruct((bs, hidden), jnp.float32),
    )(tok, pos, packed["table"], mask_full, cosf, sinf,
      packed["ln"], packed["watt"], packed["wgu"], packed["wd"], packed["fnorm"])
    return out


def transformer_forward(packed, trigram_set_position_ids, trigram_token_ids,
                        trigram_token_ids_offsets, position_ids, attention_mask,
                        kv_cache=None):
    batch, seq_len = position_ids.shape
    out = _forward_jit(packed, trigram_set_position_ids, trigram_token_ids,
                       trigram_token_ids_offsets, position_ids, attention_mask)
    return out.reshape(batch, seq_len, -1), kv_cache


# ----------------------- demo ------------------------------------------------
if __name__ == "__main__":
    key = jax.random.PRNGKey(0)

    def init(k, shape, scale=0.02):
        return jax.random.normal(k, shape, jnp.float32) * scale

    keys = jax.random.split(key, 2 + NUM_LAYERS * 7)
    table = init(keys[0], (VOCAB, HIDDEN))

    layer_params = []
    ki = 2
    for _ in range(NUM_LAYERS):
        p = dict(
            ln1w=jnp.ones((1, HIDDEN), jnp.float32),
            ln1b=jnp.zeros((1, HIDDEN), jnp.float32),
            ln2w=jnp.ones((1, HIDDEN), jnp.float32),
            ln2b=jnp.zeros((1, HIDDEN), jnp.float32),
            wq=init(keys[ki + 0], (HIDDEN, HIDDEN)),
            wk=init(keys[ki + 1], (HIDDEN, HIDDEN)),
            wv=init(keys[ki + 2], (HIDDEN, HIDDEN)),
            wo=init(keys[ki + 3], (HIDDEN, HIDDEN)),
            wg=init(keys[ki + 4], (HIDDEN, FFN)),
            wu=init(keys[ki + 5], (HIDDEN, FFN)),
            wd=init(keys[ki + 6], (FFN, HIDDEN)),
        )
        ki += 7
        layer_params.append(p)
    final_w = jnp.ones((1, HIDDEN), jnp.float32)
    final_b = jnp.zeros((1, HIDDEN), jnp.float32)

    # one-time packing (rotary R folded, scale folded, bf16 cast, layer stacking)
    packed = pack_params(table, layer_params, final_w, final_b)

    # synthetic trigram-tokenized inputs: one "word" per (b, s) position, 3 trigrams each
    n_words = BATCH * SEQ
    tri_per_word = 3
    n_trigrams = n_words * tri_per_word
    trigram_token_ids = jax.random.randint(keys[1], (n_trigrams,), 0, VOCAB, jnp.int32)
    trigram_token_ids_offsets = jnp.arange(0, n_trigrams + 1, tri_per_word, dtype=jnp.int32)
    trigram_set_position_ids = jnp.arange(n_words, dtype=jnp.int32)   # flat b*S + s
    position_ids = jnp.tile(jnp.arange(SEQ, dtype=jnp.int32)[None, :], (BATCH, 1))
    causal = jnp.tril(jnp.ones((SEQ, SEQ), jnp.bool_))
    attention_mask = jnp.where(causal, 0.0, -1e9).astype(jnp.float32)
    attention_mask = jnp.broadcast_to(attention_mask, (BATCH, 1, SEQ, SEQ))

    norm_out, kv_cache = transformer_forward(
        packed, trigram_set_position_ids, trigram_token_ids, trigram_token_ids_offsets,
        position_ids, attention_mask, kv_cache=None)
    jax.block_until_ready(norm_out)
    assert norm_out.shape == (BATCH, SEQ, HIDDEN)
    assert bool(jnp.all(jnp.isfinite(norm_out)))
    print("KERNEL_OK")
</pallas_src>

<mosaic_0001>
module attributes {stable_mosaic.version = 11 : i64} {
  func.func @_fused_forward_kernel(%arg0: memref<48x1xi32, #tpu.memory_space<vmem>>, %arg1: memref<1x48xi32, #tpu.memory_space<vmem>>, %arg2: memref<128x32xbf16, #tpu.memory_space<vmem>>, %arg3: memref<16x16xf32, #tpu.memory_space<vmem>>, %arg4: memref<16x32xf32, #tpu.memory_space<vmem>>, %arg5: memref<16x32xf32, #tpu.memory_space<vmem>>, %arg6: memref<2x4x32xf32, #tpu.memory_space<vmem>>, %arg7: memref<2x6x32x32xbf16, #tpu.memory_space<vmem>>, %arg8: memref<2x2x32x64xbf16, #tpu.memory_space<vmem>>, %arg9: memref<2x64x32xbf16, #tpu.memory_space<vmem>>, %arg10: memref<2x32xf32, #tpu.memory_space<vmem>>, %arg11: memref<16x32xf32, #tpu.memory_space<vmem>>) attributes {dimension_semantics = [], scalar_prefetch = 0 : i64, scratch_operands = 0 : i64, tpu.core_type = #tpu.core_type<tc>} {
    %c0 = arith.constant 0 : index
    %c0_0 = arith.constant 0 : index
    %0 = vector.load %arg0[%c0, %c0_0] : memref<48x1xi32, #tpu.memory_space<vmem>>, vector<48x1xi32>
    %c0_1 = arith.constant 0 : index
    %c0_2 = arith.constant 0 : index
    %1 = vector.load %arg1[%c0_1, %c0_2] : memref<1x48xi32, #tpu.memory_space<vmem>>, vector<1x48xi32>
    %c0_3 = arith.constant 0 : index
    %c0_4 = arith.constant 0 : index
    %2 = vector.load %arg2[%c0_3, %c0_4] : memref<128x32xbf16, #tpu.memory_space<vmem>>, vector<128x32xbf16>
    %3 = tpu.iota {dimensions = array<i32: 1>} : vector<48x128xi32>
    %4 = vector.broadcast %0 : vector<48x1xi32> to vector<48x128xi32>
    %5 = arith.cmpi eq, %3, %4 : vector<48x128xi32>
    %6 = arith.extui %5 : vector<48x128xi1> to vector<48x128xi32>
    %7 = arith.sitofp %6 : vector<48x128xi32> to vector<48x128xf32>
    %8 = arith.truncf %7 : vector<48x128xf32> to vector<48x128xbf16>
    %cst = arith.constant dense<0.000000e+00> : vector<48x32xf32>
    %9 = tpu.matmul %8, %2, %cst {dimension_numbers = #tpu.dot_dimension_numbers<[1], [0], [0], [1], [0, 0, 1, 1], [], []>} : vector<48x128xbf16>, vector<128x32xbf16>, vector<48x32xf32> -> vector<48x32xf32>
    %10 = tpu.iota {dimensions = array<i32: 0>} : vector<16x48xi32>
    %11 = vector.broadcast %1 : vector<1x48xi32> to vector<16x48xi32>
    %12 = arith.cmpi eq, %10, %11 : vector<16x48xi32>
    %13 = arith.extui %12 : vector<16x48xi1> to vector<16x48xi32>
    %14 = arith.sitofp %13 : vector<16x48xi32> to vector<16x48xf32>
    %cst_5 = arith.constant dense<0.000000e+00> : vector<16x32xf32>
    %15 = tpu.matmul %14, %9, %cst_5 {dimension_numbers = #tpu.dot_dimension_numbers<[1], [0], [0], [1], [0, 0, 1, 1], [], []>} : vector<16x48xf32>, vector<48x32xf32>, vector<16x32xf32> -> vector<16x32xf32>
    %c0_6 = arith.constant 0 : index
    %c0_7 = arith.constant 0 : index
    %16 = vector.load %arg4[%c0_6, %c0_7] : memref<16x32xf32, #tpu.memory_space<vmem>>, vector<16x32xf32>
    %c0_8 = arith.constant 0 : index
    %c0_9 = arith.constant 0 : index
    %17 = vector.load %arg5[%c0_8, %c0_9] : memref<16x32xf32, #tpu.memory_space<vmem>>, vector<16x32xf32>
    %c0_10 = arith.constant 0 : index
    %c0_11 = arith.constant 0 : index
    %18 = vector.load %arg3[%c0_10, %c0_11] : memref<16x16xf32, #tpu.memory_space<vmem>>, vector<16x16xf32>
    %19 = vector.shape_cast %18 : vector<16x16xf32> to vector<1x16x16xf32>
    %c0_12 = arith.constant 0 : index
    %c0_13 = arith.constant 0 : index
    %c0_14 = arith.constant 0 : index
    %20 = vector.load %arg6[%c0_12, %c0_13, %c0_14] : memref<2x4x32xf32, #tpu.memory_space<vmem>>, vector<1x4x32xf32>
    %21 = vector.shape_cast %20 : vector<1x4x32xf32> to vector<4x32xf32>
    %c0_15 = arith.constant 0 : index
    %c0_16 = arith.constant 0 : index
    %c0_17 = arith.constant 0 : index
    %c0_18 = arith.constant 0 : index
    %22 = vector.load %arg7[%c0_15, %c0_16, %c0_17, %c0_18] : memref<2x6x32x32xbf16, #tpu.memory_space<vmem>>, vector<1x6x32x32xbf16>
    %23 = vector.shape_cast %22 : vector<1x6x32x32xbf16> to vector<6x32x32xbf16>
    %c0_19 = arith.constant 0 : index
    %c0_20 = arith.constant 0 : index
    %c0_21 = arith.constant 0 : index
    %c0_22 = arith.constant 0 : index
    %24 = vector.load %arg8[%c0_19, %c0_20, %c0_21, %c0_22] : memref<2x2x32x64xbf16, #tpu.memory_space<vmem>>, vector<1x2x32x64xbf16>
    %25 = vector.shape_cast %24 : vector<1x2x32x64xbf16> to vector<2x32x64xbf16>
    %c0_23 = arith.constant 0 : index
    %c0_24 = arith.constant 0 : index
    %c0_25 = arith.constant 0 : index
    %26 = vector.load %arg9[%c0_23, %c0_24, %c0_25] : memref<2x64x32xbf16, #tpu.memory_space<vmem>>, vector<1x64x32xbf16>
    %27 = vector.shape_cast %26 : vector<1x64x32xbf16> to vector<64x32xbf16>
    %28 = vector.extract_strided_slice %21 {offsets = [0, 0], sizes = [1, 32], strides = [1, 1]} : vector<4x32xf32> to vector<1x32xf32>
    %29 = arith.mulf %15, %15 : vector<16x32xf32>
    %cst_26 = arith.constant dense<0.000000e+00> : vector<16xf32>
    %30 = vector.multi_reduction <add>, %29, %cst_26 [1] : vector<16x32xf32> to vector<16xf32>
    %31 = vector.shape_cast %30 : vector<16xf32> to vector<16x1xf32>
    %cst_27 = arith.constant 3.200000e+01 : f32
    %32 = vector.broadcast %cst_27 : f32 to vector<16x1xf32>
    %33 = arith.divf %31, %32 : vector<16x1xf32>
    %cst_28 = arith.constant 9.99999974E-6 : f32
    %34 = vector.broadcast %cst_28 : f32 to vector<16x1xf32>
    %35 = arith.addf %33, %34 : vector<16x1xf32>
    %36 = math.rsqrt %35 : vector<16x1xf32>
    %37 = vector.broadcast %36 : vector<16x1xf32> to vector<16x32xf32>
    %38 = arith.mulf %15, %37 : vector<16x32xf32>
    %39 = vector.broadcast %28 : vector<1x32xf32> to vector<16x32xf32>
    %40 = arith.mulf %38, %39 : vector<16x32xf32>
    %41 = arith.truncf %40 : vector<16x32xf32> to vector<16x32xbf16>
    %42 = vector.extract_strided_slice %23 {offsets = [0, 0, 0], sizes = [1, 32, 32], strides = [1, 1, 1]} : vector<6x32x32xbf16> to vector<1x32x32xbf16>
    %43 = vector.shape_cast %42 : vector<1x32x32xbf16> to vector<32x32xbf16>
    %cst_29 = arith.constant dense<0.000000e+00> : vector<16x32xf32>
    %44 = tpu.matmul %41, %43, %cst_29 {dimension_numbers = #tpu.dot_dimension_numbers<[1], [0], [0], [1], [0, 0, 1, 1], [], []>} : vector<16x32xbf16>, vector<32x32xbf16>, vector<16x32xf32> -> vector<16x32xf32>
    %45 = arith.mulf %44, %16 : vector<16x32xf32>
    %46 = vector.extract_strided_slice %23 {offsets = [1, 0, 0], sizes = [1, 32, 32], strides = [1, 1, 1]} : vector<6x32x32xbf16> to vector<1x32x32xbf16>
    %47 = vector.shape_cast %46 : vector<1x32x32xbf16> to vector<32x32xbf16>
    %cst_30 = arith.constant dense<0.000000e+00> : vector<16x32xf32>
    %48 = tpu.matmul %41, %47, %cst_30 {dimension_numbers = #tpu.dot_dimension_numbers<[1], [0], [0], [1], [0, 0, 1, 1], [], []>} : vector<16x32xbf16>, vector<32x32xbf16>, vector<16x32xf32> -> vector<16x32xf32>
    %49 = arith.mulf %48, %17 : vector<16x32xf32>
    %50 = arith.addf %45, %49 : vector<16x32xf32>
    %51 = vector.extract_strided_slice %23 {offsets = [2, 0, 0], sizes = [1, 32, 32], strides = [1, 1, 1]} : vector<6x32x32xbf16> to vector<1x32x32xbf16>
    %52 = vector.shape_cast %51 : vector<1x32x32xbf16> to vector<32x32xbf16>
    %cst_31 = arith.constant dense<0.000000e+00> : vector<16x32xf32>
    %53 = tpu.matmul %41, %52, %cst_31 {dimension_numbers = #tpu.dot_dimension_numbers<[1], [0], [0], [1], [0, 0, 1, 1], [], []>} : vector<16x32xbf16>, vector<32x32xbf16>, vector<16x32xf32> -> vector<16x32xf32>
    %54 = arith.mulf %53, %16 : vector<16x32xf32>
    %55 = vector.extract_strided_slice %23 {offsets = [3, 0, 0], sizes = [1, 32, 32], strides = [1, 1, 1]} : vector<6x32x32xbf16> to vector<1x32x32xbf16>
    %56 = vector.shape_cast %55 : vector<1x32x32xbf16> to vector<32x32xbf16>
    %cst_32 = arith.constant dense<0.000000e+00> : vector<16x32xf32>
    %57 = tpu.matmul %41, %56, %cst_32 {dimension_numbers = #tpu.dot_dimension_numbers<[1], [0], [0], [1], [0, 0, 1, 1], [], []>} : vector<16x32xbf16>, vector<32x32xbf16>, vector<16x32xf32> -> vector<16x32xf32>
    %58 = arith.mulf %57, %17 : vector<16x32xf32>
    %59 = arith.addf %54, %58 : vector<16x32xf32>
    %60 = vector.extract_strided_slice %23 {offsets = [4, 0, 0], sizes = [1, 32, 32], strides = [1, 1, 1]} : vector<6x32x32xbf16> to vector<1x32x32xbf16>
    %61 = vector.shape_cast %60 : vector<1x32x32xbf16> to vector<32x32xbf16>
    %cst_33 = arith.constant dense<0.000000e+00> : vector<16x32xf32>
    %62 = tpu.matmul %41, %61, %cst_33 {dimension_numbers = #tpu.dot_dimension_numbers<[1], [0], [0], [1], [0, 0, 1, 1], [], []>} : vector<16x32xbf16>, vector<32x32xbf16>, vector<16x32xf32> -> vector<16x32xf32>
    %63 = vector.extract_strided_slice %50 {offsets = [0, 0], sizes = [16, 8], strides = [1, 1]} : vector<16x32xf32> to vector<16x8xf32>
    %64 = vector.extract_strided_slice %50 {offsets = [0, 8], sizes = [16, 8], strides = [1, 1]} : vector<16x32xf32> to vector<16x8xf32>
    %65 = vector.extract_strided_slice %50 {offsets = [0, 16], sizes = [16, 8], strides = [1, 1]} : vector<16x32xf32> to vector<16x8xf32>
    %66 = vector.extract_strided_slice %50 {offsets = [0, 24], sizes = [16, 8], strides = [1, 1]} : vector<16x32xf32> to vector<16x8xf32>
    %67 = vector.shape_cast %63 : vector<16x8xf32> to vector<1x16x8xf32>
    %68 = vector.shape_cast %64 : vector<16x8xf32> to vector<1x16x8xf32>
    %69 = vector.shape_cast %65 : vector<16x8xf32> to vector<1x16x8xf32>
    %70 = vector.shape_cast %66 : vector<16x8xf32> to vector<1x16x8xf32>
    %71 = tpu.concatenate %67, %68, %69, %70 in 0 : vector<1x16x8xf32>, vector<1x16x8xf32>, vector<1x16x8xf32>, vector<1x16x8xf32> -> vector<4x16x8xf32>
    %72 = vector.extract_strided_slice %59 {offsets = [0, 0], sizes = [16, 8], strides = [1, 1]} : vector<16x32xf32> to vector<16x8xf32>
    %73 = vector.extract_strided_slice %59 {offsets = [0, 8], sizes = [16, 8], strides = [1, 1]} : vector<16x32xf32> to vector<16x8xf32>
    %74 = vector.extract_strided_slice %59 {offsets = [0, 16], sizes = [16, 8], strides = [1, 1]} : vector<16x32xf32> to vector<16x8xf32>
    %75 = vector.extract_strided_slice %59 {offsets = [0, 24], sizes = [16, 8], strides = [1, 1]} : vector<16x32xf32> to vector<16x8xf32>
    %76 = vector.shape_cast %72 : vector<16x8xf32> to vector<1x16x8xf32>
    %77 = vector.shape_cast %73 : vector<16x8xf32> to vector<1x16x8xf32>
    %78 = vector.shape_cast %74 : vector<16x8xf32> to vector<1x16x8xf32>
    %79 = vector.shape_cast %75 : vector<16x8xf32> to vector<1x16x8xf32>
    %80 = tpu.concatenate %76, %77, %78, %79 in 0 : vector<1x16x8xf32>, vector<1x16x8xf32>, vector<1x16x8xf32>, vector<1x16x8xf32> -> vector<4x16x8xf32>
    %81 = vector.extract_strided_slice %62 {offsets = [0, 0], sizes = [16, 8], strides = [1, 1]} : vector<16x32xf32> to vector<16x8xf32>
    %82 = vector.extract_strided_slice %62 {offsets = [0, 8], sizes = [16, 8], strides = [1, 1]} : vector<16x32xf32> to vector<16x8xf32>
    %83 = vector.extract_strided_slice %62 {offsets = [0, 16], sizes = [16, 8], strides = [1, 1]} : vector<16x32xf32> to vector<16x8xf32>
    %84 = vector.extract_strided_slice %62 {offsets = [0, 24], sizes = [16, 8], strides = [1, 1]} : vector<16x32xf32> to vector<16x8xf32>
    %85 = vector.shape_cast %81 : vector<16x8xf32> to vector<1x16x8xf32>
    %86 = vector.shape_cast %82 : vector<16x8xf32> to vector<1x16x8xf32>
    %87 = vector.shape_cast %83 : vector<16x8xf32> to vector<1x16x8xf32>
    %88 = vector.shape_cast %84 : vector<16x8xf32> to vector<1x16x8xf32>
    %89 = tpu.concatenate %85, %86, %87, %88 in 0 : vector<1x16x8xf32>, vector<1x16x8xf32>, vector<1x16x8xf32>, vector<1x16x8xf32> -> vector<4x16x8xf32>
    %cst_34 = arith.constant dense<0.000000e+00> : vector<4x16x16xf32>
    %90 = tpu.matmul %71, %80, %cst_34 {dimension_numbers = #tpu.dot_dimension_numbers<[2], [2], [1], [1], [0, 0, 0, 1, 1, 1], [0], [0]>} : vector<4x16x8xf32>, vector<4x16x8xf32>, vector<4x16x16xf32> -> vector<4x16x16xf32>
    %91 = vector.broadcast %19 : vector<1x16x16xf32> to vector<4x16x16xf32>
    %92 = arith.addf %90, %91 : vector<4x16x16xf32>
    %cst_35 = arith.constant dense<0xFF800000> : vector<4x16xf32>
    %93 = vector.multi_reduction <maximumf>, %92, %cst_35 [2] : vector<4x16x16xf32> to vector<4x16xf32>
    %94 = vector.shape_cast %93 : vector<4x16xf32> to vector<4x16x1xf32>
    %95 = vector.broadcast %94 : vector<4x16x1xf32> to vector<4x16x16xf32>
    %96 = arith.subf %92, %95 : vector<4x16x16xf32>
    %97 = math.exp %96 : vector<4x16x16xf32>
    %cst_36 = arith.constant dense<0.000000e+00> : vector<4x16xf32>
    %98 = vector.multi_reduction <add>, %97, %cst_36 [2] : vector<4x16x16xf32> to vector<4x16xf32>
    %99 = vector.shape_cast %98 : vector<4x16xf32> to vector<4x16x1xf32>
    %100 = vector.broadcast %99 : vector<4x16x1xf32> to vector<4x16x16xf32>
    %101 = arith.divf %97, %100 : vector<4x16x16xf32>
    %cst_37 = arith.constant dense<0.000000e+00> : vector<4x16x8xf32>
    %102 = tpu.matmul %101, %89, %cst_37 {dimension_numbers = #tpu.dot_dimension_numbers<[2], [1], [1], [2], [0, 0, 0, 1, 1, 2], [0], [0]>} : vector<4x16x16xf32>, vector<4x16x8xf32>, vector<4x16x8xf32> -> vector<4x16x8xf32>
    %103 = vector.extract_strided_slice %102 {offsets = [0, 0, 0], sizes = [1, 16, 8], strides = [1, 1, 1]} : vector<4x16x8xf32> to vector<1x16x8xf32>
    %104 = vector.shape_cast %103 : vector<1x16x8xf32> to vector<16x8xf32>
    %105 = vector.extract_strided_slice %102 {offsets = [1, 0, 0], sizes = [1, 16, 8], strides = [1, 1, 1]} : vector<4x16x8xf32> to vector<1x16x8xf32>
    %106 = vector.shape_cast %105 : vector<1x16x8xf32> to vector<16x8xf32>
    %107 = vector.extract_strided_slice %102 {offsets = [2, 0, 0], sizes = [1, 16, 8], strides = [1, 1, 1]} : vector<4x16x8xf32> to vector<1x16x8xf32>
    %108 = vector.shape_cast %107 : vector<1x16x8xf32> to vector<16x8xf32>
    %109 = vector.extract_strided_slice %102 {offsets = [3, 0, 0], sizes = [1, 16, 8], strides = [1, 1, 1]} : vector<4x16x8xf32> to vector<1x16x8xf32>
    %110 = vector.shape_cast %109 : vector<1x16x8xf32> to vector<16x8xf32>
    %111 = tpu.concatenate %104, %106, %108, %110 in 1 : vector<16x8xf32>, vector<16x8xf32>, vector<16x8xf32>, vector<16x8xf32> -> vector<16x32xf32>
    %112 = arith.truncf %111 : vector<16x32xf32> to vector<16x32xbf16>
    %113 = vector.extract_strided_slice %23 {offsets = [5, 0, 0], sizes = [1, 32, 32], strides = [1, 1, 1]} : vector<6x32x32xbf16> to vector<1x32x32xbf16>
    %114 = vector.shape_cast %113 : vector<1x32x32xbf16> to vector<32x32xbf16>
    %cst_38 = arith.constant dense<0.000000e+00> : vector<16x32xf32>
    %115 = tpu.matmul %112, %114, %cst_38 {dimension_numbers = #tpu.dot_dimension_numbers<[1], [0], [0], [1], [0, 0, 1, 1], [], []>} : vector<16x32xbf16>, vector<32x32xbf16>, vector<16x32xf32> -> vector<16x32xf32>
    %116 = arith.addf %15, %115 : vector<16x32xf32>
    %117 = vector.extract_strided_slice %21 {offsets = [2, 0], sizes = [1, 32], strides = [1, 1]} : vector<4x32xf32> to vector<1x32xf32>
    %118 = arith.mulf %116, %116 : vector<16x32xf32>
    %cst_39 = arith.constant dense<0.000000e+00> : vector<16xf32>
    %119 = vector.multi_reduction <add>, %118, %cst_39 [1] : vector<16x32xf32> to vector<16xf32>
    %120 = vector.shape_cast %119 : vector<16xf32> to vector<16x1xf32>
    %cst_40 = arith.constant 3.200000e+01 : f32
    %121 = vector.broadcast %cst_40 : f32 to vector<16x1xf32>
    %122 = arith.divf %120, %121 : vector<16x1xf32>
    %cst_41 = arith.constant 9.99999974E-6 : f32
    %123 = vector.broadcast %cst_41 : f32 to vector<16x1xf32>
    %124 = arith.addf %122, %123 : vector<16x1xf32>
    %125 = math.rsqrt %124 : vector<16x1xf32>
    %126 = vector.broadcast %125 : vector<16x1xf32> to vector<16x32xf32>
    %127 = arith.mulf %116, %126 : vector<16x32xf32>
    %128 = vector.broadcast %117 : vector<1x32xf32> to vector<16x32xf32>
    %129 = arith.mulf %127, %128 : vector<16x32xf32>
    %130 = arith.truncf %129 : vector<16x32xf32> to vector<16x32xbf16>
    %131 = vector.extract_strided_slice %25 {offsets = [0, 0, 0], sizes = [1, 32, 64], strides = [1, 1, 1]} : vector<2x32x64xbf16> to vector<1x32x64xbf16>
    %132 = vector.shape_cast %131 : vector<1x32x64xbf16> to vector<32x64xbf16>
    %cst_42 = arith.constant dense<0.000000e+00> : vector<16x64xf32>
    %133 = tpu.matmul %130, %132, %cst_42 {dimension_numbers = #tpu.dot_dimension_numbers<[1], [0], [0], [1], [0, 0, 1, 1], [], []>} : vector<16x32xbf16>, vector<32x64xbf16>, vector<16x64xf32> -> vector<16x64xf32>
    %134 = vector.extract_strided_slice %25 {offsets = [1, 0, 0], sizes = [1, 32, 64], strides = [1, 1, 1]} : vector<2x32x64xbf16> to vector<1x32x64xbf16>
    %135 = vector.shape_cast %134 : vector<1x32x64xbf16> to vector<32x64xbf16>
    %cst_43 = arith.constant dense<0.000000e+00> : vector<16x64xf32>
    %136 = tpu.matmul %130, %135, %cst_43 {dimension_numbers = #tpu.dot_dimension_numbers<[1], [0], [0], [1], [0, 0, 1, 1], [], []>} : vector<16x32xbf16>, vector<32x64xbf16>, vector<16x64xf32> -> vector<16x64xf32>
    %137 = arith.negf %133 : vector<16x64xf32>
    %138 = math.exp %137 : vector<16x64xf32>
    %cst_44 = arith.constant 1.000000e+00 : f32
    %139 = vector.broadcast %cst_44 : f32 to vector<16x64xf32>
    %140 = arith.addf %139, %138 : vector<16x64xf32>
    %141 = arith.divf %139, %140 : vector<16x64xf32>
    %142 = arith.mulf %133, %141 : vector<16x64xf32>
    %143 = arith.mulf %142, %136 : vector<16x64xf32>
    %144 = arith.truncf %143 : vector<16x64xf32> to vector<16x64xbf16>
    %cst_45 = arith.constant dense<0.000000e+00> : vector<16x32xf32>
    %145 = tpu.matmul %144, %27, %cst_45 {dimension_numbers = #tpu.dot_dimension_numbers<[1], [0], [0], [1], [0, 0, 1, 1], [], []>} : vector<16x64xbf16>, vector<64x32xbf16>, vector<16x32xf32> -> vector<16x32xf32>
    %146 = arith.addf %116, %145 : vector<16x32xf32>
    %c1 = arith.constant 1 : index
    %c0_46 = arith.constant 0 : index
    %c0_47 = arith.constant 0 : index
    %147 = vector.load %arg6[%c1, %c0_46, %c0_47] : memref<2x4x32xf32, #tpu.memory_space<vmem>>, vector<1x4x32xf32>
    %148 = vector.shape_cast %147 : vector<1x4x32xf32> to vector<4x32xf32>
    %c1_48 = arith.constant 1 : index
    %c0_49 = arith.constant 0 : index
    %c0_50 = arith.constant 0 : index
    %c0_51 = arith.constant 0 : index
    %149 = vector.load %arg7[%c1_48, %c0_49, %c0_50, %c0_51] : memref<2x6x32x32xbf16, #tpu.memory_space<vmem>>, vector<1x6x32x32xbf16>
    %150 = vector.shape_cast %149 : vector<1x6x32x32xbf16> to vector<6x32x32xbf16>
    %c1_52 = arith.constant 1 : index
    %c0_53 = arith.constant 0 : index
    %c0_54 = arith.constant 0 : index
    %c0_55 = arith.constant 0 : index
    %151 = vector.load %arg8[%c1_52, %c0_53, %c0_54, %c0_55] : memref<2x2x32x64xbf16, #tpu.memory_space<vmem>>, vector<1x2x32x64xbf16>
    %152 = vector.shape_cast %151 : vector<1x2x32x64xbf16> to vector<2x32x64xbf16>
    %c1_56 = arith.constant 1 : index
    %c0_57 = arith.constant 0 : index
    %c0_58 = arith.constant 0 : index
    %153 = vector.load %arg9[%c1_56, %c0_57, %c0_58] : memref<2x64x32xbf16, #tpu.memory_space<vmem>>, vector<1x64x32xbf16>
    %154 = vector.shape_cast %153 : vector<1x64x32xbf16> to vector<64x32xbf16>
    %155 = vector.extract_strided_slice %148 {offsets = [0, 0], sizes = [1, 32], strides = [1, 1]} : vector<4x32xf32> to vector<1x32xf32>
    %156 = arith.mulf %146, %146 : vector<16x32xf32>
    %cst_59 = arith.constant dense<0.000000e+00> : vector<16xf32>
    %157 = vector.multi_reduction <add>, %156, %cst_59 [1] : vector<16x32xf32> to vector<16xf32>
    %158 = vector.shape_cast %157 : vector<16xf32> to vector<16x1xf32>
    %cst_60 = arith.constant 3.200000e+01 : f32
    %159 = vector.broadcast %cst_60 : f32 to vector<16x1xf32>
    %160 = arith.divf %158, %159 : vector<16x1xf32>
    %cst_61 = arith.constant 9.99999974E-6 : f32
    %161 = vector.broadcast %cst_61 : f32 to vector<16x1xf32>
    %162 = arith.addf %160, %161 : vector<16x1xf32>
    %163 = math.rsqrt %162 : vector<16x1xf32>
    %164 = vector.broadcast %163 : vector<16x1xf32> to vector<16x32xf32>
    %165 = arith.mulf %146, %164 : vector<16x32xf32>
    %166 = vector.broadcast %155 : vector<1x32xf32> to vector<16x32xf32>
    %167 = arith.mulf %165, %166 : vector<16x32xf32>
    %168 = arith.truncf %167 : vector<16x32xf32> to vector<16x32xbf16>
    %169 = vector.extract_strided_slice %150 {offsets = [0, 0, 0], sizes = [1, 32, 32], strides = [1, 1, 1]} : vector<6x32x32xbf16> to vector<1x32x32xbf16>
    %170 = vector.shape_cast %169 : vector<1x32x32xbf16> to vector<32x32xbf16>
    %cst_62 = arith.constant dense<0.000000e+00> : vector<16x32xf32>
    %171 = tpu.matmul %168, %170, %cst_62 {dimension_numbers = #tpu.dot_dimension_numbers<[1], [0], [0], [1], [0, 0, 1, 1], [], []>} : vector<16x32xbf16>, vector<32x32xbf16>, vector<16x32xf32> -> vector<16x32xf32>
    %172 = arith.mulf %171, %16 : vector<16x32xf32>
    %173 = vector.extract_strided_slice %150 {offsets = [1, 0, 0], sizes = [1, 32, 32], strides = [1, 1, 1]} : vector<6x32x32xbf16> to vector<1x32x32xbf16>
    %174 = vector.shape_cast %173 : vector<1x32x32xbf16> to vector<32x32xbf16>
    %cst_63 = arith.constant dense<0.000000e+00> : vector<16x32xf32>
    %175 = tpu.matmul %168, %174, %cst_63 {dimension_numbers = #tpu.dot_dimension_numbers<[1], [0], [0], [1], [0, 0, 1, 1], [], []>} : vector<16x32xbf16>, vector<32x32xbf16>, vector<16x32xf32> -> vector<16x32xf32>
    %176 = arith.mulf %175, %17 : vector<16x32xf32>
    %177 = arith.addf %172, %176 : vector<16x32xf32>
    %178 = vector.extract_strided_slice %150 {offsets = [2, 0, 0], sizes = [1, 32, 32], strides = [1, 1, 1]} : vector<6x32x32xbf16> to vector<1x32x32xbf16>
    %179 = vector.shape_cast %178 : vector<1x32x32xbf16> to vector<32x32xbf16>
    %cst_64 = arith.constant dense<0.000000e+00> : vector<16x32xf32>
    %180 = tpu.matmul %168, %179, %cst_64 {dimension_numbers = #tpu.dot_dimension_numbers<[1], [0], [0], [1], [0, 0, 1, 1], [], []>} : vector<16x32xbf16>, vector<32x32xbf16>, vector<16x32xf32> -> vector<16x32xf32>
    %181 = arith.mulf %180, %16 : vector<16x32xf32>
    %182 = vector.extract_strided_slice %150 {offsets = [3, 0, 0], sizes = [1, 32, 32], strides = [1, 1, 1]} : vector<6x32x32xbf16> to vector<1x32x32xbf16>
    %183 = vector.shape_cast %182 : vector<1x32x32xbf16> to vector<32x32xbf16>
    %cst_65 = arith.constant dense<0.000000e+00> : vector<16x32xf32>
    %184 = tpu.matmul %168, %183, %cst_65 {dimension_numbers = #tpu.dot_dimension_numbers<[1], [0], [0], [1], [0, 0, 1, 1], [], []>} : vector<16x32xbf16>, vector<32x32xbf16>, vector<16x32xf32> -> vector<16x32xf32>
    %185 = arith.mulf %184, %17 : vector<16x32xf32>
    %186 = arith.addf %181, %185 : vector<16x32xf32>
    %187 = vector.extract_strided_slice %150 {offsets = [4, 0, 0], sizes = [1, 32, 32], strides = [1, 1, 1]} : vector<6x32x32xbf16> to vector<1x32x32xbf16>
    %188 = vector.shape_cast %187 : vector<1x32x32xbf16> to vector<32x32xbf16>
    %cst_66 = arith.constant dense<0.000000e+00> : vector<16x32xf32>
    %189 = tpu.matmul %168, %188, %cst_66 {dimension_numbers = #tpu.dot_dimension_numbers<[1], [0], [0], [1], [0, 0, 1, 1], [], []>} : vector<16x32xbf16>, vector<32x32xbf16>, vector<16x32xf32> -> vector<16x32xf32>
    %190 = vector.extract_strided_slice %177 {offsets = [0, 0], sizes = [16, 8], strides = [1, 1]} : vector<16x32xf32> to vector<16x8xf32>
    %191 = vector.extract_strided_slice %177 {offsets = [0, 8], sizes = [16, 8], strides = [1, 1]} : vector<16x32xf32> to vector<16x8xf32>
    %192 = vector.extract_strided_slice %177 {offsets = [0, 16], sizes = [16, 8], strides = [1, 1]} : vector<16x32xf32> to vector<16x8xf32>
    %193 = vector.extract_strided_slice %177 {offsets = [0, 24], sizes = [16, 8], strides = [1, 1]} : vector<16x32xf32> to vector<16x8xf32>
    %194 = vector.shape_cast %190 : vector<16x8xf32> to vector<1x16x8xf32>
    %195 = vector.shape_cast %191 : vector<16x8xf32> to vector<1x16x8xf32>
    %196 = vector.shape_cast %192 : vector<16x8xf32> to vector<1x16x8xf32>
    %197 = vector.shape_cast %193 : vector<16x8xf32> to vector<1x16x8xf32>
    %198 = tpu.concatenate %194, %195, %196, %197 in 0 : vector<1x16x8xf32>, vector<1x16x8xf32>, vector<1x16x8xf32>, vector<1x16x8xf32> -> vector<4x16x8xf32>
    %199 = vector.extract_strided_slice %186 {offsets = [0, 0], sizes = [16, 8], strides = [1, 1]} : vector<16x32xf32> to vector<16x8xf32>
    %200 = vector.extract_strided_slice %186 {offsets = [0, 8], sizes = [16, 8], strides = [1, 1]} : vector<16x32xf32> to vector<16x8xf32>
    %201 = vector.extract_strided_slice %186 {offsets = [0, 16], sizes = [16, 8], strides = [1, 1]} : vector<16x32xf32> to vector<16x8xf32>
    %202 = vector.extract_strided_slice %186 {offsets = [0, 24], sizes = [16, 8], strides = [1, 1]} : vector<16x32xf32> to vector<16x8xf32>
    %203 = vector.shape_cast %199 : vector<16x8xf32> to vector<1x16x8xf32>
    %204 = vector.shape_cast %200 : vector<16x8xf32> to vector<1x16x8xf32>
    %205 = vector.shape_cast %201 : vector<16x8xf32> to vector<1x16x8xf32>
    %206 = vector.shape_cast %202 : vector<16x8xf32> to vector<1x16x8xf32>
    %207 = tpu.concatenate %203, %204, %205, %206 in 0 : vector<1x16x8xf32>, vector<1x16x8xf32>, vector<1x16x8xf32>, vector<1x16x8xf32> -> vector<4x16x8xf32>
    %208 = vector.extract_strided_slice %189 {offsets = [0, 0], sizes = [16, 8], strides = [1, 1]} : vector<16x32xf32> to vector<16x8xf32>
    %209 = vector.extract_strided_slice %189 {offsets = [0, 8], sizes = [16, 8], strides = [1, 1]} : vector<16x32xf32> to vector<16x8xf32>
    %210 = vector.extract_strided_slice %189 {offsets = [0, 16], sizes = [16, 8], strides = [1, 1]} : vector<16x32xf32> to vector<16x8xf32>
    %211 = vector.extract_strided_slice %189 {offsets = [0, 24], sizes = [16, 8], strides = [1, 1]} : vector<16x32xf32> to vector<16x8xf32>
    %212 = vector.shape_cast %208 : vector<16x8xf32> to vector<1x16x8xf32>
    %213 = vector.shape_cast %209 : vector<16x8xf32> to vector<1x16x8xf32>
    %214 = vector.shape_cast %210 : vector<16x8xf32> to vector<1x16x8xf32>
    %215 = vector.shape_cast %211 : vector<16x8xf32> to vector<1x16x8xf32>
    %216 = tpu.concatenate %212, %213, %214, %215 in 0 : vector<1x16x8xf32>, vector<1x16x8xf32>, vector<1x16x8xf32>, vector<1x16x8xf32> -> vector<4x16x8xf32>
    %cst_67 = arith.constant dense<0.000000e+00> : vector<4x16x16xf32>
    %217 = tpu.matmul %198, %207, %cst_67 {dimension_numbers = #tpu.dot_dimension_numbers<[2], [2], [1], [1], [0, 0, 0, 1, 1, 1], [0], [0]>} : vector<4x16x8xf32>, vector<4x16x8xf32>, vector<4x16x16xf32> -> vector<4x16x16xf32>
    %218 = vector.broadcast %19 : vector<1x16x16xf32> to vector<4x16x16xf32>
    %219 = arith.addf %217, %218 : vector<4x16x16xf32>
    %cst_68 = arith.constant dense<0xFF800000> : vector<4x16xf32>
    %220 = vector.multi_reduction <maximumf>, %219, %cst_68 [2] : vector<4x16x16xf32> to vector<4x16xf32>
    %221 = vector.shape_cast %220 : vector<4x16xf32> to vector<4x16x1xf32>
    %222 = vector.broadcast %221 : vector<4x16x1xf32> to vector<4x16x16xf32>
    %223 = arith.subf %219, %222 : vector<4x16x16xf32>
    %224 = math.exp %223 : vector<4x16x16xf32>
    %cst_69 = arith.constant dense<0.000000e+00> : vector<4x16xf32>
    %225 = vector.multi_reduction <add>, %224, %cst_69 [2] : vector<4x16x16xf32> to vector<4x16xf32>
    %226 = vector.shape_cast %225 : vector<4x16xf32> to vector<4x16x1xf32>
    %227 = vector.broadcast %226 : vector<4x16x1xf32> to vector<4x16x16xf32>
    %228 = arith.divf %224, %227 : vector<4x16x16xf32>
    %cst_70 = arith.constant dense<0.000000e+00> : vector<4x16x8xf32>
    %229 = tpu.matmul %228, %216, %cst_70 {dimension_numbers = #tpu.dot_dimension_numbers<[2], [1], [1], [2], [0, 0, 0, 1, 1, 2], [0], [0]>} : vector<4x16x16xf32>, vector<4x16x8xf32>, vector<4x16x8xf32> -> vector<4x16x8xf32>
    %230 = vector.extract_strided_slice %229 {offsets = [0, 0, 0], sizes = [1, 16, 8], strides = [1, 1, 1]} : vector<4x16x8xf32> to vector<1x16x8xf32>
    %231 = vector.shape_cast %230 : vector<1x16x8xf32> to vector<16x8xf32>
    %232 = vector.extract_strided_slice %229 {offsets = [1, 0, 0], sizes = [1, 16, 8], strides = [1, 1, 1]} : vector<4x16x8xf32> to vector<1x16x8xf32>
    %233 = vector.shape_cast %232 : vector<1x16x8xf32> to vector<16x8xf32>
    %234 = vector.extract_strided_slice %229 {offsets = [2, 0, 0], sizes = [1, 16, 8], strides = [1, 1, 1]} : vector<4x16x8xf32> to vector<1x16x8xf32>
    %235 = vector.shape_cast %234 : vector<1x16x8xf32> to vector<16x8xf32>
    %236 = vector.extract_strided_slice %229 {offsets = [3, 0, 0], sizes = [1, 16, 8], strides = [1, 1, 1]} : vector<4x16x8xf32> to vector<1x16x8xf32>
    %237 = vector.shape_cast %236 : vector<1x16x8xf32> to vector<16x8xf32>
    %238 = tpu.concatenate %231, %233, %235, %237 in 1 : vector<16x8xf32>, vector<16x8xf32>, vector<16x8xf32>, vector<16x8xf32> -> vector<16x32xf32>
    %239 = arith.truncf %238 : vector<16x32xf32> to vector<16x32xbf16>
    %240 = vector.extract_strided_slice %150 {offsets = [5, 0, 0], sizes = [1, 32, 32], strides = [1, 1, 1]} : vector<6x32x32xbf16> to vector<1x32x32xbf16>
    %241 = vector.shape_cast %240 : vector<1x32x32xbf16> to vector<32x32xbf16>
    %cst_71 = arith.constant dense<0.000000e+00> : vector<16x32xf32>
    %242 = tpu.matmul %239, %241, %cst_71 {dimension_numbers = #tpu.dot_dimension_numbers<[1], [0], [0], [1], [0, 0, 1, 1], [], []>} : vector<16x32xbf16>, vector<32x32xbf16>, vector<16x32xf32> -> vector<16x32xf32>
    %243 = arith.addf %146, %242 : vector<16x32xf32>
    %244 = vector.extract_strided_slice %148 {offsets = [2, 0], sizes = [1, 32], strides = [1, 1]} : vector<4x32xf32> to vector<1x32xf32>
    %245 = arith.mulf %243, %243 : vector<16x32xf32>
    %cst_72 = arith.constant dense<0.000000e+00> : vector<16xf32>
    %246 = vector.multi_reduction <add>, %245, %cst_72 [1] : vector<16x32xf32> to vector<16xf32>
    %247 = vector.shape_cast %246 : vector<16xf32> to vector<16x1xf32>
    %cst_73 = arith.constant 3.200000e+01 : f32
    %248 = vector.broadcast %cst_73 : f32 to vector<16x1xf32>
    %249 = arith.divf %247, %248 : vector<16x1xf32>
    %cst_74 = arith.constant 9.99999974E-6 : f32
    %250 = vector.broadcast %cst_74 : f32 to vector<16x1xf32>
    %251 = arith.addf %249, %250 : vector<16x1xf32>
    %252 = math.rsqrt %251 : vector<16x1xf32>
    %253 = vector.broadcast %252 : vector<16x1xf32> to vector<16x32xf32>
    %254 = arith.mulf %243, %253 : vector<16x32xf32>
    %255 = vector.broadcast %244 : vector<1x32xf32> to vector<16x32xf32>
    %256 = arith.mulf %254, %255 : vector<16x32xf32>
    %257 = arith.truncf %256 : vector<16x32xf32> to vector<16x32xbf16>
    %258 = vector.extract_strided_slice %152 {offsets = [0, 0, 0], sizes = [1, 32, 64], strides = [1, 1, 1]} : vector<2x32x64xbf16> to vector<1x32x64xbf16>
    %259 = vector.shape_cast %258 : vector<1x32x64xbf16> to vector<32x64xbf16>
    %cst_75 = arith.constant dense<0.000000e+00> : vector<16x64xf32>
    %260 = tpu.matmul %257, %259, %cst_75 {dimension_numbers = #tpu.dot_dimension_numbers<[1], [0], [0], [1], [0, 0, 1, 1], [], []>} : vector<16x32xbf16>, vector<32x64xbf16>, vector<16x64xf32> -> vector<16x64xf32>
    %261 = vector.extract_strided_slice %152 {offsets = [1, 0, 0], sizes = [1, 32, 64], strides = [1, 1, 1]} : vector<2x32x64xbf16> to vector<1x32x64xbf16>
    %262 = vector.shape_cast %261 : vector<1x32x64xbf16> to vector<32x64xbf16>
    %cst_76 = arith.constant dense<0.000000e+00> : vector<16x64xf32>
    %263 = tpu.matmul %257, %262, %cst_76 {dimension_numbers = #tpu.dot_dimension_numbers<[1], [0], [0], [1], [0, 0, 1, 1], [], []>} : vector<16x32xbf16>, vector<32x64xbf16>, vector<16x64xf32> -> vector<16x64xf32>
    %264 = arith.negf %260 : vector<16x64xf32>
    %265 = math.exp %264 : vector<16x64xf32>
    %cst_77 = arith.constant 1.000000e+00 : f32
    %266 = vector.broadcast %cst_77 : f32 to vector<16x64xf32>
    %267 = arith.addf %266, %265 : vector<16x64xf32>
    %268 = arith.divf %266, %267 : vector<16x64xf32>
    %269 = arith.mulf %260, %268 : vector<16x64xf32>
    %270 = arith.mulf %269, %263 : vector<16x64xf32>
    %271 = arith.truncf %270 : vector<16x64xf32> to vector<16x64xbf16>
    %cst_78 = arith.constant dense<0.000000e+00> : vector<16x32xf32>
    %272 = tpu.matmul %271, %154, %cst_78 {dimension_numbers = #tpu.dot_dimension_numbers<[1], [0], [0], [1], [0, 0, 1, 1], [], []>} : vector<16x64xbf16>, vector<64x32xbf16>, vector<16x32xf32> -> vector<16x32xf32>
    %273 = arith.addf %243, %272 : vector<16x32xf32>
    %c0_79 = arith.constant 0 : index
    %c0_80 = arith.constant 0 : index
    %274 = vector.load %arg10[%c0_79, %c0_80] : memref<2x32xf32, #tpu.memory_space<vmem>>, vector<2x32xf32>
    %275 = vector.extract_strided_slice %274 {offsets = [0, 0], sizes = [1, 32], strides = [1, 1]} : vector<2x32xf32> to vector<1x32xf32>
    %276 = arith.mulf %273, %273 : vector<16x32xf32>
    %cst_81 = arith.constant dense<0.000000e+00> : vector<16xf32>
    %277 = vector.multi_reduction <add>, %276, %cst_81 [1] : vector<16x32xf32> to vector<16xf32>
    %278 = vector.shape_cast %277 : vector<16xf32> to vector<16x1xf32>
    %cst_82 = arith.constant 3.200000e+01 : f32
    %279 = vector.broadcast %cst_82 : f32 to vector<16x1xf32>
    %280 = arith.divf %278, %279 : vector<16x1xf32>
    %cst_83 = arith.constant 9.99999974E-6 : f32
    %281 = vector.broadcast %cst_83 : f32 to vector<16x1xf32>
    %282 = arith.addf %280, %281 : vector<16x1xf32>
    %283 = math.rsqrt %282 : vector<16x1xf32>
    %284 = vector.broadcast %283 : vector<16x1xf32> to vector<16x32xf32>
    %285 = arith.mulf %273, %284 : vector<16x32xf32>
    %286 = vector.broadcast %275 : vector<1x32xf32> to vector<16x32xf32>
    %287 = arith.mulf %285, %286 : vector<16x32xf32>
    %c0_84 = arith.constant 0 : index
    %c0_85 = arith.constant 0 : index
    %288 = vector.load %arg11[%c0_84, %c0_85] : memref<16x32xf32, #tpu.memory_space<vmem>>, vector<16x32xf32>
    tpu.vector_store %arg11[%c0_84, %c0_85], %287 {strides = array<i32>} : memref<16x32xf32, #tpu.memory_space<vmem>>, vector<16x32xf32>,
    return
  }
}

</mosaic_0001>

<llo_original>
// kernel: custom-call.3
$region0: #{custom-call.3}
  %s0 = inlined_call_operand.vmem [shape: u32[48], index: 0, kind: output, shape index: {}]

// kernel: _forward_jit.1
$region0: #{_forward_jit.1}
  #allocation0 [shape = 'u32[]', space=smem, size = 0x4, offset = 0x4, fixed_abs, tag = 'smem constant byte address 0x4 - core index']
  #allocation1 [shape = 'u32[144,128]{1,0:T(1,128)}', space=vmem, size = 0x12000, scoped, tag = 'internal scratch']
  %s0 = inlined_call_operand.vmem [shape: s32[48,1], index: 0, kind: input, shape index: {}]
  %s1 = inlined_call_operand.vmem [shape: s32[1,48], index: 1, kind: input, shape index: {}]
  %s2 = inlined_call_operand.vmem [shape: bf16[128,32], index: 2, kind: input, shape index: {}]
  %s3 = inlined_call_operand.vmem [shape: f32[16,16], index: 3, kind: input, shape index: {}]
  %s4 = inlined_call_operand.vmem [shape: f32[16,32], index: 4, kind: input, shape index: {}]
  %s5 = inlined_call_operand.vmem [shape: f32[16,32], index: 5, kind: input, shape index: {}]
  %s6 = inlined_call_operand.vmem [shape: f32[2,4,32], index: 6, kind: input, shape index: {}]
  %s7 = inlined_call_operand.vmem [shape: bf16[2,6,32,32], index: 7, kind: input, shape index: {}]
  %s8 = inlined_call_operand.vmem [shape: bf16[2,2,32,64], index: 8, kind: input, shape index: {}]
  %s9 = inlined_call_operand.vmem [shape: bf16[2,64,32], index: 9, kind: input, shape index: {}]
  %s10 = inlined_call_operand.vmem [shape: f32[2,32], index: 10, kind: input, shape index: {}]
  %s11 = inlined_call_operand.hbm [shape: f32[16,32], index: 11, kind: output, shape index: {}]
  %s12 = sld [smem:[#allocation0]]
  $region54: #{_forward_jit.1} parent=0
    _
  %s14 = ssub.s32 1, %s12
  %s15 = scalar_select 0, %s14, %s12
  $region1: #{_forward_jit.1} parent=0
    #allocation2 [shape = 'u8[8192]{0}', space=vmem, size = 0x2000, scoped, tag = 'output window, operand 0, single buffered']
    #allocation3 [shape = 's32[1]{0}', space=sflag, size = 0x4, scoped, tag = 'scoped memory for _forward_jit.1']
    %16 = vsyncpa [#allocation3], 0
    // Predicated region
    $region2: #{_forward_jit.1} parent=1 // pred_check
      _
    $region3: #{_forward_jit.1} parent=1 // pred_check_branch
      %18 = sbr.rel (0) target = $region5
    $region4: #{_forward_jit.1} parent=1 // pred_region
      _
    $region5: #{_forward_jit.1} parent=1 // pred_fallthru
      _
    // Predicated region
    $region6: #{_forward_jit.1} parent=1 // pred_check
      _
    $region7: #{_forward_jit.1} parent=1 // pred_check_branch
      %20 = sbr.rel (0) target = $region9
    $region8: #{_forward_jit.1} parent=1 // pred_region
      _
    $region9: #{_forward_jit.1} parent=1 // pred_fallthru
      _
    // Predicated region
    $region10: #{_forward_jit.1} parent=1 // pred_check
      _
    $region11: #{_forward_jit.1} parent=1 // pred_check_branch
      %22 = sbr.rel (0) target = $region13
    $region12: #{_forward_jit.1} parent=1 // pred_region
      _
    $region13: #{_forward_jit.1} parent=1 // pred_fallthru
      _
    // Predicated region
    $region14: #{_forward_jit.1} parent=1 // pred_check
      _
    $region15: #{_forward_jit.1} parent=1 // pred_check_branch
      %24 = sbr.rel (0) target = $region17
    $region16: #{_forward_jit.1} parent=1 // pred_region
      _
    $region17: #{_forward_jit.1} parent=1 // pred_fallthru
      _
    // Predicated region
    $region18: #{_forward_jit.1} parent=1 // pred_check
      _
    $region19: #{_forward_jit.1} parent=1 // pred_check_branch
      %26 = sbr.rel (0) target = $region21
    $region20: #{_forward_jit.1} parent=1 // pred_region
      _
    $region21: #{_forward_jit.1} parent=1 // pred_fallthru
      _
    // Predicated region
    $region22: #{_forward_jit.1} parent=1 // pred_check
      _
    $region23: #{_forward_jit.1} parent=1 // pred_check_branch
      %28 = sbr.rel (0) target = $region25
    $region24: #{_forward_jit.1} parent=1 // pred_region
      _
    $region25: #{_forward_jit.1} parent=1 // pred_fallthru
      _
    // Predicated region
    $region26: #{_forward_jit.1} parent=1 // pred_check
      _
    $region27: #{_forward_jit.1} parent=1 // pred_check_branch
      %30 = sbr.rel (0) target = $region29
    $region28: #{_forward_jit.1} parent=1 // pred_region
      _
    $region29: #{_forward_jit.1} parent=1 // pred_fallthru
      _
    // Predicated region
    $region30: #{_forward_jit.1} parent=1 // pred_check
      _
    $region31: #{_forward_jit.1} parent=1 // pred_check_branch
      %32 = sbr.rel (0) target = $region33
    $region32: #{_forward_jit.1} parent=1 // pred_region
      _
    $region33: #{_forward_jit.1} parent=1 // pred_fallthru
      _
    // Predicated region
    $region34: #{_forward_jit.1} parent=1 // pred_check
      _
    $region35: #{_forward_jit.1} parent=1 // pred_check_branch
      %34 = sbr.rel (0) target = $region37
    $region36: #{_forward_jit.1} parent=1 // pred_region
      _
    $region37: #{_forward_jit.1} parent=1 // pred_fallthru
      _
    // Predicated region
    $region38: #{_forward_jit.1} parent=1 // pred_check
      _
    $region39: #{_forward_jit.1} parent=1 // pred_check_branch
      %36 = sbr.rel (0) target = $region41
    $region40: #{_forward_jit.1} parent=1 // pred_region
      _
    $region41: #{_forward_jit.1} parent=1 // pred_fallthru
      _
    // Predicated region
    $region42: #{_forward_jit.1} parent=1 // pred_check
      _
    $region43: #{_forward_jit.1} parent=1 // pred_check_branch
      %38 = sbr.rel (0) target = $region45
    $region44: #{_forward_jit.1} parent=1 // pred_region
      _
    $region45: #{_forward_jit.1} parent=1 // pred_fallthru
      _
    %v40 = vld [vmem:[%s0] sm:$0xff]
    %v41 = vld [vmem:[%s0 + $0x8] sm:$0xff]
    %v42 = vld [vmem:[%s0 + $0x10] sm:$0xff]
    %v43 = vld [vmem:[%s0 + $0x18] sm:$0xff]
    %v44 = vld [vmem:[%s0 + $0x20] sm:$0xff]
    %v45 = vld [vmem:[%s0 + $0x28] sm:$0xff]
    %v46 = vld [vmem:[%s1] sm:$0x1]
    %v47 = vld [vmem:[%s2] sm:$0xf]
    %v48 = vld [vmem:[%s2 + $0x4] sm:$0xf]
    %v49 = vld [vmem:[%s2 + $0x8] sm:$0xf]
    %v50 = vld [vmem:[%s2 + $0xc] sm:$0xf]
    %v51 = vld [vmem:[%s2 + $0x10] sm:$0xf]
    %v52 = vld [vmem:[%s2 + $0x14] sm:$0xf]
    %v53 = vld [vmem:[%s2 + $0x18] sm:$0xf]
    %v54 = vld [vmem:[%s2 + $0x1c] sm:$0xf]
    %v55 = vld [vmem:[%s2 + $0x20] sm:$0xf]
    %v56 = vld [vmem:[%s2 + $0x24] sm:$0xf]
    %v57 = vld [vmem:[%s2 + $0x28] sm:$0xf]
    %v58 = vld [vmem:[%s2 + $0x2c] sm:$0xf]
    %v59 = vld [vmem:[%s2 + $0x30] sm:$0xf]
    %v60 = vld [vmem:[%s2 + $0x34] sm:$0xf]
    %v61 = vld [vmem:[%s2 + $0x38] sm:$0xf]
    %v62 = vld [vmem:[%s2 + $0x3c] sm:$0xf]
    %v63 = vlaneseq
    %v64 = vand.u32 %v63, 127
    %65 = vset.pattern.permute.xlu0 0
    %66 = vperm.xlu0 %65, %v40
    %v67 = vpop.permute.xlu0 %66
    %68 = vset.pattern.permute.xlu0 0
    %69 = vperm.xlu0 %68, %v41
    %v70 = vpop.permute.xlu0 %69
    %71 = vset.pattern.permute.xlu0 0
    %72 = vperm.xlu0 %71, %v42
    %v73 = vpop.permute.xlu0 %72
    %74 = vset.pattern.permute.xlu0 0
    %75 = vperm.xlu0 %74, %v43
    %v76 = vpop.permute.xlu0 %75
    %77 = vset.pattern.permute.xlu0 0
    %78 = vperm.xlu0 %77, %v44
    %v79 = vpop.permute.xlu0 %78
    %80 = vset.pattern.permute.xlu0 0
    %81 = vperm.xlu0 %80, %v45
    %v82 = vpop.permute.xlu0 %81
    %vm83 = vcmp.eq.s32.totalorder %v64, %v67
    %vm84 = vcmp.eq.s32.totalorder %v64, %v70
    %vm85 = vcmp.eq.s32.totalorder %v64, %v73
    %vm86 = vcmp.eq.s32.totalorder %v64, %v76
    %vm87 = vcmp.eq.s32.totalorder %v64, %v79
    %vm88 = vcmp.eq.s32.totalorder %v64, %v82
    %v89 = vsel %vm83, 1, 0
    %v90 = vsel %vm84, 1, 0
    %v91 = vsel %vm85, 1, 0
    %v92 = vsel %vm86, 1, 0
    %v93 = vsel %vm87, 1, 0
    %v94 = vsel %vm88, 1, 0
    %v95 = vcvt.s32.f32 %v89
    %v96 = vcvt.s32.f32 %v90
    %v97 = vcvt.s32.f32 %v91
    %v98 = vcvt.s32.f32 %v92
    %v99 = vcvt.s32.f32 %v93
    %v100 = vcvt.s32.f32 %v94
    %v101 = vpack.c.bf16 %v96, %v95
    %v102 = vpack.c.bf16 %v98, %v97
    %v103 = vpack.c.bf16 %v100, %v99
    %v120 = vunpack.c.l.b16 %v47
    %v121 = vunpack.c.l.b16 %v48
    %v122 = vunpack.c.l.b16 %v49
    %v123 = vunpack.c.l.b16 %v50
    %v124 = vunpack.c.l.b16 %v51
    %v125 = vunpack.c.l.b16 %v52
    %v126 = vunpack.c.l.b16 %v53
    %v127 = vunpack.c.l.b16 %v54
    %v128 = vunpack.c.l.b16 %v55
    %v129 = vunpack.c.l.b16 %v56
    %v130 = vunpack.c.l.b16 %v57
    %v131 = vunpack.c.l.b16 %v58
    %v132 = vunpack.c.l.b16 %v59
    %v133 = vunpack.c.l.b16 %v60
    %v134 = vunpack.c.l.b16 %v61
    %v135 = vunpack.c.l.b16 %v62
    %v136 = vpack.c.b16 %v121, %v120
    %v137 = vpack.c.b16 %v123, %v122
    %v138 = vpack.c.b16 %v125, %v124
    %v139 = vpack.c.b16 %v127, %v126
    %v140 = vpack.c.b16 %v129, %v128
    %v141 = vpack.c.b16 %v131, %v130
    %v142 = vpack.c.b16 %v133, %v132
    %v143 = vpack.c.b16 %v135, %v134
    %152 = vmatprep.subr.bf16.mxu0 0
    %153 = vmatpush1.bf16.msra.mxu0 %v136
    %154 = vmatprep.subr.bf16.mxu0 0
    %155 = vmatpush1.bf16.msra.mxu0 %v137
    %156 = vmatprep.subr.bf16.mxu0 0
    %157 = vmatpush1.bf16.msra.mxu0 %v138
    %158 = vmatprep.subr.bf16.mxu0 0
    %159 = vmatpush1.bf16.msra.mxu0 %v139
    %160 = vmatprep.subr.bf16.mxu0 0
    %161 = vmatpush1.bf16.msra.mxu0 %v140
    %162 = vmatprep.subr.bf16.mxu0 0
    %163 = vmatpush1.bf16.msra.mxu0 %v141
    %164 = vmatprep.subr.bf16.mxu0 0
    %165 = vmatpush1.bf16.msra.mxu0 %v142
    %166 = vmatprep.subr.bf16.mxu0 0
    %167 = vmatpush1.bf16.msra.mxu0 %v143
    %168 = vmatprep.subr.bf16.mxu0 0
    %169 = vmatpush1.bf16.msra.mxu0 0
    %170 = vmatprep.subr.bf16.mxu0 0
    %171 = vmatpush1.bf16.msra.mxu0 0
    %172 = vmatprep.subr.bf16.mxu0 0
    %173 = vmatpush1.bf16.msra.mxu0 0
    %174 = vmatprep.subr.bf16.mxu0 0
    %175 = vmatpush1.bf16.msra.mxu0 0
    %176 = vmatprep.subr.bf16.mxu0 0
    %177 = vmatpush1.bf16.msra.mxu0 0
    %178 = vmatprep.subr.bf16.mxu0 0
    %179 = vmatpush1.bf16.msra.mxu0 0
    %180 = vmatprep.subr.bf16.mxu0 0
    %181 = vmatpush1.bf16.msra.mxu0 0
    %182 = vmatprep.subr.bf16.mxu0 0
    %183 = vmatpush1.bf16.msra.mxu0 0
    %184 = vmatprep.mubr.bf16.mxu0 0
    %185 = vmatmul.mubr.bf16.gmra.mrb[0].mxu0 %v101
    %v186 = vpop.f32.mrb[0].mxu0
    %v187 = vadd.f32 0.0, %v186
    %v188 = vpop.f32.mrb[0].mxu0
    %v189 = vpop.f32.mrb[0].mxu0
    %v190 = vadd.f32 0.0, %v189
    %v191 = vpop.f32.mrb[0].mxu0
    %192 = vmatprep.mubr.bf16.mxu0 0
    %193 = vmatmul.mubr.bf16.gmra.mrb[0].mxu0 %v102
    %v194 = vpop.f32.mrb[0].mxu0
    %v195 = vadd.f32 0.0, %v194
    %v196 = vpop.f32.mrb[0].mxu0
    %v197 = vpop.f32.mrb[0].mxu0
    %v198 = vadd.f32 0.0, %v197
    %v199 = vpop.f32.mrb[0].mxu0
    %200 = vmatprep.mubr.bf16.mxu0 0
    %201 = vmatmul.mubr.bf16.gmra.mrb[0].mxu0 %v103
    %v202 = vpop.f32.mrb[0].mxu0
    %v203 = vadd.f32 0.0, %v202
    %v204 = vpop.f32.mrb[0].mxu0
    %v205 = vpop.f32.mrb[0].mxu0
    %v206 = vadd.f32 0.0, %v205
    %v207 = vpop.f32.mrb[0].mxu0
    %208 = vdwg.mxu0
    %v209 = vlaneseq
    %v210 = vshrl.u32 %v209, 7
    %v211 = vadd.s32 %v210, 8
    %v212 = vlaneseq
    %v213 = vshrl.u32 %v212, 7
    %v214 = vsub.s32 0, %v213
    %v215 = vrot.slane %v46, %v214
    %vm216 = vcmp.eq.s32.totalorder %v210, %v215
    %vm217 = vcmp.eq.s32.totalorder %v211, %v215
    %v218 = vsel %vm216, 1, 0
    %v219 = vsel %vm217, 1, 0
    %v220 = vcvt.s32.f32 %v218
    %v221 = vcvt.s32.f32 %v219
    %vm222 = vcmask 392192
    %v224 = vsel %vm222, %v220, 0
    %v227 = vsel %vm222, %v221, 0
    %229 = vmatprep.subr.mxu0 0.0
    %230 = vmatpush1.msra.mxu0 %v187
    %231 = vmatprep.subr.mxu0 0.0
    %232 = vmatpush1.msra.mxu0 %v190
    %233 = vmatprep.subr.mxu0 0.0
    %234 = vmatpush1.msra.mxu0 %v195
    %235 = vmatprep.subr.mxu0 0.0
    %236 = vmatpush1.msra.mxu0 %v198
    %237 = vmatprep.subr.mxu0 0.0
    %238 = vmatpush1.msra.mxu0 %v203
    %239 = vmatprep.subr.mxu0 0.0
    %240 = vmatpush1.msra.mxu0 %v206
    %241 = vmatprep.subr.mxu0 0.0
    %242 = vmatpush1.msra.mxu0 0.0
    %243 = vmatprep.subr.mxu0 0.0
    %244 = vmatpush1.msra.mxu0 0.0
    %245 = vmatprep.subr.mxu0 0.0
    %246 = vmatpush1.msra.mxu0 0.0
    %247 = vmatprep.subr.mxu0 0.0
    %248 = vmatpush1.msra.mxu0 0.0
    %249 = vmatprep.subr.mxu0 0.0
    %250 = vmatpush1.msra.mxu0 0.0
    %251 = vmatprep.subr.mxu0 0.0
    %252 = vmatpush1.msra.mxu0 0.0
    %253 = vmatprep.subr.mxu0 0.0
    %254 = vmatpush1.msra.mxu0 0.0
    %255 = vmatprep.subr.mxu0 0.0
    %256 = vmatpush1.msra.mxu0 0.0
    %257 = vmatprep.subr.mxu0 0.0
    %258 = vmatpush1.msra.mxu0 0.0
    %259 = vmatprep.subr.mxu0 0.0
    %260 = vmatpush1.msra.mxu0 0.0
    %261 = vmatprep.subr.mxu0 0.0
    %262 = vmatpush1.msra.mxu0 0.0
    %263 = vmatprep.subr.mxu0 0.0
    %264 = vmatpush1.msra.mxu0 0.0
    %265 = vmatprep.subr.mxu0 0.0
    %266 = vmatpush1.msra.mxu0 0.0
    %267 = vmatprep.subr.mxu0 0.0
    %268 = vmatpush1.msra.mxu0 0.0
    %269 = vmatprep.subr.mxu0 0.0
    %270 = vmatpush1.msra.mxu0 0.0
    %271 = vmatprep.subr.mxu0 0.0
    %272 = vmatpush1.msra.mxu0 0.0
    %273 = vmatprep.subr.mxu0 0.0
    %274 = vmatpush1.msra.mxu0 0.0
    %275 = vmatprep.subr.mxu0 0.0
    %276 = vmatpush1.msra.mxu0 0.0
    %277 = vmatprep.subr.mxu0 0.0
    %278 = vmatpush1.msra.mxu0 0.0
    %279 = vmatprep.subr.mxu0 0.0
    %280 = vmatpush1.msra.mxu0 0.0
    %281 = vmatprep.subr.mxu0 0.0
    %282 = vmatpush1.msra.mxu0 0.0
    %283 = vmatprep.subr.mxu0 0.0
    %284 = vmatpush1.msra.mxu0 0.0
    %285 = vmatprep.subr.mxu0 0.0
    %286 = vmatpush1.msra.mxu0 0.0
    %287 = vmatprep.subr.mxu0 0.0
    %288 = vmatpush1.msra.mxu0 0.0
    %289 = vmatprep.subr.mxu0 0.0
    %290 = vmatpush1.msra.mxu0 0.0
    %291 = vmatprep.subr.mxu0 0.0
    %292 = vmatpush1.msra.mxu0 0.0
    %293 = vmatprep.mubr.f32.mxu0 0.0
    %294 = vmatmul.mubr.f32.gmra.mrb[0].mxu0 %v224
    %v295 = vpop.f32.mrb[0].mxu0
    %v296 = vadd.f32 0.0, %v295
    %v297 = vpop.f32.mrb[0].mxu0
    %298 = vmatprep.mubr.f32.mxu0 0.0
    %299 = vmatmul.mubr.f32.gmra.mrb[0].mxu0 %v227
    %v300 = vpop.f32.mrb[0].mxu0
    %v301 = vadd.f32 0.0, %v300
    %v302 = vpop.f32.mrb[0].mxu0
    %303 = vdwg.mxu0
    %v304 = vld [vmem:[%s4] sm:$0xff]
    %v305 = vld [vmem:[%s4 + $0x8] sm:$0xff]
    %v306 = vld [vmem:[%s5] sm:$0xff]
    %v307 = vld [vmem:[%s5 + $0x8] sm:$0xff]
    %v308 = vld [vmem:[%s3] sm:$0xff]
    %v309 = vld [vmem:[%s3 + $0x8] sm:$0xff]
    %v310 = vld [vmem:[%s6] sm:$0xf]
    %v311 = vld [vmem:[%s7] sm:$0xf]
    %v312 = vld [vmem:[%s7 + $0x4] sm:$0xf]
    %v313 = vld [vmem:[%s7 + $0x8] sm:$0xf]
    %v314 = vld [vmem:[%s7 + $0xc] sm:$0xf]
    %v315 = vld [vmem:[%s7 + $0x10] sm:$0xf]
    %v316 = vld [vmem:[%s7 + $0x14] sm:$0xf]
    %v317 = vld [vmem:[%s7 + $0x18] sm:$0xf]
    %v318 = vld [vmem:[%s7 + $0x1c] sm:$0xf]
    %v319 = vld [vmem:[%s7 + $0x20] sm:$0xf]
    %v320 = vld [vmem:[%s7 + $0x24] sm:$0xf]
    %v321 = vld [vmem:[%s7 + $0x28] sm:$0xf]
    %v322 = vld [vmem:[%s7 + $0x2c] sm:$0xf]
    %v323 = vld [vmem:[%s7 + $0x30] sm:$0xf]
    %v324 = vld [vmem:[%s7 + $0x34] sm:$0xf]
    %v325 = vld [vmem:[%s7 + $0x38] sm:$0xf]
    %v326 = vld [vmem:[%s7 + $0x3c] sm:$0xf]
    %v327 = vld [vmem:[%s7 + $0x40] sm:$0xf]
    %v328 = vld [vmem:[%s7 + $0x44] sm:$0xf]
    %v329 = vld [vmem:[%s7 + $0x48] sm:$0xf]
    %v330 = vld [vmem:[%s7 + $0x4c] sm:$0xf]
    %v331 = vld [vmem:[%s7 + $0x50] sm:$0xf]
    %v332 = vld [vmem:[%s7 + $0x54] sm:$0xf]
    %v333 = vld [vmem:[%s7 + $0x58] sm:$0xf]
    %v334 = vld [vmem:[%s7 + $0x5c] sm:$0xf]
    %v335 = vld [vmem:[%s8] sm:$0xf]
    %v336 = vld [vmem:[%s8 + $0x4] sm:$0xf]
    %v337 = vld [vmem:[%s8 + $0x8] sm:$0xf]
    %v338 = vld [vmem:[%s8 + $0xc] sm:$0xf]
    %v339 = vld [vmem:[%s8 + $0x10] sm:$0xf]
    %v340 = vld [vmem:[%s8 + $0x14] sm:$0xf]
    %v341 = vld [vmem:[%s8 + $0x18] sm:$0xf]
    %v342 = vld [vmem:[%s8 + $0x1c] sm:$0xf]
    %v343 = vld [vmem:[%s9] sm:$0xf]
    %v344 = vld [vmem:[%s9 + $0x4] sm:$0xf]
    %v345 = vld [vmem:[%s9 + $0x8] sm:$0xf]
    %v346 = vld [vmem:[%s9 + $0xc] sm:$0xf]
    %v347 = vld [vmem:[%s9 + $0x10] sm:$0xf]
    %v348 = vld [vmem:[%s9 + $0x14] sm:$0xf]
    %v349 = vld [vmem:[%s9 + $0x18] sm:$0xf]
    %v350 = vld [vmem:[%s9 + $0x1c] sm:$0xf]
    %v351 = vmul.f32 %v296, %v296
    %v352 = vmul.f32 %v301, %v301
    %vm353 = vcmask 261120
    %v354 = vsel %vm353, %v351, 0.0
    %355 = vadd.xlane.f32.xlu0 %v354
    %v356 = vpop.xlane.xlu0 %355
    %v357 = vsel %vm353, %v352, 0.0
    %358 = vadd.xlane.f32.xlu0 %v357
    %v359 = vpop.xlane.xlu0 %358
    %v360 = vrcp.pop 32.0
    %v361 = vmul.f32 %v356, %v360
    %v362 = vmul.f32 %v359, %v360
    %v363 = vadd.f32 %v361, 1e-05
    %v364 = vadd.f32 %v362, 1e-05
    %v365 = vrsqrt.pop %v363
    %v366 = vrsqrt.pop %v364
    %v367 = vmul.f32 %v296, %v365
    %v368 = vmul.f32 %v301, %v366
    %v369 = vlaneseq
    %v370 = vshrl.u32 %v369, 7
    %v371 = vsub.s32 0, %v370
    %v372 = vrot.slane %v310, %v371
    %v373 = vmul.f32 %v367, %v372
    %v374 = vmul.f32 %v368, %v372
    %v375 = vpack.c.bf16 %v374, %v373
    %v380 = vunpack.c.l.b16 %v311
    %v381 = vunpack.c.l.b16 %v312
    %v382 = vunpack.c.l.b16 %v313
    %v383 = vunpack.c.l.b16 %v314
    %v384 = vpack.c.b16 %v381, %v380
    %v385 = vpack.c.b16 %v383, %v382
    %v389 = vsel %vm353, %v375, 0
    %391 = vmatprep.subr.bf16.mxu0 0
    %392 = vmatpush1.bf16.msra.mxu0 %v384
    %393 = vmatprep.subr.bf16.mxu0 0
    %394 = vmatpush1.bf16.msra.mxu0 %v385
    %395 = vmatprep.subr.bf16.mxu0 0
    %396 = vmatpush1.bf16.msra.mxu0 0
    %397 = vmatprep.subr.bf16.mxu0 0
    %398 = vmatpush1.bf16.msra.mxu0 0
    %399 = vmatprep.subr.bf16.mxu0 0
    %400 = vmatpush1.bf16.msra.mxu0 0
    %401 = vmatprep.subr.bf16.mxu0 0
    %402 = vmatpush1.bf16.msra.mxu0 0
    %403 = vmatprep.subr.bf16.mxu0 0
    %404 = vmatpush1.bf16.msra.mxu0 0
    %405 = vmatprep.subr.bf16.mxu0 0
    %406 = vmatpush1.bf16.msra.mxu0 0
    %407 = vmatprep.subr.bf16.mxu0 0
    %408 = vmatpush1.bf16.msra.mxu0 0
    %409 = vmatprep.subr.bf16.mxu0 0
    %410 = vmatpush1.bf16.msra.mxu0 0
    %411 = vmatprep.subr.bf16.mxu0 0
    %412 = vmatpush1.bf16.msra.mxu0 0
    %413 = vmatprep.subr.bf16.mxu0 0
    %414 = vmatpush1.bf16.msra.mxu0 0
    %415 = vmatprep.subr.bf16.mxu0 0
    %416 = vmatpush1.bf16.msra.mxu0 0
    %417 = vmatprep.subr.bf16.mxu0 0
    %418 = vmatpush1.bf16.msra.mxu0 0
    %419 = vmatprep.subr.bf16.mxu0 0
    %420 = vmatpush1.bf16.msra.mxu0 0
    %421 = vmatprep.subr.bf16.mxu0 0
    %422 = vmatpush1.bf16.msra.mxu0 0
    %423 = vmatprep.mubr.bf16.mxu0 0
    %424 = vmatmul.mubr.bf16.gmra.mrb[0].mxu0 %v389
    %v425 = vpop.f32.mrb[0].mxu0
    %v426 = vadd.f32 0.0, %v425
    %v427 = vpop.f32.mrb[0].mxu0
    %v428 = vpop.f32.mrb[0].mxu0
    %v429 = vadd.f32 0.0, %v428
    %v430 = vpop.f32.mrb[0].mxu0
    %431 = vdwg.mxu0
    %v432 = vmul.f32 %v426, %v304
    %v433 = vmul.f32 %v429, %v305
    %v438 = vunpack.c.l.b16 %v315
    %v439 = vunpack.c.l.b16 %v316
    %v440 = vunpack.c.l.b16 %v317
    %v441 = vunpack.c.l.b16 %v318
    %v442 = vpack.c.b16 %v439, %v438
    %v443 = vpack.c.b16 %v441, %v440
    %446 = vmatprep.subr.bf16.mxu0 0
    %447 = vmatpush1.bf16.msra.mxu0 %v442
    %448 = vmatprep.subr.bf16.mxu0 0
    %449 = vmatpush1.bf16.msra.mxu0 %v443
    %450 = vmatprep.subr.bf16.mxu0 0
    %451 = vmatpush1.bf16.msra.mxu0 0
    %452 = vmatprep.subr.bf16.mxu0 0
    %453 = vmatpush1.bf16.msra.mxu0 0
    %454 = vmatprep.subr.bf16.mxu0 0
    %455 = vmatpush1.bf16.msra.mxu0 0
    %456 = vmatprep.subr.bf16.mxu0 0
    %457 = vmatpush1.bf16.msra.mxu0 0
    %458 = vmatprep.subr.bf16.mxu0 0
    %459 = vmatpush1.bf16.msra.mxu0 0
    %460 = vmatprep.subr.bf16.mxu0 0
    %461 = vmatpush1.bf16.msra.mxu0 0
    %462 = vmatprep.subr.bf16.mxu0 0
    %463 = vmatpush1.bf16.msra.mxu0 0
    %464 = vmatprep.subr.bf16.mxu0 0
    %465 = vmatpush1.bf16.msra.mxu0 0
    %466 = vmatprep.subr.bf16.mxu0 0
    %467 = vmatpush1.bf16.msra.mxu0 0
    %468 = vmatprep.subr.bf16.mxu0 0
    %469 = vmatpush1.bf16.msra.mxu0 0
    %470 = vmatprep.subr.bf16.mxu0 0
    %471 = vmatpush1.bf16.msra.mxu0 0
    %472 = vmatprep.subr.bf16.mxu0 0
    %473 = vmatpush1.bf16.msra.mxu0 0
    %474 = vmatprep.subr.bf16.mxu0 0
    %475 = vmatpush1.bf16.msra.mxu0 0
    %476 = vmatprep.subr.bf16.mxu0 0
    %477 = vmatpush1.bf16.msra.mxu0 0
    %478 = vmatprep.mubr.bf16.mxu0 0
    %479 = vmatmul.mubr.bf16.gmra.mrb[0].mxu0 %v389
    %v480 = vpop.f32.mrb[0].mxu0
    %v481 = vadd.f32 0.0, %v480
    %v482 = vpop.f32.mrb[0].mxu0
    %v483 = vpop.f32.mrb[0].mxu0
    %v484 = vadd.f32 0.0, %v483
    %v485 = vpop.f32.mrb[0].mxu0
    %486 = vdwg.mxu0
    %v487 = vmul.f32 %v481, %v306
    %v488 = vmul.f32 %v484, %v307
    %v489 = vadd.f32 %v432, %v487
    %v490 = vadd.f32 %v433, %v488
    %v495 = vunpack.c.l.b16 %v319
    %v496 = vunpack.c.l.b16 %v320
    %v497 = vunpack.c.l.b16 %v321
    %v498 = vunpack.c.l.b16 %v322
    %v499 = vpack.c.b16 %v496, %v495
    %v500 = vpack.c.b16 %v498, %v497
    %503 = vmatprep.subr.bf16.mxu0 0
    %504 = vmatpush1.bf16.msra.mxu0 %v499
    %505 = vmatprep.subr.bf16.mxu0 0
    %506 = vmatpush1.bf16.msra.mxu0 %v500
    %507 = vmatprep.subr.bf16.mxu0 0
    %508 = vmatpush1.bf16.msra.mxu0 0
    %509 = vmatprep.subr.bf16.mxu0 0
    %510 = vmatpush1.bf16.msra.mxu0 0
    %511 = vmatprep.subr.bf16.mxu0 0
    %512 = vmatpush1.bf16.msra.mxu0 0
    %513 = vmatprep.subr.bf16.mxu0 0
    %514 = vmatpush1.bf16.msra.mxu0 0
    %515 = vmatprep.subr.bf16.mxu0 0
    %516 = vmatpush1.bf16.msra.mxu0 0
    %517 = vmatprep.subr.bf16.mxu0 0
    %518 = vmatpush1.bf16.msra.mxu0 0
    %519 = vmatprep.subr.bf16.mxu0 0
    %520 = vmatpush1.bf16.msra.mxu0 0
    %521 = vmatprep.subr.bf16.mxu0 0
    %522 = vmatpush1.bf16.msra.mxu0 0
    %523 = vmatprep.subr.bf16.mxu0 0
    %524 = vmatpush1.bf16.msra.mxu0 0
    %525 = vmatprep.subr.bf16.mxu0 0
    %526 = vmatpush1.bf16.msra.mxu0 0
    %527 = vmatprep.subr.bf16.mxu0 0
    %528 = vmatpush1.bf16.msra.mxu0 0
    %529 = vmatprep.subr.bf16.mxu0 0
    %530 = vmatpush1.bf16.msra.mxu0 0
    %531 = vmatprep.subr.bf16.mxu0 0
    %532 = vmatpush1.bf16.msra.mxu0 0
    %533 = vmatprep.subr.bf16.mxu0 0
    %534 = vmatpush1.bf16.msra.mxu0 0
    %535 = vmatprep.mubr.bf16.mxu0 0
    %536 = vmatmul.mubr.bf16.gmra.mrb[0].mxu0 %v389
    %v537 = vpop.f32.mrb[0].mxu0
    %v538 = vadd.f32 0.0, %v537
    %v539 = vpop.f32.mrb[0].mxu0
    %v540 = vpop.f32.mrb[0].mxu0
    %v541 = vadd.f32 0.0, %v540
    %v542 = vpop.f32.mrb[0].mxu0
    %543 = vdwg.mxu0
    %v544 = vmul.f32 %v538, %v304
    %v545 = vmul.f32 %v541, %v305
    %v550 = vunpack.c.l.b16 %v323
    %v551 = vunpack.c.l.b16 %v324
    %v552 = vunpack.c.l.b16 %v325
    %v553 = vunpack.c.l.b16 %v326
    %v554 = vpack.c.b16 %v551, %v550
    %v555 = vpack.c.b16 %v553, %v552
    %558 = vmatprep.subr.bf16.mxu0 0
    %559 = vmatpush1.bf16.msra.mxu0 %v554
    %560 = vmatprep.subr.bf16.mxu0 0
    %561 = vmatpush1.bf16.msra.mxu0 %v555
    %562 = vmatprep.subr.bf16.mxu0 0
    %563 = vmatpush1.bf16.msra.mxu0 0
    %564 = vmatprep.subr.bf16.mxu0 0
    %565 = vmatpush1.bf16.msra.mxu0 0
    %566 = vmatprep.subr.bf16.mxu0 0
    %567 = vmatpush1.bf16.msra.mxu0 0
    %568 = vmatprep.subr.bf16.mxu0 0
    %569 = vmatpush1.bf16.msra.mxu0 0
    %570 = vmatprep.subr.bf16.mxu0 0
    %571 = vmatpush1.bf16.msra.mxu0 0
    %572 = vmatprep.subr.bf16.mxu0 0
    %573 = vmatpush1.bf16.msra.mxu0 0
    %574 = vmatprep.subr.bf16.mxu0 0
    %575 = vmatpush1.bf16.msra.mxu0 0
    %576 = vmatprep.subr.bf16.mxu0 0
    %577 = vmatpush1.bf16.msra.mxu0 0
    %578 = vmatprep.subr.bf16.mxu0 0
    %579 = vmatpush1.bf16.msra.mxu0 0
    %580 = vmatprep.subr.bf16.mxu0 0
    %581 = vmatpush1.bf16.msra.mxu0 0
    %582 = vmatprep.subr.bf16.mxu0 0
    %583 = vmatpush1.bf16.msra.mxu0 0
    %584 = vmatprep.subr.bf16.mxu0 0
    %585 = vmatpush1.bf16.msra.mxu0 0
    %586 = vmatprep.subr.bf16.mxu0 0
    %587 = vmatpush1.bf16.msra.mxu0 0
    %588 = vmatprep.subr.bf16.mxu0 0
    %589 = vmatpush1.bf16.msra.mxu0 0
    %590 = vmatprep.mubr.bf16.mxu0 0
    %591 = vmatmul.mubr.bf16.gmra.mrb[0].mxu0 %v389
    %v592 = vpop.f32.mrb[0].mxu0
    %v593 = vadd.f32 0.0, %v592
    %v594 = vpop.f32.mrb[0].mxu0
    %v595 = vpop.f32.mrb[0].mxu0
    %v596 = vadd.f32 0.0, %v595
    %v597 = vpop.f32.mrb[0].mxu0
    %598 = vdwg.mxu0
    %v599 = vmul.f32 %v593, %v306
    %v600 = vmul.f32 %v596, %v307
    %v601 = vadd.f32 %v544, %v599
    %v602 = vadd.f32 %v545, %v600
    %v607 = vunpack.c.l.b16 %v327
    %v608 = vunpack.c.l.b16 %v328
    %v609 = vunpack.c.l.b16 %v329
    %v610 = vunpack.c.l.b16 %v330
    %v611 = vpack.c.b16 %v608, %v607
    %v612 = vpack.c.b16 %v610, %v609
    %615 = vmatprep.subr.bf16.mxu0 0
    %616 = vmatpush1.bf16.msra.mxu0 %v611
    %617 = vmatprep.subr.bf16.mxu0 0
    %618 = vmatpush1.bf16.msra.mxu0 %v612
    %619 = vmatprep.subr.bf16.mxu0 0
    %620 = vmatpush1.bf16.msra.mxu0 0
    %621 = vmatprep.subr.bf16.mxu0 0
    %622 = vmatpush1.bf16.msra.mxu0 0
    %623 = vmatprep.subr.bf16.mxu0 0
    %624 = vmatpush1.bf16.msra.mxu0 0
    %625 = vmatprep.subr.bf16.mxu0 0
    %626 = vmatpush1.bf16.msra.mxu0 0
    %627 = vmatprep.subr.bf16.mxu0 0
    %628 = vmatpush1.bf16.msra.mxu0 0
    %629 = vmatprep.subr.bf16.mxu0 0
    %630 = vmatpush1.bf16.msra.mxu0 0
    %631 = vmatprep.subr.bf16.mxu0 0
    %632 = vmatpush1.bf16.msra.mxu0 0
    %633 = vmatprep.subr.bf16.mxu0 0
    %634 = vmatpush1.bf16.msra.mxu0 0
    %635 = vmatprep.subr.bf16.mxu0 0
    %636 = vmatpush1.bf16.msra.mxu0 0
    %637 = vmatprep.subr.bf16.mxu0 0
    %638 = vmatpush1.bf16.msra.mxu0 0
    %639 = vmatprep.subr.bf16.mxu0 0
    %640 = vmatpush1.bf16.msra.mxu0 0
    %641 = vmatprep.subr.bf16.mxu0 0
    %642 = vmatpush1.bf16.msra.mxu0 0
    %643 = vmatprep.subr.bf16.mxu0 0
    %644 = vmatpush1.bf16.msra.mxu0 0
    %645 = vmatprep.subr.bf16.mxu0 0
    %646 = vmatpush1.bf16.msra.mxu0 0
    %647 = vmatprep.mubr.bf16.mxu0 0
    %648 = vmatmul.mubr.bf16.gmra.mrb[0].mxu0 %v389
    %v649 = vpop.f32.mrb[0].mxu0
    %v650 = vadd.f32 0.0, %v649
    %v651 = vpop.f32.mrb[0].mxu0
    %v652 = vpop.f32.mrb[0].mxu0
    %v653 = vadd.f32 0.0, %v652
    %v654 = vpop.f32.mrb[0].mxu0
    %655 = vdwg.mxu0
    %658 = vrot.lane.b32.xlu0 %v489, 120
    %v659 = vpop.permute.xlu0 %658
    %660 = vrot.lane.b32.xlu0 %v490, 120
    %v661 = vpop.permute.xlu0 %660
    %662 = vrot.lane.b32.xlu0 %v489, 112
    %v663 = vpop.permute.xlu0 %662
    %664 = vrot.lane.b32.xlu0 %v490, 112
    %v665 = vpop.permute.xlu0 %664
    %666 = vrot.lane.b32.xlu0 %v489, 104
    %v667 = vpop.permute.xlu0 %666
    %668 = vrot.lane.b32.xlu0 %v490, 104
    %v669 = vpop.permute.xlu0 %668
    %672 = vrot.lane.b32.xlu0 %v601, 120
    %v673 = vpop.permute.xlu0 %672
    %674 = vrot.lane.b32.xlu0 %v602, 120
    %v675 = vpop.permute.xlu0 %674
    %676 = vrot.lane.b32.xlu0 %v601, 112
    %v677 = vpop.permute.xlu0 %676
    %678 = vrot.lane.b32.xlu0 %v602, 112
    %v679 = vpop.permute.xlu0 %678
    %680 = vrot.lane.b32.xlu0 %v601, 104
    %v681 = vpop.permute.xlu0 %680
    %682 = vrot.lane.b32.xlu0 %v602, 104
    %v683 = vpop.permute.xlu0 %682
    %686 = vrot.lane.b32.xlu0 %v650, 120
    %v687 = vpop.permute.xlu0 %686
    %688 = vrot.lane.b32.xlu0 %v653, 120
    %v689 = vpop.permute.xlu0 %688
    %692 = vrot.lane.b32.xlu0 %v650, 112
    %v693 = vpop.permute.xlu0 %692
    %694 = vrot.lane.b32.xlu0 %v653, 112
    %v695 = vpop.permute.xlu0 %694
    %698 = vrot.lane.b32.xlu0 %v650, 104
    %v699 = vpop.permute.xlu0 %698
    %700 = vrot.lane.b32.xlu0 %v653, 104
    %v701 = vpop.permute.xlu0 %700
    %vm704 = vcmask 64512
    %v705 = vsel %vm704, %v489, 0
    %v707 = vsel %vm704, %v490, 0
    %v709 = vsel %vm704, %v601, 0
    %v711 = vsel %vm704, %v602, 0
    %713 = vmatprep.subr.mxu0 0.0
    %714 = vmatpush1.xpose.msra.mxu0 %v709
    %715 = vmatprep.subr.mxu0 0.0
    %716 = vmatpush1.xpose.msra.mxu0 %v711
    %717 = vmatprep.subr.mxu0 0.0
    %718 = vmatpush1.xpose.msra.mxu0 0.0
    %719 = vmatprep.subr.mxu0 0.0
    %720 = vmatpush1.xpose.msra.mxu0 0.0
    %721 = vmatprep.subr.mxu0 0.0
    %722 = vmatpush1.xpose.msra.mxu0 0.0
    %723 = vmatprep.subr.mxu0 0.0
    %724 = vmatpush1.xpose.msra.mxu0 0.0
    %725 = vmatprep.subr.mxu0 0.0
    %726 = vmatpush1.xpose.msra.mxu0 0.0
    %727 = vmatprep.subr.mxu0 0.0
    %728 = vmatpush1.xpose.msra.mxu0 0.0
    %729 = vmatprep.subr.mxu0 0.0
    %730 = vmatpush1.xpose.msra.mxu0 0.0
    %731 = vmatprep.subr.mxu0 0.0
    %732 = vmatpush1.xpose.msra.mxu0 0.0
    %733 = vmatprep.subr.mxu0 0.0
    %734 = vmatpush1.xpose.msra.mxu0 0.0
    %735 = vmatprep.subr.mxu0 0.0
    %736 = vmatpush1.xpose.msra.mxu0 0.0
    %737 = vmatprep.subr.mxu0 0.0
    %738 = vmatpush1.xpose.msra.mxu0 0.0
    %739 = vmatprep.subr.mxu0 0.0
    %740 = vmatpush1.xpose.msra.mxu0 0.0
    %741 = vmatprep.subr.mxu0 0.0
    %742 = vmatpush1.xpose.msra.mxu0 0.0
    %743 = vmatprep.subr.mxu0 0.0
    %744 = vmatpush1.xpose.msra.mxu0 0.0
    %745 = vmatprep.subr.mxu0 0.0
    %746 = vmatpush1.xpose.msra.mxu0 0.0
    %747 = vmatprep.subr.mxu0 0.0
    %748 = vmatpush1.xpose.msra.mxu0 0.0
    %749 = vmatprep.subr.mxu0 0.0
    %750 = vmatpush1.xpose.msra.mxu0 0.0
    %751 = vmatprep.subr.mxu0 0.0
    %752 = vmatpush1.xpose.msra.mxu0 0.0
    %753 = vmatprep.subr.mxu0 0.0
    %754 = vmatpush1.xpose.msra.mxu0 0.0
    %755 = vmatprep.subr.mxu0 0.0
    %756 = vmatpush1.xpose.msra.mxu0 0.0
    %757 = vmatprep.subr.mxu0 0.0
    %758 = vmatpush1.xpose.msra.mxu0 0.0
    %759 = vmatprep.subr.mxu0 0.0
    %760 = vmatpush1.xpose.msra.mxu0 0.0
    %761 = vmatprep.subr.mxu0 0.0
    %762 = vmatpush1.xpose.msra.mxu0 0.0
    %763 = vmatprep.subr.mxu0 0.0
    %764 = vmatpush1.xpose.msra.mxu0 0.0
    %765 = vmatprep.subr.mxu0 0.0
    %766 = vmatpush1.xpose.msra.mxu0 0.0
    %767 = vmatprep.subr.mxu0 0.0
    %768 = vmatpush1.xpose.msra.mxu0 0.0
    %769 = vmatprep.subr.mxu0 0.0
    %770 = vmatpush1.xpose.msra.mxu0 0.0
    %771 = vmatprep.subr.mxu0 0.0
    %772 = vmatpush1.xpose.msra.mxu0 0.0
    %773 = vmatprep.subr.mxu0 0.0
    %774 = vmatpush1.xpose.msra.mxu0 0.0
    %775 = vmatprep.subr.mxu0 0.0
    %776 = vmatpush1.xpose.msra.mxu0 0.0
    %777 = vmatprep.mubr.f32.mxu0 0.0
    %778 = vmatmul.mubr.f32.gmra.mrb[0].mxu0 %v705
    %v779 = vpop.f32.mrb[0].mxu0
    %v780 = vadd.f32 %v308, %v779
    %v781 = vpop.f32.mrb[0].mxu0
    %782 = vmatprep.mubr.f32.mxu0 0.0
    %783 = vmatmul.mubr.f32.gmra.mrb[0].mxu0 %v707
    %v784 = vpop.f32.mrb[0].mxu0
    %v785 = vadd.f32 %v309, %v784
    %v786 = vpop.f32.mrb[0].mxu0
    %787 = vdwg.mxu0
    %v788 = vsel %vm704, %v659, 0
    %v790 = vsel %vm704, %v661, 0
    %v792 = vsel %vm704, %v673, 0
    %v794 = vsel %vm704, %v675, 0
    %796 = vmatprep.subr.mxu0 0.0
    %797 = vmatpush1.xpose.msra.mxu0 %v792
    %798 = vmatprep.subr.mxu0 0.0
    %799 = vmatpush1.xpose.msra.mxu0 %v794
    %800 = vmatprep.subr.mxu0 0.0
    %801 = vmatpush1.xpose.msra.mxu0 0.0
    %802 = vmatprep.subr.mxu0 0.0
    %803 = vmatpush1.xpose.msra.mxu0 0.0
    %804 = vmatprep.subr.mxu0 0.0
    %805 = vmatpush1.xpose.msra.mxu0 0.0
    %806 = vmatprep.subr.mxu0 0.0
    %807 = vmatpush1.xpose.msra.mxu0 0.0
    %808 = vmatprep.subr.mxu0 0.0
    %809 = vmatpush1.xpose.msra.mxu0 0.0
    %810 = vmatprep.subr.mxu0 0.0
    %811 = vmatpush1.xpose.msra.mxu0 0.0
    %812 = vmatprep.subr.mxu0 0.0
    %813 = vmatpush1.xpose.msra.mxu0 0.0
    %814 = vmatprep.subr.mxu0 0.0
    %815 = vmatpush1.xpose.msra.mxu0 0.0
    %816 = vmatprep.subr.mxu0 0.0
    %817 = vmatpush1.xpose.msra.mxu0 0.0
    %818 = vmatprep.subr.mxu0 0.0
    %819 = vmatpush1.xpose.msra.mxu0 0.0
    %820 = vmatprep.subr.mxu0 0.0
    %821 = vmatpush1.xpose.msra.mxu0 0.0
    %822 = vmatprep.subr.mxu0 0.0
    %823 = vmatpush1.xpose.msra.mxu0 0.0
    %824 = vmatprep.subr.mxu0 0.0
    %825 = vmatpush1.xpose.msra.mxu0 0.0
    %826 = vmatprep.subr.mxu0 0.0
    %827 = vmatpush1.xpose.msra.mxu0 0.0
    %828 = vmatprep.subr.mxu0 0.0
    %829 = vmatpush1.xpose.msra.mxu0 0.0
    %830 = vmatprep.subr.mxu0 0.0
    %831 = vmatpush1.xpose.msra.mxu0 0.0
    %832 = vmatprep.subr.mxu0 0.0
    %833 = vmatpush1.xpose.msra.mxu0 0.0
    %834 = vmatprep.subr.mxu0 0.0
    %835 = vmatpush1.xpose.msra.mxu0 0.0
    %836 = vmatprep.subr.mxu0 0.0
    %837 = vmatpush1.xpose.msra.mxu0 0.0
    %838 = vmatprep.subr.mxu0 0.0
    %839 = vmatpush1.xpose.msra.mxu0 0.0
    %840 = vmatprep.subr.mxu0 0.0
    %841 = vmatpush1.xpose.msra.mxu0 0.0
    %842 = vmatprep.subr.mxu0 0.0
    %843 = vmatpush1.xpose.msra.mxu0 0.0
    %844 = vmatprep.subr.mxu0 0.0
    %845 = vmatpush1.xpose.msra.mxu0 0.0
    %846 = vmatprep.subr.mxu0 0.0
    %847 = vmatpush1.xpose.msra.mxu0 0.0
    %848 = vmatprep.subr.mxu0 0.0
    %849 = vmatpush1.xpose.msra.mxu0 0.0
    %850 = vmatprep.subr.mxu0 0.0
    %851 = vmatpush1.xpose.msra.mxu0 0.0
    %852 = vmatprep.subr.mxu0 0.0
    %853 = vmatpush1.xpose.msra.mxu0 0.0
    %854 = vmatprep.subr.mxu0 0.0
    %855 = vmatpush1.xpose.msra.mxu0 0.0
    %856 = vmatprep.subr.mxu0 0.0
    %857 = vmatpush1.xpose.msra.mxu0 0.0
    %858 = vmatprep.subr.mxu0 0.0
    %859 = vmatpush1.xpose.msra.mxu0 0.0
    %860 = vmatprep.mubr.f32.mxu0 0.0
    %861 = vmatmul.mubr.f32.gmra.mrb[0].mxu0 %v788
    %v862 = vpop.f32.mrb[0].mxu0
    %v863 = vadd.f32 %v308, %v862
    %v864 = vpop.f32.mrb[0].mxu0
    %865 = vmatprep.mubr.f32.mxu0 0.0
    %866 = vmatmul.mubr.f32.gmra.mrb[0].mxu0 %v790
    %v867 = vpop.f32.mrb[0].mxu0
    %v868 = vadd.f32 %v309, %v867
    %v869 = vpop.f32.mrb[0].mxu0
    %870 = vdwg.mxu0
    %v871 = vsel %vm704, %v663, 0
    %v873 = vsel %vm704, %v665, 0
    %v875 = vsel %vm704, %v677, 0
    %v877 = vsel %vm704, %v679, 0
    %879 = vmatprep.subr.mxu0 0.0
    %880 = vmatpush1.xpose.msra.mxu0 %v875
    %881 = vmatprep.subr.mxu0 0.0
    %882 = vmatpush1.xpose.msra.mxu0 %v877
    %883 = vmatprep.subr.mxu0 0.0
    %884 = vmatpush1.xpose.msra.mxu0 0.0
    %885 = vmatprep.subr.mxu0 0.0
    %886 = vmatpush1.xpose.msra.mxu0 0.0
    %887 = vmatprep.subr.mxu0 0.0
    %888 = vmatpush1.xpose.msra.mxu0 0.0
    %889 = vmatprep.subr.mxu0 0.0
    %890 = vmatpush1.xpose.msra.mxu0 0.0
    %891 = vmatprep.subr.mxu0 0.0
    %892 = vmatpush1.xpose.msra.mxu0 0.0
    %893 = vmatprep.subr.mxu0 0.0
    %894 = vmatpush1.xpose.msra.mxu0 0.0
    %895 = vmatprep.subr.mxu0 0.0
    %896 = vmatpush1.xpose.msra.mxu0 0.0
    %897 = vmatprep.subr.mxu0 0.0
    %898 = vmatpush1.xpose.msra.mxu0 0.0
    %899 = vmatprep.subr.mxu0 0.0
    %900 = vmatpush1.xpose.msra.mxu0 0.0
    %901 = vmatprep.subr.mxu0 0.0
    %902 = vmatpush1.xpose.msra.mxu0 0.0
    %903 = vmatprep.subr.mxu0 0.0
    %904 = vmatpush1.xpose.msra.mxu0 0.0
    %905 = vmatprep.subr.mxu0 0.0
    %906 = vmatpush1.xpose.msra.mxu0 0.0
    %907 = vmatprep.subr.mxu0 0.0
    %908 = vmatpush1.xpose.msra.mxu0 0.0
    %909 = vmatprep.subr.mxu0 0.0
    %910 = vmatpush1.xpose.msra.mxu0 0.0
    %911 = vmatprep.subr.mxu0 0.0
    %912 = vmatpush1.xpose.msra.mxu0 0.0
    %913 = vmatprep.subr.mxu0 0.0
    %914 = vmatpush1.xpose.msra.mxu0 0.0
    %915 = vmatprep.subr.mxu0 0.0
    %916 = vmatpush1.xpose.msra.mxu0 0.0
    %917 = vmatprep.subr.mxu0 0.0
    %918 = vmatpush1.xpose.msra.mxu0 0.0
    %919 = vmatprep.subr.mxu0 0.0
    %920 = vmatpush1.xpose.msra.mxu0 0.0
    %921 = vmatprep.subr.mxu0 0.0
    %922 = vmatpush1.xpose.msra.mxu0 0.0
    %923 = vmatprep.subr.mxu0 0.0
    %924 = vmatpush1.xpose.msra.mxu0 0.0
    %925 = vmatprep.subr.mxu0 0.0
    %926 = vmatpush1.xpose.msra.mxu0 0.0
    %927 = vmatprep.subr.mxu0 0.0
    %928 = vmatpush1.xpose.msra.mxu0 0.0
    %929 = vmatprep.subr.mxu0 0.0
    %930 = vmatpush1.xpose.msra.mxu0 0.0
    %931 = vmatprep.subr.mxu0 0.0
    %932 = vmatpush1.xpose.msra.mxu0 0.0
    %933 = vmatprep.subr.mxu0 0.0
    %934 = vmatpush1.xpose.msra.mxu0 0.0
    %935 = vmatprep.subr.mxu0 0.0
    %936 = vmatpush1.xpose.msra.mxu0 0.0
    %937 = vmatprep.subr.mxu0 0.0
    %938 = vmatpush1.xpose.msra.mxu0 0.0
    %939 = vmatprep.subr.mxu0 0.0
    %940 = vmatpush1.xpose.msra.mxu0 0.0
    %941 = vmatprep.subr.mxu0 0.0
    %942 = vmatpush1.xpose.msra.mxu0 0.0
    %943 = vmatprep.mubr.f32.mxu0 0.0
    %944 = vmatmul.mubr.f32.gmra.mrb[0].mxu0 %v871
    %v945 = vpop.f32.mrb[0].mxu0
    %v946 = vadd.f32 %v308, %v945
    %v947 = vpop.f32.mrb[0].mxu0
    %948 = vmatprep.mubr.f32.mxu0 0.0
    %949 = vmatmul.mubr.f32.gmra.mrb[0].mxu0 %v873
    %v950 = vpop.f32.mrb[0].mxu0
    %v951 = vadd.f32 %v309, %v950
    %v952 = vpop.f32.mrb[0].mxu0
    %953 = vdwg.mxu0
    %v954 = vsel %vm704, %v667, 0
    %v956 = vsel %vm704, %v669, 0
    %v958 = vsel %vm704, %v681, 0
    %v960 = vsel %vm704, %v683, 0
    %962 = vmatprep.subr.mxu0 0.0
    %963 = vmatpush1.xpose.msra.mxu0 %v958
    %964 = vmatprep.subr.mxu0 0.0
    %965 = vmatpush1.xpose.msra.mxu0 %v960
    %966 = vmatprep.subr.mxu0 0.0
    %967 = vmatpush1.xpose.msra.mxu0 0.0
    %968 = vmatprep.subr.mxu0 0.0
    %969 = vmatpush1.xpose.msra.mxu0 0.0
    %970 = vmatprep.subr.mxu0 0.0
    %971 = vmatpush1.xpose.msra.mxu0 0.0
    %972 = vmatprep.subr.mxu0 0.0
    %973 = vmatpush1.xpose.msra.mxu0 0.0
    %974 = vmatprep.subr.mxu0 0.0
    %975 = vmatpush1.xpose.msra.mxu0 0.0
    %976 = vmatprep.subr.mxu0 0.0
    %977 = vmatpush1.xpose.msra.mxu0 0.0
    %978 = vmatprep.subr.mxu0 0.0
    %979 = vmatpush1.xpose.msra.mxu0 0.0
    %980 = vmatprep.subr.mxu0 0.0
    %981 = vmatpush1.xpose.msra.mxu0 0.0
    %982 = vmatprep.subr.mxu0 0.0
    %983 = vmatpush1.xpose.msra.mxu0 0.0
    %984 = vmatprep.subr.mxu0 0.0
    %985 = vmatpush1.xpose.msra.mxu0 0.0
    %986 = vmatprep.subr.mxu0 0.0
    %987 = vmatpush1.xpose.msra.mxu0 0.0
    %988 = vmatprep.subr.mxu0 0.0
    %989 = vmatpush1.xpose.msra.mxu0 0.0
    %990 = vmatprep.subr.mxu0 0.0
    %991 = vmatpush1.xpose.msra.mxu0 0.0
    %992 = vmatprep.subr.mxu0 0.0
    %993 = vmatpush1.xpose.msra.mxu0 0.0
    %994 = vmatprep.subr.mxu0 0.0
    %995 = vmatpush1.xpose.msra.mxu0 0.0
    %996 = vmatprep.subr.mxu0 0.0
    %997 = vmatpush1.xpose.msra.mxu0 0.0
    %998 = vmatprep.subr.mxu0 0.0
    %999 = vmatpush1.xpose.msra.mxu0 0.0
    %1000 = vmatprep.subr.mxu0 0.0
    %1001 = vmatpush1.xpose.msra.mxu0 0.0
    %1002 = vmatprep.subr.mxu0 0.0
    %1003 = vmatpush1.xpose.msra.mxu0 0.0
    %1004 = vmatprep.subr.mxu0 0.0
    %1005 = vmatpush1.xpose.msra.mxu0 0.0
    %1006 = vmatprep.subr.mxu0 0.0
    %1007 = vmatpush1.xpose.msra.mxu0 0.0
    %1008 = vmatprep.subr.mxu0 0.0
    %1009 = vmatpush1.xpose.msra.mxu0 0.0
    %1010 = vmatprep.subr.mxu0 0.0
    %1011 = vmatpush1.xpose.msra.mxu0 0.0
    %1012 = vmatprep.subr.mxu0 0.0
    %1013 = vmatpush1.xpose.msra.mxu0 0.0
    %1014 = vmatprep.subr.mxu0 0.0
    %1015 = vmatpush1.xpose.msra.mxu0 0.0
    %1016 = vmatprep.subr.mxu0 0.0
    %1017 = vmatpush1.xpose.msra.mxu0 0.0
    %1018 = vmatprep.subr.mxu0 0.0
    %1019 = vmatpush1.xpose.msra.mxu0 0.0
    %1020 = vmatprep.subr.mxu0 0.0
    %1021 = vmatpush1.xpose.msra.mxu0 0.0
    %1022 = vmatprep.subr.mxu0 0.0
    %1023 = vmatpush1.xpose.msra.mxu0 0.0
    %1024 = vmatprep.subr.mxu0 0.0
    %1025 = vmatpush1.xpose.msra.mxu0 0.0
    %1026 = vmatprep.mubr.f32.mxu0 0.0
    %1027 = vmatmul.mubr.f32.gmra.mrb[0].mxu0 %v954
    %v1028 = vpop.f32.mrb[0].mxu0
    %v1029 = vadd.f32 %v308, %v1028
    %v1030 = vpop.f32.mrb[0].mxu0
    %1031 = vmatprep.mubr.f32.mxu0 0.0
    %1032 = vmatmul.mubr.f32.gmra.mrb[0].mxu0 %v956
    %v1033 = vpop.f32.mrb[0].mxu0
    %v1034 = vadd.f32 %v309, %v1033
    %v1035 = vpop.f32.mrb[0].mxu0
    %1036 = vdwg.mxu0
    %vm1037 = vcmask 130048
    %v1038 = vsel %vm1037, %v780, -inf
    %1039 = vmax.xlane.f32.xlu0 %v1038
    %v1040 = vpop.xlane.xlu0 %1039
    %v1041 = vsel %vm1037, %v785, -inf
    %1042 = vmax.xlane.f32.xlu0 %v1041
    %v1043 = vpop.xlane.xlu0 %1042
    %v1044 = vsel %vm1037, %v863, -inf
    %1045 = vmax.xlane.f32.xlu0 %v1044
    %v1046 = vpop.xlane.xlu0 %1045
    %v1047 = vsel %vm1037, %v868, -inf
    %1048 = vmax.xlane.f32.xlu0 %v1047
    %v1049 = vpop.xlane.xlu0 %1048
    %v1050 = vsel %vm1037, %v946, -inf
    %1051 = vmax.xlane.f32.xlu0 %v1050
    %v1052 = vpop.xlane.xlu0 %1051
    %v1053 = vsel %vm1037, %v951, -inf
    %1054 = vmax.xlane.f32.xlu0 %v1053
    %v1055 = vpop.xlane.xlu0 %1054
    %v1056 = vsel %vm1037, %v1029, -inf
    %1057 = vmax.xlane.f32.xlu0 %v1056
    %v1058 = vpop.xlane.xlu0 %1057
    %v1059 = vsel %vm1037, %v1034, -inf
    %1060 = vmax.xlane.f32.xlu0 %v1059
    %v1061 = vpop.xlane.xlu0 %1060
    %v1062 = vsub.f32 %v780, %v1040
    %v1063 = vsub.f32 %v785, %v1043
    %v1064 = vsub.f32 %v863, %v1046
    %v1065 = vsub.f32 %v868, %v1049
    %v1066 = vsub.f32 %v946, %v1052
    %v1067 = vsub.f32 %v951, %v1055
    %v1068 = vsub.f32 %v1029, %v1058
    %v1069 = vsub.f32 %v1034, %v1061
    %v1070 = vmul.f32 %v1062, 1.442695
    %v1071 = vpow.pop %v1070
    %v1072 = vmul.f32 %v1063, 1.442695
    %v1073 = vpow.pop %v1072
    %v1074 = vmul.f32 %v1064, 1.442695
    %v1075 = vpow.pop %v1074
    %v1076 = vmul.f32 %v1065, 1.442695
    %v1077 = vpow.pop %v1076
    %v1078 = vmul.f32 %v1066, 1.442695
    %v1079 = vpow.pop %v1078
    %v1080 = vmul.f32 %v1067, 1.442695
    %v1081 = vpow.pop %v1080
    %v1082 = vmul.f32 %v1068, 1.442695
    %v1083 = vpow.pop %v1082
    %v1084 = vmul.f32 %v1069, 1.442695
    %v1085 = vpow.pop %v1084
    %v1086 = vsel %vm1037, %v1071, 0.0
    %1087 = vadd.xlane.f32.xlu0 %v1086
    %v1088 = vpop.xlane.xlu0 %1087
    %v1089 = vsel %vm1037, %v1073, 0.0
    %1090 = vadd.xlane.f32.xlu0 %v1089
    %v1091 = vpop.xlane.xlu0 %1090
    %v1092 = vsel %vm1037, %v1075, 0.0
    %1093 = vadd.xlane.f32.xlu0 %v1092
    %v1094 = vpop.xlane.xlu0 %1093
    %v1095 = vsel %vm1037, %v1077, 0.0
    %1096 = vadd.xlane.f32.xlu0 %v1095
    %v1097 = vpop.xlane.xlu0 %1096
    %v1098 = vsel %vm1037, %v1079, 0.0
    %1099 = vadd.xlane.f32.xlu0 %v1098
    %v1100 = vpop.xlane.xlu0 %1099
    %v1101 = vsel %vm1037, %v1081, 0.0
    %1102 = vadd.xlane.f32.xlu0 %v1101
    %v1103 = vpop.xlane.xlu0 %1102
    %v1104 = vsel %vm1037, %v1083, 0.0
    %1105 = vadd.xlane.f32.xlu0 %v1104
    %v1106 = vpop.xlane.xlu0 %1105
    %v1107 = vsel %vm1037, %v1085, 0.0
    %1108 = vadd.xlane.f32.xlu0 %v1107
    %v1109 = vpop.xlane.xlu0 %1108
    %v1110 = vrcp.pop %v1088
    %v1111 = vmul.f32 %v1071, %v1110
    %v1112 = vrcp.pop %v1091
    %v1113 = vmul.f32 %v1073, %v1112
    %v1114 = vrcp.pop %v1094
    %v1115 = vmul.f32 %v1075, %v1114
    %v1116 = vrcp.pop %v1097
    %v1117 = vmul.f32 %v1077, %v1116
    %v1118 = vrcp.pop %v1100
    %v1119 = vmul.f32 %v1079, %v1118
    %v1120 = vrcp.pop %v1103
    %v1121 = vmul.f32 %v1081, %v1120
    %v1122 = vrcp.pop %v1106
    %v1123 = vmul.f32 %v1083, %v1122
    %v1124 = vrcp.pop %v1109
    %v1125 = vmul.f32 %v1085, %v1124
    %v1127 = vsel %vm1037, %v1111, 0
    %v1130 = vsel %vm1037, %v1113, 0
    %1132 = vmatprep.subr.mxu0 0.0
    %1133 = vmatpush1.msra.mxu0 %v650
    %1134 = vmatprep.subr.mxu0 0.0
    %1135 = vmatpush1.msra.mxu0 %v653
    %1136 = vmatprep.subr.mxu0 0.0
    %1137 = vmatpush1.msra.mxu0 0.0
    %1138 = vmatprep.subr.mxu0 0.0
    %1139 = vmatpush1.msra.mxu0 0.0
    %1140 = vmatprep.subr.mxu0 0.0
    %1141 = vmatpush1.msra.mxu0 0.0
    %1142 = vmatprep.subr.mxu0 0.0
    %1143 = vmatpush1.msra.mxu0 0.0
    %1144 = vmatprep.subr.mxu0 0.0
    %1145 = vmatpush1.msra.mxu0 0.0
    %1146 = vmatprep.subr.mxu0 0.0
    %1147 = vmatpush1.msra.mxu0 0.0
    %1148 = vmatprep.subr.mxu0 0.0
    %1149 = vmatpush1.msra.mxu0 0.0
    %1150 = vmatprep.subr.mxu0 0.0
    %1151 = vmatpush1.msra.mxu0 0.0
    %1152 = vmatprep.subr.mxu0 0.0
    %1153 = vmatpush1.msra.mxu0 0.0
    %1154 = vmatprep.subr.mxu0 0.0
    %1155 = vmatpush1.msra.mxu0 0.0
    %1156 = vmatprep.subr.mxu0 0.0
    %1157 = vmatpush1.msra.mxu0 0.0
    %1158 = vmatprep.subr.mxu0 0.0
    %1159 = vmatpush1.msra.mxu0 0.0
    %1160 = vmatprep.subr.mxu0 0.0
    %1161 = vmatpush1.msra.mxu0 0.0
    %1162 = vmatprep.subr.mxu0 0.0
    %1163 = vmatpush1.msra.mxu0 0.0
    %1164 = vmatprep.subr.mxu0 0.0
    %1165 = vmatpush1.msra.mxu0 0.0
    %1166 = vmatprep.subr.mxu0 0.0
    %1167 = vmatpush1.msra.mxu0 0.0
    %1168 = vmatprep.subr.mxu0 0.0
    %1169 = vmatpush1.msra.mxu0 0.0
    %1170 = vmatprep.subr.mxu0 0.0
    %1171 = vmatpush1.msra.mxu0 0.0
    %1172 = vmatprep.subr.mxu0 0.0
    %1173 = vmatpush1.msra.mxu0 0.0
    %1174 = vmatprep.subr.mxu0 0.0
    %1175 = vmatpush1.msra.mxu0 0.0
    %1176 = vmatprep.subr.mxu0 0.0
    %1177 = vmatpush1.msra.mxu0 0.0
    %1178 = vmatprep.subr.mxu0 0.0
    %1179 = vmatpush1.msra.mxu0 0.0
    %1180 = vmatprep.subr.mxu0 0.0
    %1181 = vmatpush1.msra.mxu0 0.0
    %1182 = vmatprep.subr.mxu0 0.0
    %1183 = vmatpush1.msra.mxu0 0.0
    %1184 = vmatprep.subr.mxu0 0.0
    %1185 = vmatpush1.msra.mxu0 0.0
    %1186 = vmatprep.subr.mxu0 0.0
    %1187 = vmatpush1.msra.mxu0 0.0
    %1188 = vmatprep.subr.mxu0 0.0
    %1189 = vmatpush1.msra.mxu0 0.0
    %1190 = vmatprep.subr.mxu0 0.0
    %1191 = vmatpush1.msra.mxu0 0.0
    %1192 = vmatprep.subr.mxu0 0.0
    %1193 = vmatpush1.msra.mxu0 0.0
    %1194 = vmatprep.subr.mxu0 0.0
    %1195 = vmatpush1.msra.mxu0 0.0
    %1196 = vmatprep.mubr.f32.mxu0 0.0
    %1197 = vmatmul.mubr.f32.gmra.mrb[0].mxu0 %v1127
    %v1198 = vpop.f32.mrb[0].mxu0
    %v1199 = vadd.f32 0.0, %v1198
    %v1200 = vpop.f32.mrb[0].mxu0
    %1201 = vmatprep.mubr.f32.mxu0 0.0
    %1202 = vmatmul.mubr.f32.gmra.mrb[0].mxu0 %v1130
    %v1203 = vpop.f32.mrb[0].mxu0
    %v1204 = vadd.f32 0.0, %v1203
    %v1205 = vpop.f32.mrb[0].mxu0
    %1206 = vdwg.mxu0
    %v1208 = vsel %vm1037, %v1115, 0
    %v1211 = vsel %vm1037, %v1117, 0
    %1213 = vmatprep.subr.mxu0 0.0
    %1214 = vmatpush1.msra.mxu0 %v687
    %1215 = vmatprep.subr.mxu0 0.0
    %1216 = vmatpush1.msra.mxu0 %v689
    %1217 = vmatprep.subr.mxu0 0.0
    %1218 = vmatpush1.msra.mxu0 0.0
    %1219 = vmatprep.subr.mxu0 0.0
    %1220 = vmatpush1.msra.mxu0 0.0
    %1221 = vmatprep.subr.mxu0 0.0
    %1222 = vmatpush1.msra.mxu0 0.0
    %1223 = vmatprep.subr.mxu0 0.0
    %1224 = vmatpush1.msra.mxu0 0.0
    %1225 = vmatprep.subr.mxu0 0.0
    %1226 = vmatpush1.msra.mxu0 0.0
    %1227 = vmatprep.subr.mxu0 0.0
    %1228 = vmatpush1.msra.mxu0 0.0
    %1229 = vmatprep.subr.mxu0 0.0
    %1230 = vmatpush1.msra.mxu0 0.0
    %1231 = vmatprep.subr.mxu0 0.0
    %1232 = vmatpush1.msra.mxu0 0.0
    %1233 = vmatprep.subr.mxu0 0.0
    %1234 = vmatpush1.msra.mxu0 0.0
    %1235 = vmatprep.subr.mxu0 0.0
    %1236 = vmatpush1.msra.mxu0 0.0
    %1237 = vmatprep.subr.mxu0 0.0
    %1238 = vmatpush1.msra.mxu0 0.0
    %1239 = vmatprep.subr.mxu0 0.0
    %1240 = vmatpush1.msra.mxu0 0.0
    %1241 = vmatprep.subr.mxu0 0.0
    %1242 = vmatpush1.msra.mxu0 0.0
    %1243 = vmatprep.subr.mxu0 0.0
    %1244 = vmatpush1.msra.mxu0 0.0
    %1245 = vmatprep.subr.mxu0 0.0
    %1246 = vmatpush1.msra.mxu0 0.0
    %1247 = vmatprep.subr.mxu0 0.0
    %1248 = vmatpush1.msra.mxu0 0.0
    %1249 = vmatprep.subr.mxu0 0.0
    %1250 = vmatpush1.msra.mxu0 0.0
    %1251 = vmatprep.subr.mxu0 0.0
    %1252 = vmatpush1.msra.mxu0 0.0
    %1253 = vmatprep.subr.mxu0 0.0
    %1254 = vmatpush1.msra.mxu0 0.0
    %1255 = vmatprep.subr.mxu0 0.0
    %1256 = vmatpush1.msra.mxu0 0.0
    %1257 = vmatprep.subr.mxu0 0.0
    %1258 = vmatpush1.msra.mxu0 0.0
    %1259 = vmatprep.subr.mxu0 0.0
    %1260 = vmatpush1.msra.mxu0 0.0
    %1261 = vmatprep.subr.mxu0 0.0
    %1262 = vmatpush1.msra.mxu0 0.0
    %1263 = vmatprep.subr.mxu0 0.0
    %1264 = vmatpush1.msra.mxu0 0.0
    %1265 = vmatprep.subr.mxu0 0.0
    %1266 = vmatpush1.msra.mxu0 0.0
    %1267 = vmatprep.subr.mxu0 0.0
    %1268 = vmatpush1.msra.mxu0 0.0
    %1269 = vmatprep.subr.mxu0 0.0
    %1270 = vmatpush1.msra.mxu0 0.0
    %1271 = vmatprep.subr.mxu0 0.0
    %1272 = vmatpush1.msra.mxu0 0.0
    %1273 = vmatprep.subr.mxu0 0.0
    %1274 = vmatpush1.msra.mxu0 0.0
    %1275 = vmatprep.subr.mxu0 0.0
    %1276 = vmatpush1.msra.mxu0 0.0
    %1277 = vmatprep.mubr.f32.mxu0 0.0
    %1278 = vmatmul.mubr.f32.gmra.mrb[0].mxu0 %v1208
    %v1279 = vpop.f32.mrb[0].mxu0
    %v1280 = vadd.f32 0.0, %v1279
    %v1281 = vpop.f32.mrb[0].mxu0
    %1282 = vmatprep.mubr.f32.mxu0 0.0
    %1283 = vmatmul.mubr.f32.gmra.mrb[0].mxu0 %v1211
    %v1284 = vpop.f32.mrb[0].mxu0
    %v1285 = vadd.f32 0.0, %v1284
    %v1286 = vpop.f32.mrb[0].mxu0
    %1287 = vdwg.mxu0
    %v1289 = vsel %vm1037, %v1119, 0
    %v1292 = vsel %vm1037, %v1121, 0
    %1294 = vmatprep.subr.mxu0 0.0
    %1295 = vmatpush1.msra.mxu0 %v693
    %1296 = vmatprep.subr.mxu0 0.0
    %1297 = vmatpush1.msra.mxu0 %v695
    %1298 = vmatprep.subr.mxu0 0.0
    %1299 = vmatpush1.msra.mxu0 0.0
    %1300 = vmatprep.subr.mxu0 0.0
    %1301 = vmatpush1.msra.mxu0 0.0
    %1302 = vmatprep.subr.mxu0 0.0
    %1303 = vmatpush1.msra.mxu0 0.0
    %1304 = vmatprep.subr.mxu0 0.0
    %1305 = vmatpush1.msra.mxu0 0.0
    %1306 = vmatprep.subr.mxu0 0.0
    %1307 = vmatpush1.msra.mxu0 0.0
    %1308 = vmatprep.subr.mxu0 0.0
    %1309 = vmatpush1.msra.mxu0 0.0
    %1310 = vmatprep.subr.mxu0 0.0
    %1311 = vmatpush1.msra.mxu0 0.0
    %1312 = vmatprep.subr.mxu0 0.0
    %1313 = vmatpush1.msra.mxu0 0.0
    %1314 = vmatprep.subr.mxu0 0.0
    %1315 = vmatpush1.msra.mxu0 0.0
    %1316 = vmatprep.subr.mxu0 0.0
    %1317 = vmatpush1.msra.mxu0 0.0
    %1318 = vmatprep.subr.mxu0 0.0
    %1319 = vmatpush1.msra.mxu0 0.0
    %1320 = vmatprep.subr.mxu0 0.0
    %1321 = vmatpush1.msra.mxu0 0.0
    %1322 = vmatprep.subr.mxu0 0.0
    %1323 = vmatpush1.msra.mxu0 0.0
    %1324 = vmatprep.subr.mxu0 0.0
    %1325 = vmatpush1.msra.mxu0 0.0
    %1326 = vmatprep.subr.mxu0 0.0
    %1327 = vmatpush1.msra.mxu0 0.0
    %1328 = vmatprep.subr.mxu0 0.0
    %1329 = vmatpush1.msra.mxu0 0.0
    %1330 = vmatprep.subr.mxu0 0.0
    %1331 = vmatpush1.msra.mxu0 0.0
    %1332 = vmatprep.subr.mxu0 0.0
    %1333 = vmatpush1.msra.mxu0 0.0
    %1334 = vmatprep.subr.mxu0 0.0
    %1335 = vmatpush1.msra.mxu0 0.0
    %1336 = vmatprep.subr.mxu0 0.0
    %1337 = vmatpush1.msra.mxu0 0.0
    %1338 = vmatprep.subr.mxu0 0.0
    %1339 = vmatpush1.msra.mxu0 0.0
    %1340 = vmatprep.subr.mxu0 0.0
    %1341 = vmatpush1.msra.mxu0 0.0
    %1342 = vmatprep.subr.mxu0 0.0
    %1343 = vmatpush1.msra.mxu0 0.0
    %1344 = vmatprep.subr.mxu0 0.0
    %1345 = vmatpush1.msra.mxu0 0.0
    %1346 = vmatprep.subr.mxu0 0.0
    %1347 = vmatpush1.msra.mxu0 0.0
    %1348 = vmatprep.subr.mxu0 0.0
    %1349 = vmatpush1.msra.mxu0 0.0
    %1350 = vmatprep.subr.mxu0 0.0
    %1351 = vmatpush1.msra.mxu0 0.0
    %1352 = vmatprep.subr.mxu0 0.0
    %1353 = vmatpush1.msra.mxu0 0.0
    %1354 = vmatprep.subr.mxu0 0.0
    %1355 = vmatpush1.msra.mxu0 0.0
    %1356 = vmatprep.subr.mxu0 0.0
    %1357 = vmatpush1.msra.mxu0 0.0
    %1358 = vmatprep.mubr.f32.mxu0 0.0
    %1359 = vmatmul.mubr.f32.gmra.mrb[0].mxu0 %v1289
    %v1360 = vpop.f32.mrb[0].mxu0
    %v1361 = vadd.f32 0.0, %v1360
    %v1362 = vpop.f32.mrb[0].mxu0
    %1363 = vmatprep.mubr.f32.mxu0 0.0
    %1364 = vmatmul.mubr.f32.gmra.mrb[0].mxu0 %v1292
    %v1365 = vpop.f32.mrb[0].mxu0
    %v1366 = vadd.f32 0.0, %v1365
    %v1367 = vpop.f32.mrb[0].mxu0
    %1368 = vdwg.mxu0
    %v1370 = vsel %vm1037, %v1123, 0
    %v1373 = vsel %vm1037, %v1125, 0
    %1375 = vmatprep.subr.mxu0 0.0
    %1376 = vmatpush1.msra.mxu0 %v699
    %1377 = vmatprep.subr.mxu0 0.0
    %1378 = vmatpush1.msra.mxu0 %v701
    %1379 = vmatprep.subr.mxu0 0.0
    %1380 = vmatpush1.msra.mxu0 0.0
    %1381 = vmatprep.subr.mxu0 0.0
    %1382 = vmatpush1.msra.mxu0 0.0
    %1383 = vmatprep.subr.mxu0 0.0
    %1384 = vmatpush1.msra.mxu0 0.0
    %1385 = vmatprep.subr.mxu0 0.0
    %1386 = vmatpush1.msra.mxu0 0.0
    %1387 = vmatprep.subr.mxu0 0.0
    %1388 = vmatpush1.msra.mxu0 0.0
    %1389 = vmatprep.subr.mxu0 0.0
    %1390 = vmatpush1.msra.mxu0 0.0
    %1391 = vmatprep.subr.mxu0 0.0
    %1392 = vmatpush1.msra.mxu0 0.0
    %1393 = vmatprep.subr.mxu0 0.0
    %1394 = vmatpush1.msra.mxu0 0.0
    %1395 = vmatprep.subr.mxu0 0.0
    %1396 = vmatpush1.msra.mxu0 0.0
    %1397 = vmatprep.subr.mxu0 0.0
    %1398 = vmatpush1.msra.mxu0 0.0
    %1399 = vmatprep.subr.mxu0 0.0
    %1400 = vmatpush1.msra.mxu0 0.0
    %1401 = vmatprep.subr.mxu0 0.0
    %1402 = vmatpush1.msra.mxu0 0.0
    %1403 = vmatprep.subr.mxu0 0.0
    %1404 = vmatpush1.msra.mxu0 0.0
    %1405 = vmatprep.subr.mxu0 0.0
    %1406 = vmatpush1.msra.mxu0 0.0
    %1407 = vmatprep.subr.mxu0 0.0
    %1408 = vmatpush1.msra.mxu0 0.0
    %1409 = vmatprep.subr.mxu0 0.0
    %1410 = vmatpush1.msra.mxu0 0.0
    %1411 = vmatprep.subr.mxu0 0.0
    %1412 = vmatpush1.msra.mxu0 0.0
    %1413 = vmatprep.subr.mxu0 0.0
    %1414 = vmatpush1.msra.mxu0 0.0
    %1415 = vmatprep.subr.mxu0 0.0
    %1416 = vmatpush1.msra.mxu0 0.0
    %1417 = vmatprep.subr.mxu0 0.0
    %1418 = vmatpush1.msra.mxu0 0.0
    %1419 = vmatprep.subr.mxu0 0.0
    %1420 = vmatpush1.msra.mxu0 0.0
    %1421 = vmatprep.subr.mxu0 0.0
    %1422 = vmatpush1.msra.mxu0 0.0
    %1423 = vmatprep.subr.mxu0 0.0
    %1424 = vmatpush1.msra.mxu0 0.0
    %1425 = vmatprep.subr.mxu0 0.0
    %1426 = vmatpush1.msra.mxu0 0.0
    %1427 = vmatprep.subr.mxu0 0.0
    %1428 = vmatpush1.msra.mxu0 0.0
    %1429 = vmatprep.subr.mxu0 0.0
    %1430 = vmatpush1.msra.mxu0 0.0
    %1431 = vmatprep.subr.mxu0 0.0
    %1432 = vmatpush1.msra.mxu0 0.0
    %1433 = vmatprep.subr.mxu0 0.0
    %1434 = vmatpush1.msra.mxu0 0.0
    %1435 = vmatprep.subr.mxu0 0.0
    %1436 = vmatpush1.msra.mxu0 0.0
    %1437 = vmatprep.subr.mxu0 0.0
    %1438 = vmatpush1.msra.mxu0 0.0
    %1439 = vmatprep.mubr.f32.mxu0 0.0
    %1440 = vmatmul.mubr.f32.gmra.mrb[0].mxu0 %v1370
    %v1441 = vpop.f32.mrb[0].mxu0
    %v1442 = vadd.f32 0.0, %v1441
    %v1443 = vpop.f32.mrb[0].mxu0
    %1444 = vmatprep.mubr.f32.mxu0 0.0
    %1445 = vmatmul.mubr.f32.gmra.mrb[0].mxu0 %v1373
    %v1446 = vpop.f32.mrb[0].mxu0
    %v1447 = vadd.f32 0.0, %v1446
    %v1448 = vpop.f32.mrb[0].mxu0
    %1449 = vdwg.mxu0
    %1452 = vrot.lane.b32.xlu0 %v1280, 8
    %v1453 = vpop.permute.xlu0 %1452
    %1454 = vrot.lane.b32.xlu0 %v1285, 8
    %v1455 = vpop.permute.xlu0 %1454
    %1460 = vrot.lane.b32.xlu0 %v1361, 16
    %v1461 = vpop.permute.xlu0 %1460
    %1462 = vrot.lane.b32.xlu0 %v1366, 16
    %v1463 = vpop.permute.xlu0 %1462
    %1468 = vrot.lane.b32.xlu0 %v1442, 24
    %v1469 = vpop.permute.xlu0 %1468
    %1470 = vrot.lane.b32.xlu0 %v1447, 24
    %v1471 = vpop.permute.xlu0 %1470
    %v1474 = vsel %vm704, %v1199, %v1453
    %v1475 = vsel %vm704, %v1204, %v1455
    %v1476 = vsel %vm1037, %v1474, %v1461
    %v1477 = vsel %vm1037, %v1475, %v1463
    %vm1478 = vcmask 195584
    %v1479 = vsel %vm1478, %v1476, %v1469
    %v1480 = vsel %vm1478, %v1477, %v1471
    %v1481 = vpack.c.bf16 %v1480, %v1479
    %v1486 = vunpack.c.l.b16 %v331
    %v1487 = vunpack.c.l.b16 %v332
    %v1488 = vunpack.c.l.b16 %v333
    %v1489 = vunpack.c.l.b16 %v334
    %v1490 = vpack.c.b16 %v1487, %v1486
    %v1491 = vpack.c.b16 %v1489, %v1488
    %v1495 = vsel %vm353, %v1481, 0
    %1497 = vmatprep.subr.bf16.mxu0 0
    %1498 = vmatpush1.bf16.msra.mxu0 %v1490
    %1499 = vmatprep.subr.bf16.mxu0 0
    %1500 = vmatpush1.bf16.msra.mxu0 %v1491
    %1501 = vmatprep.subr.bf16.mxu0 0
    %1502 = vmatpush1.bf16.msra.mxu0 0
    %1503 = vmatprep.subr.bf16.mxu0 0
    %1504 = vmatpush1.bf16.msra.mxu0 0
    %1505 = vmatprep.subr.bf16.mxu0 0
    %1506 = vmatpush1.bf16.msra.mxu0 0
    %1507 = vmatprep.subr.bf16.mxu0 0
    %1508 = vmatpush1.bf16.msra.mxu0 0
    %1509 = vmatprep.subr.bf16.mxu0 0
    %1510 = vmatpush1.bf16.msra.mxu0 0
    %1511 = vmatprep.subr.bf16.mxu0 0
    %1512 = vmatpush1.bf16.msra.mxu0 0
    %1513 = vmatprep.subr.bf16.mxu0 0
    %1514 = vmatpush1.bf16.msra.mxu0 0
    %1515 = vmatprep.subr.bf16.mxu0 0
    %1516 = vmatpush1.bf16.msra.mxu0 0
    %1517 = vmatprep.subr.bf16.mxu0 0
    %1518 = vmatpush1.bf16.msra.mxu0 0
    %1519 = vmatprep.subr.bf16.mxu0 0
    %1520 = vmatpush1.bf16.msra.mxu0 0
    %1521 = vmatprep.subr.bf16.mxu0 0
    %1522 = vmatpush1.bf16.msra.mxu0 0
    %1523 = vmatprep.subr.bf16.mxu0 0
    %1524 = vmatpush1.bf16.msra.mxu0 0
    %1525 = vmatprep.subr.bf16.mxu0 0
    %1526 = vmatpush1.bf16.msra.mxu0 0
    %1527 = vmatprep.subr.bf16.mxu0 0
    %1528 = vmatpush1.bf16.msra.mxu0 0
    %1529 = vmatprep.mubr.bf16.mxu0 0
    %1530 = vmatmul.mubr.bf16.gmra.mrb[0].mxu0 %v1495
    %v1531 = vpop.f32.mrb[0].mxu0
    %v1532 = vadd.f32 0.0, %v1531
    %v1533 = vpop.f32.mrb[0].mxu0
    %v1534 = vpop.f32.mrb[0].mxu0
    %v1535 = vadd.f32 0.0, %v1534
    %v1536 = vpop.f32.mrb[0].mxu0
    %1537 = vdwg.mxu0
    %v1538 = vadd.f32 %v296, %v1532
    %v1539 = vadd.f32 %v301, %v1535
    %v1540 = vmul.f32 %v1538, %v1538
    %v1541 = vmul.f32 %v1539, %v1539
    %v1542 = vsel %vm353, %v1540, 0.0
    %1543 = vadd.xlane.f32.xlu0 %v1542
    %v1544 = vpop.xlane.xlu0 %1543
    %v1545 = vsel %vm353, %v1541, 0.0
    %1546 = vadd.xlane.f32.xlu0 %v1545
    %v1547 = vpop.xlane.xlu0 %1546
    %v1548 = vmul.f32 %v1544, %v360
    %v1549 = vmul.f32 %v1547, %v360
    %v1550 = vadd.f32 %v1548, 1e-05
    %v1551 = vadd.f32 %v1549, 1e-05
    %v1552 = vrsqrt.pop %v1550
    %v1553 = vrsqrt.pop %v1551
    %v1554 = vmul.f32 %v1538, %v1552
    %v1555 = vmul.f32 %v1539, %v1553
    %v1556 = vlaneseq
    %v1557 = vshrl.u32 %v1556, 7
    %v1558 = vsub.s32 2, %v1557
    %v1559 = vrot.slane %v310, %v1558
    %v1560 = vmul.f32 %v1554, %v1559
    %v1561 = vmul.f32 %v1555, %v1559
    %v1562 = vpack.c.bf16 %v1561, %v1560
    %v1567 = vunpack.c.l.b16 %v335
    %v1568 = vunpack.c.l.b16 %v336
    %v1569 = vunpack.c.l.b16 %v337
    %v1570 = vunpack.c.l.b16 %v338
    %v1571 = vpack.c.b16 %v1568, %v1567
    %v1572 = vpack.c.b16 %v1570, %v1569
    %v1576 = vsel %vm353, %v1562, 0
    %1578 = vmatprep.subr.bf16.mxu0 0
    %1579 = vmatpush1.bf16.msra.mxu0 %v1571
    %1580 = vmatprep.subr.bf16.mxu0 0
    %1581 = vmatpush1.bf16.msra.mxu0 %v1572
    %1582 = vmatprep.subr.bf16.mxu0 0
    %1583 = vmatpush1.bf16.msra.mxu0 0
    %1584 = vmatprep.subr.bf16.mxu0 0
    %1585 = vmatpush1.bf16.msra.mxu0 0
    %1586 = vmatprep.subr.bf16.mxu0 0
    %1587 = vmatpush1.bf16.msra.mxu0 0
    %1588 = vmatprep.subr.bf16.mxu0 0
    %1589 = vmatpush1.bf16.msra.mxu0 0
    %1590 = vmatprep.subr.bf16.mxu0 0
    %1591 = vmatpush1.bf16.msra.mxu0 0
    %1592 = vmatprep.subr.bf16.mxu0 0
    %1593 = vmatpush1.bf16.msra.mxu0 0
    %1594 = vmatprep.subr.bf16.mxu0 0
    %1595 = vmatpush1.bf16.msra.mxu0 0
    %1596 = vmatprep.subr.bf16.mxu0 0
    %1597 = vmatpush1.bf16.msra.mxu0 0
    %1598 = vmatprep.subr.bf16.mxu0 0
    %1599 = vmatpush1.bf16.msra.mxu0 0
    %1600 = vmatprep.subr.bf16.mxu0 0
    %1601 = vmatpush1.bf16.msra.mxu0 0
    %1602 = vmatprep.subr.bf16.mxu0 0
    %1603 = vmatpush1.bf16.msra.mxu0 0
    %1604 = vmatprep.subr.bf16.mxu0 0
    %1605 = vmatpush1.bf16.msra.mxu0 0
    %1606 = vmatprep.subr.bf16.mxu0 0
    %1607 = vmatpush1.bf16.msra.mxu0 0
    %1608 = vmatprep.subr.bf16.mxu0 0
    %1609 = vmatpush1.bf16.msra.mxu0 0
    %1610 = vmatprep.mubr.bf16.mxu0 0
    %1611 = vmatmul.mubr.bf16.gmra.mrb[0].mxu0 %v1576
    %v1612 = vpop.f32.mrb[0].mxu0
    %v1613 = vadd.f32 0.0, %v1612
    %v1614 = vpop.f32.mrb[0].mxu0
    %v1615 = vpop.f32.mrb[0].mxu0
    %v1616 = vadd.f32 0.0, %v1615
    %v1617 = vpop.f32.mrb[0].mxu0
    %1618 = vdwg.mxu0
    %v1623 = vunpack.c.l.b16 %v339
    %v1624 = vunpack.c.l.b16 %v340
    %v1625 = vunpack.c.l.b16 %v341
    %v1626 = vunpack.c.l.b16 %v342
    %v1627 = vpack.c.b16 %v1624, %v1623
    %v1628 = vpack.c.b16 %v1626, %v1625
    %1631 = vmatprep.subr.bf16.mxu0 0
    %1632 = vmatpush1.bf16.msra.mxu0 %v1627
    %1633 = vmatprep.subr.bf16.mxu0 0
    %1634 = vmatpush1.bf16.msra.mxu0 %v1628
    %1635 = vmatprep.subr.bf16.mxu0 0
    %1636 = vmatpush1.bf16.msra.mxu0 0
    %1637 = vmatprep.subr.bf16.mxu0 0
    %1638 = vmatpush1.bf16.msra.mxu0 0
    %1639 = vmatprep.subr.bf16.mxu0 0
    %1640 = vmatpush1.bf16.msra.mxu0 0
    %1641 = vmatprep.subr.bf16.mxu0 0
    %1642 = vmatpush1.bf16.msra.mxu0 0
    %1643 = vmatprep.subr.bf16.mxu0 0
    %1644 = vmatpush1.bf16.msra.mxu0 0
    %1645 = vmatprep.subr.bf16.mxu0 0
    %1646 = vmatpush1.bf16.msra.mxu0 0
    %1647 = vmatprep.subr.bf16.mxu0 0
    %1648 = vmatpush1.bf16.msra.mxu0 0
    %1649 = vmatprep.subr.bf16.mxu0 0
    %1650 = vmatpush1.bf16.msra.mxu0 0
    %1651 = vmatprep.subr.bf16.mxu0 0
    %1652 = vmatpush1.bf16.msra.mxu0 0
    %1653 = vmatprep.subr.bf16.mxu0 0
    %1654 = vmatpush1.bf16.msra.mxu0 0
    %1655 = vmatprep.subr.bf16.mxu0 0
    %1656 = vmatpush1.bf16.msra.mxu0 0
    %1657 = vmatprep.subr.bf16.mxu0 0
    %1658 = vmatpush1.bf16.msra.mxu0 0
    %1659 = vmatprep.subr.bf16.mxu0 0
    %1660 = vmatpush1.bf16.msra.mxu0 0
    %1661 = vmatprep.subr.bf16.mxu0 0
    %1662 = vmatpush1.bf16.msra.mxu0 0
    %1663 = vmatprep.mubr.bf16.mxu0 0
    %1664 = vmatmul.mubr.bf16.gmra.mrb[0].mxu0 %v1576
    %v1665 = vpop.f32.mrb[0].mxu0
    %v1666 = vadd.f32 0.0, %v1665
    %v1667 = vpop.f32.mrb[0].mxu0
    %v1668 = vpop.f32.mrb[0].mxu0
    %v1669 = vadd.f32 0.0, %v1668
    %v1670 = vpop.f32.mrb[0].mxu0
    %1671 = vdwg.mxu0
    %v1672 = vxor.u32 %v1613, 2147483648
    %v1673 = vxor.u32 %v1616, 2147483648
    %v1674 = vmul.f32 %v1672, 1.442695
    %v1675 = vpow.pop %v1674
    %v1676 = vmul.f32 %v1673, 1.442695
    %v1677 = vpow.pop %v1676
    %v1678 = vadd.f32 %v1675, 1.0
    %v1679 = vadd.f32 %v1677, 1.0
    %v1680 = vrcp.pop %v1678
    %v1681 = vmul.f32 1.0, %v1680
    %v1682 = vrcp.pop %v1679
    %v1683 = vmul.f32 1.0, %v1682
    %v1684 = vmul.f32 %v1613, %v1681
    %v1685 = vmul.f32 %v1616, %v1683
    %v1686 = vmul.f32 %v1684, %v1666
    %v1687 = vmul.f32 %v1685, %v1669
    %v1688 = vpack.c.bf16 %v1687, %v1686
    %v1697 = vunpack.c.l.b16 %v343
    %v1698 = vunpack.c.l.b16 %v344
    %v1699 = vunpack.c.l.b16 %v345
    %v1700 = vunpack.c.l.b16 %v346
    %v1701 = vunpack.c.l.b16 %v347
    %v1702 = vunpack.c.l.b16 %v348
    %v1703 = vunpack.c.l.b16 %v349
    %v1704 = vunpack.c.l.b16 %v350
    %v1705 = vpack.c.b16 %v1698, %v1697
    %v1706 = vpack.c.b16 %v1700, %v1699
    %v1707 = vpack.c.b16 %v1702, %v1701
    %v1708 = vpack.c.b16 %v1704, %v1703
    %vm1713 = vcmask 523264
    %v1715 = vsel %vm1713, %v1688, 0
    %1717 = vmatprep.subr.bf16.mxu0 0
    %1718 = vmatpush1.bf16.msra.mxu0 %v1705
    %1719 = vmatprep.subr.bf16.mxu0 0
    %1720 = vmatpush1.bf16.msra.mxu0 %v1706
    %1721 = vmatprep.subr.bf16.mxu0 0
    %1722 = vmatpush1.bf16.msra.mxu0 %v1707
    %1723 = vmatprep.subr.bf16.mxu0 0
    %1724 = vmatpush1.bf16.msra.mxu0 %v1708
    %1725 = vmatprep.subr.bf16.mxu0 0
    %1726 = vmatpush1.bf16.msra.mxu0 0
    %1727 = vmatprep.subr.bf16.mxu0 0
    %1728 = vmatpush1.bf16.msra.mxu0 0
    %1729 = vmatprep.subr.bf16.mxu0 0
    %1730 = vmatpush1.bf16.msra.mxu0 0
    %1731 = vmatprep.subr.bf16.mxu0 0
    %1732 = vmatpush1.bf16.msra.mxu0 0
    %1733 = vmatprep.subr.bf16.mxu0 0
    %1734 = vmatpush1.bf16.msra.mxu0 0
    %1735 = vmatprep.subr.bf16.mxu0 0
    %1736 = vmatpush1.bf16.msra.mxu0 0
    %1737 = vmatprep.subr.bf16.mxu0 0
    %1738 = vmatpush1.bf16.msra.mxu0 0
    %1739 = vmatprep.subr.bf16.mxu0 0
    %1740 = vmatpush1.bf16.msra.mxu0 0
    %1741 = vmatprep.subr.bf16.mxu0 0
    %1742 = vmatpush1.bf16.msra.mxu0 0
    %1743 = vmatprep.subr.bf16.mxu0 0
    %1744 = vmatpush1.bf16.msra.mxu0 0
    %1745 = vmatprep.subr.bf16.mxu0 0
    %1746 = vmatpush1.bf16.msra.mxu0 0
    %1747 = vmatprep.subr.bf16.mxu0 0
    %1748 = vmatpush1.bf16.msra.mxu0 0
    %1749 = vmatprep.mubr.bf16.mxu0 0
    %1750 = vmatmul.mubr.bf16.gmra.mrb[0].mxu0 %v1715
    %v1751 = vpop.f32.mrb[0].mxu0
    %v1752 = vadd.f32 0.0, %v1751
    %v1753 = vpop.f32.mrb[0].mxu0
    %v1754 = vpop.f32.mrb[0].mxu0
    %v1755 = vadd.f32 0.0, %v1754
    %v1756 = vpop.f32.mrb[0].mxu0
    %1757 = vdwg.mxu0
    %v1758 = vadd.f32 %v1538, %v1752
    %v1759 = vadd.f32 %v1539, %v1755
    %s1760 = scalar_lea.vmem %s6, 4
    %v1761 = vld [vmem:[%s1760] sm:$0xf]
    %s1762 = scalar_lea.vmem %s7, 96
    %v1763 = vld [vmem:[%s1762] sm:$0xf]
    %v1764 = vld [vmem:[%s1762 + $0x4] sm:$0xf]
    %v1765 = vld [vmem:[%s1762 + $0x8] sm:$0xf]
    %v1766 = vld [vmem:[%s1762 + $0xc] sm:$0xf]
    %v1767 = vld [vmem:[%s1762 + $0x10] sm:$0xf]
    %v1768 = vld [vmem:[%s1762 + $0x14] sm:$0xf]
    %v1769 = vld [vmem:[%s1762 + $0x18] sm:$0xf]
    %v1770 = vld [vmem:[%s1762 + $0x1c] sm:$0xf]
    %v1771 = vld [vmem:[%s1762 + $0x20] sm:$0xf]
    %v1772 = vld [vmem:[%s1762 + $0x24] sm:$0xf]
    %v1773 = vld [vmem:[%s1762 + $0x28] sm:$0xf]
    %v1774 = vld [vmem:[%s1762 + $0x2c] sm:$0xf]
    %v1775 = vld [vmem:[%s1762 + $0x30] sm:$0xf]
    %v1776 = vld [vmem:[%s1762 + $0x34] sm:$0xf]
    %v1777 = vld [vmem:[%s1762 + $0x38] sm:$0xf]
    %v1778 = vld [vmem:[%s1762 + $0x3c] sm:$0xf]
    %v1779 = vld [vmem:[%s1762 + $0x40] sm:$0xf]
    %v1780 = vld [vmem:[%s1762 + $0x44] sm:$0xf]
    %v1781 = vld [vmem:[%s1762 + $0x48] sm:$0xf]
    %v1782 = vld [vmem:[%s1762 + $0x4c] sm:$0xf]
    %v1783 = vld [vmem:[%s1762 + $0x50] sm:$0xf]
    %v1784 = vld [vmem:[%s1762 + $0x54] sm:$0xf]
    %v1785 = vld [vmem:[%s1762 + $0x58] sm:$0xf]
    %v1786 = vld [vmem:[%s1762 + $0x5c] sm:$0xf]
    %s1787 = scalar_lea.vmem %s8, 32
    %v1788 = vld [vmem:[%s1787] sm:$0xf]
    %v1789 = vld [vmem:[%s1787 + $0x4] sm:$0xf]
    %v1790 = vld [vmem:[%s1787 + $0x8] sm:$0xf]
    %v1791 = vld [vmem:[%s1787 + $0xc] sm:$0xf]
    %v1792 = vld [vmem:[%s1787 + $0x10] sm:$0xf]
    %v1793 = vld [vmem:[%s1787 + $0x14] sm:$0xf]
    %v1794 = vld [vmem:[%s1787 + $0x18] sm:$0xf]
    %v1795 = vld [vmem:[%s1787 + $0x1c] sm:$0xf]
    %s1796 = scalar_lea.vmem %s9, 32
    %v1797 = vld [vmem:[%s1796] sm:$0xf]
    %v1798 = vld [vmem:[%s1796 + $0x4] sm:$0xf]
    %v1799 = vld [vmem:[%s1796 + $0x8] sm:$0xf]
    %v1800 = vld [vmem:[%s1796 + $0xc] sm:$0xf]
    %v1801 = vld [vmem:[%s1796 + $0x10] sm:$0xf]
    %v1802 = vld [vmem:[%s1796 + $0x14] sm:$0xf]
    %v1803 = vld [vmem:[%s1796 + $0x18] sm:$0xf]
    %v1804 = vld [vmem:[%s1796 + $0x1c] sm:$0xf]
    %v1805 = vmul.f32 %v1758, %v1758
    %v1806 = vmul.f32 %v1759, %v1759
    %v1807 = vsel %vm353, %v1805, 0.0
    %1808 = vadd.xlane.f32.xlu0 %v1807
    %v1809 = vpop.xlane.xlu0 %1808
    %v1810 = vsel %vm353, %v1806, 0.0
    %1811 = vadd.xlane.f32.xlu0 %v1810
    %v1812 = vpop.xlane.xlu0 %1811
    %v1813 = vmul.f32 %v1809, %v360
    %v1814 = vmul.f32 %v1812, %v360
    %v1815 = vadd.f32 %v1813, 1e-05
    %v1816 = vadd.f32 %v1814, 1e-05
    %v1817 = vrsqrt.pop %v1815
    %v1818 = vrsqrt.pop %v1816
    %v1819 = vmul.f32 %v1758, %v1817
    %v1820 = vmul.f32 %v1759, %v1818
    %v1821 = vlaneseq
    %v1822 = vshrl.u32 %v1821, 7
    %v1823 = vsub.s32 0, %v1822
    %v1824 = vrot.slane %v1761, %v1823
    %v1825 = vmul.f32 %v1819, %v1824
    %v1826 = vmul.f32 %v1820, %v1824
    %v1827 = vpack.c.bf16 %v1826, %v1825
    %v1832 = vunpack.c.l.b16 %v1763
    %v1833 = vunpack.c.l.b16 %v1764
    %v1834 = vunpack.c.l.b16 %v1765
    %v1835 = vunpack.c.l.b16 %v1766
    %v1836 = vpack.c.b16 %v1833, %v1832
    %v1837 = vpack.c.b16 %v1835, %v1834
    %v1841 = vsel %vm353, %v1827, 0
    %1843 = vmatprep.subr.bf16.mxu0 0
    %1844 = vmatpush1.bf16.msra.mxu0 %v1836
    %1845 = vmatprep.subr.bf16.mxu0 0
    %1846 = vmatpush1.bf16.msra.mxu0 %v1837
    %1847 = vmatprep.subr.bf16.mxu0 0
    %1848 = vmatpush1.bf16.msra.mxu0 0
    %1849 = vmatprep.subr.bf16.mxu0 0
    %1850 = vmatpush1.bf16.msra.mxu0 0
    %1851 = vmatprep.subr.bf16.mxu0 0
    %1852 = vmatpush1.bf16.msra.mxu0 0
    %1853 = vmatprep.subr.bf16.mxu0 0
    %1854 = vmatpush1.bf16.msra.mxu0 0
    %1855 = vmatprep.subr.bf16.mxu0 0
    %1856 = vmatpush1.bf16.msra.mxu0 0
    %1857 = vmatprep.subr.bf16.mxu0 0
    %1858 = vmatpush1.bf16.msra.mxu0 0
    %1859 = vmatprep.subr.bf16.mxu0 0
    %1860 = vmatpush1.bf16.msra.mxu0 0
    %1861 = vmatprep.subr.bf16.mxu0 0
    %1862 = vmatpush1.bf16.msra.mxu0 0
    %1863 = vmatprep.subr.bf16.mxu0 0
    %1864 = vmatpush1.bf16.msra.mxu0 0
    %1865 = vmatprep.subr.bf16.mxu0 0
    %1866 = vmatpush1.bf16.msra.mxu0 0
    %1867 = vmatprep.subr.bf16.mxu0 0
    %1868 = vmatpush1.bf16.msra.mxu0 0
    %1869 = vmatprep.subr.bf16.mxu0 0
    %1870 = vmatpush1.bf16.msra.mxu0 0
    %1871 = vmatprep.subr.bf16.mxu0 0
    %1872 = vmatpush1.bf16.msra.mxu0 0
    %1873 = vmatprep.subr.bf16.mxu0 0
    %1874 = vmatpush1.bf16.msra.mxu0 0
    %1875 = vmatprep.mubr.bf16.mxu0 0
    %1876 = vmatmul.mubr.bf16.gmra.mrb[0].mxu0 %v1841
    %v1877 = vpop.f32.mrb[0].mxu0
    %v1878 = vadd.f32 0.0, %v1877
    %v1879 = vpop.f32.mrb[0].mxu0
    %v1880 = vpop.f32.mrb[0].mxu0
    %v1881 = vadd.f32 0.0, %v1880
    %v1882 = vpop.f32.mrb[0].mxu0
    %1883 = vdwg.mxu0
    %v1884 = vmul.f32 %v1878, %v304
    %v1885 = vmul.f32 %v1881, %v305
    %v1890 = vunpack.c.l.b16 %v1767
    %v1891 = vunpack.c.l.b16 %v1768
    %v1892 = vunpack.c.l.b16 %v1769
    %v1893 = vunpack.c.l.b16 %v1770
    %v1894 = vpack.c.b16 %v1891, %v1890
    %v1895 = vpack.c.b16 %v1893, %v1892
    %1898 = vmatprep.subr.bf16.mxu0 0
    %1899 = vmatpush1.bf16.msra.mxu0 %v1894
    %1900 = vmatprep.subr.bf16.mxu0 0
    %1901 = vmatpush1.bf16.msra.mxu0 %v1895
    %1902 = vmatprep.subr.bf16.mxu0 0
    %1903 = vmatpush1.bf16.msra.mxu0 0
    %1904 = vmatprep.subr.bf16.mxu0 0
    %1905 = vmatpush1.bf16.msra.mxu0 0
    %1906 = vmatprep.subr.bf16.mxu0 0
    %1907 = vmatpush1.bf16.msra.mxu0 0
    %1908 = vmatprep.subr.bf16.mxu0 0
    %1909 = vmatpush1.bf16.msra.mxu0 0
    %1910 = vmatprep.subr.bf16.mxu0 0
    %1911 = vmatpush1.bf16.msra.mxu0 0
    %1912 = vmatprep.subr.bf16.mxu0 0
    %1913 = vmatpush1.bf16.msra.mxu0 0
    %1914 = vmatprep.subr.bf16.mxu0 0
    %1915 = vmatpush1.bf16.msra.mxu0 0
    %1916 = vmatprep.subr.bf16.mxu0 0
    %1917 = vmatpush1.bf16.msra.mxu0 0
    %1918 = vmatprep.subr.bf16.mxu0 0
    %1919 = vmatpush1.bf16.msra.mxu0 0
    %1920 = vmatprep.subr.bf16.mxu0 0
    %1921 = vmatpush1.bf16.msra.mxu0 0
    %1922 = vmatprep.subr.bf16.mxu0 0
    %1923 = vmatpush1.bf16.msra.mxu0 0
    %1924 = vmatprep.subr.bf16.mxu0 0
    %1925 = vmatpush1.bf16.msra.mxu0 0
    %1926 = vmatprep.subr.bf16.mxu0 0
    %1927 = vmatpush1.bf16.msra.mxu0 0
    %1928 = vmatprep.subr.bf16.mxu0 0
    %1929 = vmatpush1.bf16.msra.mxu0 0
    %1930 = vmatprep.mubr.bf16.mxu0 0
    %1931 = vmatmul.mubr.bf16.gmra.mrb[0].mxu0 %v1841
    %v1932 = vpop.f32.mrb[0].mxu0
    %v1933 = vadd.f32 0.0, %v1932
    %v1934 = vpop.f32.mrb[0].mxu0
    %v1935 = vpop.f32.mrb[0].mxu0
    %v1936 = vadd.f32 0.0, %v1935
    %v1937 = vpop.f32.mrb[0].mxu0
    %1938 = vdwg.mxu0
    %v1939 = vmul.f32 %v1933, %v306
    %v1940 = vmul.f32 %v1936, %v307
    %v1941 = vadd.f32 %v1884, %v1939
    %v1942 = vadd.f32 %v1885, %v1940
    %v1947 = vunpack.c.l.b16 %v1771
    %v1948 = vunpack.c.l.b16 %v1772
    %v1949 = vunpack.c.l.b16 %v1773
    %v1950 = vunpack.c.l.b16 %v1774
    %v1951 = vpack.c.b16 %v1948, %v1947
    %v1952 = vpack.c.b16 %v1950, %v1949
    %1955 = vmatprep.subr.bf16.mxu0 0
    %1956 = vmatpush1.bf16.msra.mxu0 %v1951
    %1957 = vmatprep.subr.bf16.mxu0 0
    %1958 = vmatpush1.bf16.msra.mxu0 %v1952
    %1959 = vmatprep.subr.bf16.mxu0 0
    %1960 = vmatpush1.bf16.msra.mxu0 0
    %1961 = vmatprep.subr.bf16.mxu0 0
    %1962 = vmatpush1.bf16.msra.mxu0 0
    %1963 = vmatprep.subr.bf16.mxu0 0
    %1964 = vmatpush1.bf16.msra.mxu0 0
    %1965 = vmatprep.subr.bf16.mxu0 0
    %1966 = vmatpush1.bf16.msra.mxu0 0
    %1967 = vmatprep.subr.bf16.mxu0 0
    %1968 = vmatpush1.bf16.msra.mxu0 0
    %1969 = vmatprep.subr.bf16.mxu0 0
    %1970 = vmatpush1.bf16.msra.mxu0 0
    %1971 = vmatprep.subr.bf16.mxu0 0
    %1972 = vmatpush1.bf16.msra.mxu0 0
    %1973 = vmatprep.subr.bf16.mxu0 0
    %1974 = vmatpush1.bf16.msra.mxu0 0
    %1975 = vmatprep.subr.bf16.mxu0 0
    %1976 = vmatpush1.bf16.msra.mxu0 0
    %1977 = vmatprep.subr.bf16.mxu0 0
    %1978 = vmatpush1.bf16.msra.mxu0 0
    %1979 = vmatprep.subr.bf16.mxu0 0
    %1980 = vmatpush1.bf16.msra.mxu0 0
    %1981 = vmatprep.subr.bf16.mxu0 0
    %1982 = vmatpush1.bf16.msra.mxu0 0
    %1983 = vmatprep.subr.bf16.mxu0 0
    %1984 = vmatpush1.bf16.msra.mxu0 0
    %1985 = vmatprep.subr.bf16.mxu0 0
    %1986 = vmatpush1.bf16.msra.mxu0 0
    %1987 = vmatprep.mubr.bf16.mxu0 0
    %1988 = vmatmul.mubr.bf16.gmra.mrb[0].mxu0 %v1841
    %v1989 = vpop.f32.mrb[0].mxu0
    %v1990 = vadd.f32 0.0, %v1989
    %v1991 = vpop.f32.mrb[0].mxu0
    %v1992 = vpop.f32.mrb[0].mxu0
    %v1993 = vadd.f32 0.0, %v1992
    %v1994 = vpop.f32.mrb[0].mxu0
    %1995 = vdwg.mxu0
    %v1996 = vmul.f32 %v1990, %v304
    %v1997 = vmul.f32 %v1993, %v305
    %v2002 = vunpack.c.l.b16 %v1775
    %v2003 = vunpack.c.l.b16 %v1776
    %v2004 = vunpack.c.l.b16 %v1777
    %v2005 = vunpack.c.l.b16 %v1778
    %v2006 = vpack.c.b16 %v2003, %v2002
    %v2007 = vpack.c.b16 %v2005, %v2004
    %2010 = vmatprep.subr.bf16.mxu0 0
    %2011 = vmatpush1.bf16.msra.mxu0 %v2006
    %2012 = vmatprep.subr.bf16.mxu0 0
    %2013 = vmatpush1.bf16.msra.mxu0 %v2007
    %2014 = vmatprep.subr.bf16.mxu0 0
    %2015 = vmatpush1.bf16.msra.mxu0 0
    %2016 = vmatprep.subr.bf16.mxu0 0
    %2017 = vmatpush1.bf16.msra.mxu0 0
    %2018 = vmatprep.subr.bf16.mxu0 0
    %2019 = vmatpush1.bf16.msra.mxu0 0
    %2020 = vmatprep.subr.bf16.mxu0 0
    %2021 = vmatpush1.bf16.msra.mxu0 0
    %2022 = vmatprep.subr.bf16.mxu0 0
    %2023 = vmatpush1.bf16.msra.mxu0 0
    %2024 = vmatprep.subr.bf16.mxu0 0
    %2025 = vmatpush1.bf16.msra.mxu0 0
    %2026 = vmatprep.subr.bf16.mxu0 0
    %2027 = vmatpush1.bf16.msra.mxu0 0
    %2028 = vmatprep.subr.bf16.mxu0 0
    %2029 = vmatpush1.bf16.msra.mxu0 0
    %2030 = vmatprep.subr.bf16.mxu0 0
    %2031 = vmatpush1.bf16.msra.mxu0 0
    %2032 = vmatprep.subr.bf16.mxu0 0
    %2033 = vmatpush1.bf16.msra.mxu0 0
    %2034 = vmatprep.subr.bf16.mxu0 0
    %2035 = vmatpush1.bf16.msra.mxu0 0
    %2036 = vmatprep.subr.bf16.mxu0 0
    %2037 = vmatpush1.bf16.msra.mxu0 0
    %2038 = vmatprep.subr.bf16.mxu0 0
    %2039 = vmatpush1.bf16.msra.mxu0 0
    %2040 = vmatprep.subr.bf16.mxu0 0
    %2041 = vmatpush1.bf16.msra.mxu0 0
    %2042 = vmatprep.mubr.bf16.mxu0 0
    %2043 = vmatmul.mubr.bf16.gmra.mrb[0].mxu0 %v1841
    %v2044 = vpop.f32.mrb[0].mxu0
    %v2045 = vadd.f32 0.0, %v2044
    %v2046 = vpop.f32.mrb[0].mxu0
    %v2047 = vpop.f32.mrb[0].mxu0
    %v2048 = vadd.f32 0.0, %v2047
    %v2049 = vpop.f32.mrb[0].mxu0
    %2050 = vdwg.mxu0
    %v2051 = vmul.f32 %v2045, %v306
    %v2052 = vmul.f32 %v2048, %v307
    %v2053 = vadd.f32 %v1996, %v2051
    %v2054 = vadd.f32 %v1997, %v2052
    %v2059 = vunpack.c.l.b16 %v1779
    %v2060 = vunpack.c.l.b16 %v1780
    %v2061 = vunpack.c.l.b16 %v1781
    %v2062 = vunpack.c.l.b16 %v1782
    %v2063 = vpack.c.b16 %v2060, %v2059
    %v2064 = vpack.c.b16 %v2062, %v2061
    %2067 = vmatprep.subr.bf16.mxu0 0
    %2068 = vmatpush1.bf16.msra.mxu0 %v2063
    %2069 = vmatprep.subr.bf16.mxu0 0
    %2070 = vmatpush1.bf16.msra.mxu0 %v2064
    %2071 = vmatprep.subr.bf16.mxu0 0
    %2072 = vmatpush1.bf16.msra.mxu0 0
    %2073 = vmatprep.subr.bf16.mxu0 0
    %2074 = vmatpush1.bf16.msra.mxu0 0
    %2075 = vmatprep.subr.bf16.mxu0 0
    %2076 = vmatpush1.bf16.msra.mxu0 0
    %2077 = vmatprep.subr.bf16.mxu0 0
    %2078 = vmatpush1.bf16.msra.mxu0 0
    %2079 = vmatprep.subr.bf16.mxu0 0
    %2080 = vmatpush1.bf16.msra.mxu0 0
    %2081 = vmatprep.subr.bf16.mxu0 0
    %2082 = vmatpush1.bf16.msra.mxu0 0
    %2083 = vmatprep.subr.bf16.mxu0 0
    %2084 = vmatpush1.bf16.msra.mxu0 0
    %2085 = vmatprep.subr.bf16.mxu0 0
    %2086 = vmatpush1.bf16.msra.mxu0 0
    %2087 = vmatprep.subr.bf16.mxu0 0
    %2088 = vmatpush1.bf16.msra.mxu0 0
    %2089 = vmatprep.subr.bf16.mxu0 0
    %2090 = vmatpush1.bf16.msra.mxu0 0
    %2091 = vmatprep.subr.bf16.mxu0 0
    %2092 = vmatpush1.bf16.msra.mxu0 0
    %2093 = vmatprep.subr.bf16.mxu0 0
    %2094 = vmatpush1.bf16.msra.mxu0 0
    %2095 = vmatprep.subr.bf16.mxu0 0
    %2096 = vmatpush1.bf16.msra.mxu0 0
    %2097 = vmatprep.subr.bf16.mxu0 0
    %2098 = vmatpush1.bf16.msra.mxu0 0
    %2099 = vmatprep.mubr.bf16.mxu0 0
    %2100 = vmatmul.mubr.bf16.gmra.mrb[0].mxu0 %v1841
    %v2101 = vpop.f32.mrb[0].mxu0
    %v2102 = vadd.f32 0.0, %v2101
    %v2103 = vpop.f32.mrb[0].mxu0
    %v2104 = vpop.f32.mrb[0].mxu0
    %v2105 = vadd.f32 0.0, %v2104
    %v2106 = vpop.f32.mrb[0].mxu0
    %2107 = vdwg.mxu0
    %2110 = vrot.lane.b32.xlu0 %v1941, 120
    %v2111 = vpop.permute.xlu0 %2110
    %2112 = vrot.lane.b32.xlu0 %v1942, 120
    %v2113 = vpop.permute.xlu0 %2112
    %2114 = vrot.lane.b32.xlu0 %v1941, 112
    %v2115 = vpop.permute.xlu0 %2114
    %2116 = vrot.lane.b32.xlu0 %v1942, 112
    %v2117 = vpop.permute.xlu0 %2116
    %2118 = vrot.lane.b32.xlu0 %v1941, 104
    %v2119 = vpop.permute.xlu0 %2118
    %2120 = vrot.lane.b32.xlu0 %v1942, 104
    %v2121 = vpop.permute.xlu0 %2120
    %2124 = vrot.lane.b32.xlu0 %v2053, 120
    %v2125 = vpop.permute.xlu0 %2124
    %2126 = vrot.lane.b32.xlu0 %v2054, 120
    %v2127 = vpop.permute.xlu0 %2126
    %2128 = vrot.lane.b32.xlu0 %v2053, 112
    %v2129 = vpop.permute.xlu0 %2128
    %2130 = vrot.lane.b32.xlu0 %v2054, 112
    %v2131 = vpop.permute.xlu0 %2130
    %2132 = vrot.lane.b32.xlu0 %v2053, 104
    %v2133 = vpop.permute.xlu0 %2132
    %2134 = vrot.lane.b32.xlu0 %v2054, 104
    %v2135 = vpop.permute.xlu0 %2134
    %2138 = vrot.lane.b32.xlu0 %v2102, 120
    %v2139 = vpop.permute.xlu0 %2138
    %2140 = vrot.lane.b32.xlu0 %v2105, 120
    %v2141 = vpop.permute.xlu0 %2140
    %2144 = vrot.lane.b32.xlu0 %v2102, 112
    %v2145 = vpop.permute.xlu0 %2144
    %2146 = vrot.lane.b32.xlu0 %v2105, 112
    %v2147 = vpop.permute.xlu0 %2146
    %2150 = vrot.lane.b32.xlu0 %v2102, 104
    %v2151 = vpop.permute.xlu0 %2150
    %2152 = vrot.lane.b32.xlu0 %v2105, 104
    %v2153 = vpop.permute.xlu0 %2152
    %v2156 = vsel %vm704, %v1941, 0
    %v2158 = vsel %vm704, %v1942, 0
    %v2160 = vsel %vm704, %v2053, 0
    %v2162 = vsel %vm704, %v2054, 0
    %2164 = vmatprep.subr.mxu0 0.0
    %2165 = vmatpush1.xpose.msra.mxu0 %v2160
    %2166 = vmatprep.subr.mxu0 0.0
    %2167 = vmatpush1.xpose.msra.mxu0 %v2162
    %2168 = vmatprep.subr.mxu0 0.0
    %2169 = vmatpush1.xpose.msra.mxu0 0.0
    %2170 = vmatprep.subr.mxu0 0.0
    %2171 = vmatpush1.xpose.msra.mxu0 0.0
    %2172 = vmatprep.subr.mxu0 0.0
    %2173 = vmatpush1.xpose.msra.mxu0 0.0
    %2174 = vmatprep.subr.mxu0 0.0
    %2175 = vmatpush1.xpose.msra.mxu0 0.0
    %2176 = vmatprep.subr.mxu0 0.0
    %2177 = vmatpush1.xpose.msra.mxu0 0.0
    %2178 = vmatprep.subr.mxu0 0.0
    %2179 = vmatpush1.xpose.msra.mxu0 0.0
    %2180 = vmatprep.subr.mxu0 0.0
    %2181 = vmatpush1.xpose.msra.mxu0 0.0
    %2182 = vmatprep.subr.mxu0 0.0
    %2183 = vmatpush1.xpose.msra.mxu0 0.0
    %2184 = vmatprep.subr.mxu0 0.0
    %2185 = vmatpush1.xpose.msra.mxu0 0.0
    %2186 = vmatprep.subr.mxu0 0.0
    %2187 = vmatpush1.xpose.msra.mxu0 0.0
    %2188 = vmatprep.subr.mxu0 0.0
    %2189 = vmatpush1.xpose.msra.mxu0 0.0
    %2190 = vmatprep.subr.mxu0 0.0
    %2191 = vmatpush1.xpose.msra.mxu0 0.0
    %2192 = vmatprep.subr.mxu0 0.0
    %2193 = vmatpush1.xpose.msra.mxu0 0.0
    %2194 = vmatprep.subr.mxu0 0.0
    %2195 = vmatpush1.xpose.msra.mxu0 0.0
    %2196 = vmatprep.subr.mxu0 0.0
    %2197 = vmatpush1.xpose.msra.mxu0 0.0
    %2198 = vmatprep.subr.mxu0 0.0
    %2199 = vmatpush1.xpose.msra.mxu0 0.0
    %2200 = vmatprep.subr.mxu0 0.0
    %2201 = vmatpush1.xpose.msra.mxu0 0.0
    %2202 = vmatprep.subr.mxu0 0.0
    %2203 = vmatpush1.xpose.msra.mxu0 0.0
    %2204 = vmatprep.subr.mxu0 0.0
    %2205 = vmatpush1.xpose.msra.mxu0 0.0
    %2206 = vmatprep.subr.mxu0 0.0
    %2207 = vmatpush1.xpose.msra.mxu0 0.0
    %2208 = vmatprep.subr.mxu0 0.0
    %2209 = vmatpush1.xpose.msra.mxu0 0.0
    %2210 = vmatprep.subr.mxu0 0.0
    %2211 = vmatpush1.xpose.msra.mxu0 0.0
    %2212 = vmatprep.subr.mxu0 0.0
    %2213 = vmatpush1.xpose.msra.mxu0 0.0
    %2214 = vmatprep.subr.mxu0 0.0
    %2215 = vmatpush1.xpose.msra.mxu0 0.0
    %2216 = vmatprep.subr.mxu0 0.0
    %2217 = vmatpush1.xpose.msra.mxu0 0.0
    %2218 = vmatprep.subr.mxu0 0.0
    %2219 = vmatpush1.xpose.msra.mxu0 0.0
    %2220 = vmatprep.subr.mxu0 0.0
    %2221 = vmatpush1.xpose.msra.mxu0 0.0
    %2222 = vmatprep.subr.mxu0 0.0
    %2223 = vmatpush1.xpose.msra.mxu0 0.0
    %2224 = vmatprep.subr.mxu0 0.0
    %2225 = vmatpush1.xpose.msra.mxu0 0.0
    %2226 = vmatprep.subr.mxu0 0.0
    %2227 = vmatpush1.xpose.msra.mxu0 0.0
    %2228 = vmatprep.mubr.f32.mxu0 0.0
    %2229 = vmatmul.mubr.f32.gmra.mrb[0].mxu0 %v2156
    %v2230 = vpop.f32.mrb[0].mxu0
    %v2231 = vadd.f32 %v308, %v2230
    %v2232 = vpop.f32.mrb[0].mxu0
    %2233 = vmatprep.mubr.f32.mxu0 0.0
    %2234 = vmatmul.mubr.f32.gmra.mrb[0].mxu0 %v2158
    %v2235 = vpop.f32.mrb[0].mxu0
    %v2236 = vadd.f32 %v309, %v2235
    %v2237 = vpop.f32.mrb[0].mxu0
    %2238 = vdwg.mxu0
    %v2239 = vsel %vm704, %v2111, 0
    %v2241 = vsel %vm704, %v2113, 0
    %v2243 = vsel %vm704, %v2125, 0
    %v2245 = vsel %vm704, %v2127, 0
    %2247 = vmatprep.subr.mxu0 0.0
    %2248 = vmatpush1.xpose.msra.mxu0 %v2243
    %2249 = vmatprep.subr.mxu0 0.0
    %2250 = vmatpush1.xpose.msra.mxu0 %v2245
    %2251 = vmatprep.subr.mxu0 0.0
    %2252 = vmatpush1.xpose.msra.mxu0 0.0
    %2253 = vmatprep.subr.mxu0 0.0
    %2254 = vmatpush1.xpose.msra.mxu0 0.0
    %2255 = vmatprep.subr.mxu0 0.0
    %2256 = vmatpush1.xpose.msra.mxu0 0.0
    %2257 = vmatprep.subr.mxu0 0.0
    %2258 = vmatpush1.xpose.msra.mxu0 0.0
    %2259 = vmatprep.subr.mxu0 0.0
    %2260 = vmatpush1.xpose.msra.mxu0 0.0
    %2261 = vmatprep.subr.mxu0 0.0
    %2262 = vmatpush1.xpose.msra.mxu0 0.0
    %2263 = vmatprep.subr.mxu0 0.0
    %2264 = vmatpush1.xpose.msra.mxu0 0.0
    %2265 = vmatprep.subr.mxu0 0.0
    %2266 = vmatpush1.xpose.msra.mxu0 0.0
    %2267 = vmatprep.subr.mxu0 0.0
    %2268 = vmatpush1.xpose.msra.mxu0 0.0
    %2269 = vmatprep.subr.mxu0 0.0
    %2270 = vmatpush1.xpose.msra.mxu0 0.0
    %2271 = vmatprep.subr.mxu0 0.0
    %2272 = vmatpush1.xpose.msra.mxu0 0.0
    %2273 = vmatprep.subr.mxu0 0.0
    %2274 = vmatpush1.xpose.msra.mxu0 0.0
    %2275 = vmatprep.subr.mxu0 0.0
    %2276 = vmatpush1.xpose.msra.mxu0 0.0
    %2277 = vmatprep.subr.mxu0 0.0
    %2278 = vmatpush1.xpose.msra.mxu0 0.0
    %2279 = vmatprep.subr.mxu0 0.0
    %2280 = vmatpush1.xpose.msra.mxu0 0.0
    %2281 = vmatprep.subr.mxu0 0.0
    %2282 = vmatpush1.xpose.msra.mxu0 0.0
    %2283 = vmatprep.subr.mxu0 0.0
    %2284 = vmatpush1.xpose.msra.mxu0 0.0
    %2285 = vmatprep.subr.mxu0 0.0
    %2286 = vmatpush1.xpose.msra.mxu0 0.0
    %2287 = vmatprep.subr.mxu0 0.0
    %2288 = vmatpush1.xpose.msra.mxu0 0.0
    %2289 = vmatprep.subr.mxu0 0.0
    %2290 = vmatpush1.xpose.msra.mxu0 0.0
    %2291 = vmatprep.subr.mxu0 0.0
    %2292 = vmatpush1.xpose.msra.mxu0 0.0
    %2293 = vmatprep.subr.mxu0 0.0
    %2294 = vmatpush1.xpose.msra.mxu0 0.0
    %2295 = vmatprep.subr.mxu0 0.0
    %2296 = vmatpush1.xpose.msra.mxu0 0.0
    %2297 = vmatprep.subr.mxu0 0.0
    %2298 = vmatpush1.xpose.msra.mxu0 0.0
    %2299 = vmatprep.subr.mxu0 0.0
    %2300 = vmatpush1.xpose.msra.mxu0 0.0
    %2301 = vmatprep.subr.mxu0 0.0
    %2302 = vmatpush1.xpose.msra.mxu0 0.0
    %2303 = vmatprep.subr.mxu0 0.0
    %2304 = vmatpush1.xpose.msra.mxu0 0.0
    %2305 = vmatprep.subr.mxu0 0.0
    %2306 = vmatpush1.xpose.msra.mxu0 0.0
    %2307 = vmatprep.subr.mxu0 0.0
    %2308 = vmatpush1.xpose.msra.mxu0 0.0
    %2309 = vmatprep.subr.mxu0 0.0
    %2310 = vmatpush1.xpose.msra.mxu0 0.0
    %2311 = vmatprep.mubr.f32.mxu0 0.0
    %2312 = vmatmul.mubr.f32.gmra.mrb[0].mxu0 %v2239
    %v2313 = vpop.f32.mrb[0].mxu0
    %v2314 = vadd.f32 %v308, %v2313
    %v2315 = vpop.f32.mrb[0].mxu0
    %2316 = vmatprep.mubr.f32.mxu0 0.0
    %2317 = vmatmul.mubr.f32.gmra.mrb[0].mxu0 %v2241
    %v2318 = vpop.f32.mrb[0].mxu0
    %v2319 = vadd.f32 %v309, %v2318
    %v2320 = vpop.f32.mrb[0].mxu0
    %2321 = vdwg.mxu0
    %v2322 = vsel %vm704, %v2115, 0
    %v2324 = vsel %vm704, %v2117, 0
    %v2326 = vsel %vm704, %v2129, 0
    %v2328 = vsel %vm704, %v2131, 0
    %2330 = vmatprep.subr.mxu0 0.0
    %2331 = vmatpush1.xpose.msra.mxu0 %v2326
    %2332 = vmatprep.subr.mxu0 0.0
    %2333 = vmatpush1.xpose.msra.mxu0 %v2328
    %2334 = vmatprep.subr.mxu0 0.0
    %2335 = vmatpush1.xpose.msra.mxu0 0.0
    %2336 = vmatprep.subr.mxu0 0.0
    %2337 = vmatpush1.xpose.msra.mxu0 0.0
    %2338 = vmatprep.subr.mxu0 0.0
    %2339 = vmatpush1.xpose.msra.mxu0 0.0
    %2340 = vmatprep.subr.mxu0 0.0
    %2341 = vmatpush1.xpose.msra.mxu0 0.0
    %2342 = vmatprep.subr.mxu0 0.0
    %2343 = vmatpush1.xpose.msra.mxu0 0.0
    %2344 = vmatprep.subr.mxu0 0.0
    %2345 = vmatpush1.xpose.msra.mxu0 0.0
    %2346 = vmatprep.subr.mxu0 0.0
    %2347 = vmatpush1.xpose.msra.mxu0 0.0
    %2348 = vmatprep.subr.mxu0 0.0
    %2349 = vmatpush1.xpose.msra.mxu0 0.0
    %2350 = vmatprep.subr.mxu0 0.0
    %2351 = vmatpush1.xpose.msra.mxu0 0.0
    %2352 = vmatprep.subr.mxu0 0.0
    %2353 = vmatpush1.xpose.msra.mxu0 0.0
    %2354 = vmatprep.subr.mxu0 0.0
    %2355 = vmatpush1.xpose.msra.mxu0 0.0
    %2356 = vmatprep.subr.mxu0 0.0
    %2357 = vmatpush1.xpose.msra.mxu0 0.0
    %2358 = vmatprep.subr.mxu0 0.0
    %2359 = vmatpush1.xpose.msra.mxu0 0.0
    %2360 = vmatprep.subr.mxu0 0.0
    %2361 = vmatpush1.xpose.msra.mxu0 0.0
    %2362 = vmatprep.subr.mxu0 0.0
    %2363 = vmatpush1.xpose.msra.mxu0 0.0
    %2364 = vmatprep.subr.mxu0 0.0
    %2365 = vmatpush1.xpose.msra.mxu0 0.0
    %2366 = vmatprep.subr.mxu0 0.0
    %2367 = vmatpush1.xpose.msra.mxu0 0.0
    %2368 = vmatprep.subr.mxu0 0.0
    %2369 = vmatpush1.xpose.msra.mxu0 0.0
    %2370 = vmatprep.subr.mxu0 0.0
    %2371 = vmatpush1.xpose.msra.mxu0 0.0
    %2372 = vmatprep.subr.mxu0 0.0
    %2373 = vmatpush1.xpose.msra.mxu0 0.0
    %2374 = vmatprep.subr.mxu0 0.0
    %2375 = vmatpush1.xpose.msra.mxu0 0.0
    %2376 = vmatprep.subr.mxu0 0.0
    %2377 = vmatpush1.xpose.msra.mxu0 0.0
    %2378 = vmatprep.subr.mxu0 0.0
    %2379 = vmatpush1.xpose.msra.mxu0 0.0
    %2380 = vmatprep.subr.mxu0 0.0
    %2381 = vmatpush1.xpose.msra.mxu0 0.0
    %2382 = vmatprep.subr.mxu0 0.0
    %2383 = vmatpush1.xpose.msra.mxu0 0.0
    %2384 = vmatprep.subr.mxu0 0.0
    %2385 = vmatpush1.xpose.msra.mxu0 0.0
    %2386 = vmatprep.subr.mxu0 0.0
    %2387 = vmatpush1.xpose.msra.mxu0 0.0
    %2388 = vmatprep.subr.mxu0 0.0
    %2389 = vmatpush1.xpose.msra.mxu0 0.0
    %2390 = vmatprep.subr.mxu0 0.0
    %2391 = vmatpush1.xpose.msra.mxu0 0.0
    %2392 = vmatprep.subr.mxu0 0.0
    %2393 = vmatpush1.xpose.msra.mxu0 0.0
    %2394 = vmatprep.mubr.f32.mxu0 0.0
    %2395 = vmatmul.mubr.f32.gmra.mrb[0].mxu0 %v2322
    %v2396 = vpop.f32.mrb[0].mxu0
    %v2397 = vadd.f32 %v308, %v2396
    %v2398 = vpop.f32.mrb[0].mxu0
    %2399 = vmatprep.mubr.f32.mxu0 0.0
    %2400 = vmatmul.mubr.f32.gmra.mrb[0].mxu0 %v2324
    %v2401 = vpop.f32.mrb[0].mxu0
    %v2402 = vadd.f32 %v309, %v2401
    %v2403 = vpop.f32.mrb[0].mxu0
    %2404 = vdwg.mxu0
    %v2405 = vsel %vm704, %v2119, 0
    %v2407 = vsel %vm704, %v2121, 0
    %v2409 = vsel %vm704, %v2133, 0
    %v2411 = vsel %vm704, %v2135, 0
    %2413 = vmatprep.subr.mxu0 0.0
    %2414 = vmatpush1.xpose.msra.mxu0 %v2409
    %2415 = vmatprep.subr.mxu0 0.0
    %2416 = vmatpush1.xpose.msra.mxu0 %v2411
    %2417 = vmatprep.subr.mxu0 0.0
    %2418 = vmatpush1.xpose.msra.mxu0 0.0
    %2419 = vmatprep.subr.mxu0 0.0
    %2420 = vmatpush1.xpose.msra.mxu0 0.0
    %2421 = vmatprep.subr.mxu0 0.0
    %2422 = vmatpush1.xpose.msra.mxu0 0.0
    %2423 = vmatprep.subr.mxu0 0.0
    %2424 = vmatpush1.xpose.msra.mxu0 0.0
    %2425 = vmatprep.subr.mxu0 0.0
    %2426 = vmatpush1.xpose.msra.mxu0 0.0
    %2427 = vmatprep.subr.mxu0 0.0
    %2428 = vmatpush1.xpose.msra.mxu0 0.0
    %2429 = vmatprep.subr.mxu0 0.0
    %2430 = vmatpush1.xpose.msra.mxu0 0.0
    %2431 = vmatprep.subr.mxu0 0.0
    %2432 = vmatpush1.xpose.msra.mxu0 0.0
    %2433 = vmatprep.subr.mxu0 0.0
    %2434 = vmatpush1.xpose.msra.mxu0 0.0
    %2435 = vmatprep.subr.mxu0 0.0
    %2436 = vmatpush1.xpose.msra.mxu0 0.0
    %2437 = vmatprep.subr.mxu0 0.0
    %2438 = vmatpush1.xpose.msra.mxu0 0.0
    %2439 = vmatprep.subr.mxu0 0.0
    %2440 = vmatpush1.xpose.msra.mxu0 0.0
    %2441 = vmatprep.subr.mxu0 0.0
    %2442 = vmatpush1.xpose.msra.mxu0 0.0
    %2443 = vmatprep.subr.mxu0 0.0
    %2444 = vmatpush1.xpose.msra.mxu0 0.0
    %2445 = vmatprep.subr.mxu0 0.0
    %2446 = vmatpush1.xpose.msra.mxu0 0.0
    %2447 = vmatprep.subr.mxu0 0.0
    %2448 = vmatpush1.xpose.msra.mxu0 0.0
    %2449 = vmatprep.subr.mxu0 0.0
    %2450 = vmatpush1.xpose.msra.mxu0 0.0
    %2451 = vmatprep.subr.mxu0 0.0
    %2452 = vmatpush1.xpose.msra.mxu0 0.0
    %2453 = vmatprep.subr.mxu0 0.0
    %2454 = vmatpush1.xpose.msra.mxu0 0.0
    %2455 = vmatprep.subr.mxu0 0.0
    %2456 = vmatpush1.xpose.msra.mxu0 0.0
    %2457 = vmatprep.subr.mxu0 0.0
    %2458 = vmatpush1.xpose.msra.mxu0 0.0
    %2459 = vmatprep.subr.mxu0 0.0
    %2460 = vmatpush1.xpose.msra.mxu0 0.0
    %2461 = vmatprep.subr.mxu0 0.0
    %2462 = vmatpush1.xpose.msra.mxu0 0.0
    %2463 = vmatprep.subr.mxu0 0.0
    %2464 = vmatpush1.xpose.msra.mxu0 0.0
    %2465 = vmatprep.subr.mxu0 0.0
    %2466 = vmatpush1.xpose.msra.mxu0 0.0
    %2467 = vmatprep.subr.mxu0 0.0
    %2468 = vmatpush1.xpose.msra.mxu0 0.0
    %2469 = vmatprep.subr.mxu0 0.0
    %2470 = vmatpush1.xpose.msra.mxu0 0.0
    %2471 = vmatprep.subr.mxu0 0.0
    %2472 = vmatpush1.xpose.msra.mxu0 0.0
    %2473 = vmatprep.subr.mxu0 0.0
    %2474 = vmatpush1.xpose.msra.mxu0 0.0
    %2475 = vmatprep.subr.mxu0 0.0
    %2476 = vmatpush1.xpose.msra.mxu0 0.0
    %2477 = vmatprep.mubr.f32.mxu0 0.0
    %2478 = vmatmul.mubr.f32.gmra.mrb[0].mxu0 %v2405
    %v2479 = vpop.f32.mrb[0].mxu0
    %v2480 = vadd.f32 %v308, %v2479
    %v2481 = vpop.f32.mrb[0].mxu0
    %2482 = vmatprep.mubr.f32.mxu0 0.0
    %2483 = vmatmul.mubr.f32.gmra.mrb[0].mxu0 %v2407
    %v2484 = vpop.f32.mrb[0].mxu0
    %v2485 = vadd.f32 %v309, %v2484
    %v2486 = vpop.f32.mrb[0].mxu0
    %2487 = vdwg.mxu0
    %v2488 = vsel %vm1037, %v2231, -inf
    %2489 = vmax.xlane.f32.xlu0 %v2488
    %v2490 = vpop.xlane.xlu0 %2489
    %v2491 = vsel %vm1037, %v2236, -inf
    %2492 = vmax.xlane.f32.xlu0 %v2491
    %v2493 = vpop.xlane.xlu0 %2492
    %v2494 = vsel %vm1037, %v2314, -inf
    %2495 = vmax.xlane.f32.xlu0 %v2494
    %v2496 = vpop.xlane.xlu0 %2495
    %v2497 = vsel %vm1037, %v2319, -inf
    %2498 = vmax.xlane.f32.xlu0 %v2497
    %v2499 = vpop.xlane.xlu0 %2498
    %v2500 = vsel %vm1037, %v2397, -inf
    %2501 = vmax.xlane.f32.xlu0 %v2500
    %v2502 = vpop.xlane.xlu0 %2501
    %v2503 = vsel %vm1037, %v2402, -inf
    %2504 = vmax.xlane.f32.xlu0 %v2503
    %v2505 = vpop.xlane.xlu0 %2504
    %v2506 = vsel %vm1037, %v2480, -inf
    %2507 = vmax.xlane.f32.xlu0 %v2506
    %v2508 = vpop.xlane.xlu0 %2507
    %v2509 = vsel %vm1037, %v2485, -inf
    %2510 = vmax.xlane.f32.xlu0 %v2509
    %v2511 = vpop.xlane.xlu0 %2510
    %v2512 = vsub.f32 %v2231, %v2490
    %v2513 = vsub.f32 %v2236, %v2493
    %v2514 = vsub.f32 %v2314, %v2496
    %v2515 = vsub.f32 %v2319, %v2499
    %v2516 = vsub.f32 %v2397, %v2502
    %v2517 = vsub.f32 %v2402, %v2505
    %v2518 = vsub.f32 %v2480, %v2508
    %v2519 = vsub.f32 %v2485, %v2511
    %v2520 = vmul.f32 %v2512, 1.442695
    %v2521 = vpow.pop %v2520
    %v2522 = vmul.f32 %v2513, 1.442695
    %v2523 = vpow.pop %v2522
    %v2524 = vmul.f32 %v2514, 1.442695
    %v2525 = vpow.pop %v2524
    %v2526 = vmul.f32 %v2515, 1.442695
    %v2527 = vpow.pop %v2526
    %v2528 = vmul.f32 %v2516, 1.442695
    %v2529 = vpow.pop %v2528
    %v2530 = vmul.f32 %v2517, 1.442695
    %v2531 = vpow.pop %v2530
    %v2532 = vmul.f32 %v2518, 1.442695
    %v2533 = vpow.pop %v2532
    %v2534 = vmul.f32 %v2519, 1.442695
    %v2535 = vpow.pop %v2534
    %v2536 = vsel %vm1037, %v2521, 0.0
    %2537 = vadd.xlane.f32.xlu0 %v2536
    %v2538 = vpop.xlane.xlu0 %2537
    %v2539 = vsel %vm1037, %v2523, 0.0
    %2540 = vadd.xlane.f32.xlu0 %v2539
    %v2541 = vpop.xlane.xlu0 %2540
    %v2542 = vsel %vm1037, %v2525, 0.0
    %2543 = vadd.xlane.f32.xlu0 %v2542
    %v2544 = vpop.xlane.xlu0 %2543
    %v2545 = vsel %vm1037, %v2527, 0.0
    %2546 = vadd.xlane.f32.xlu0 %v2545
    %v2547 = vpop.xlane.xlu0 %2546
    %v2548 = vsel %vm1037, %v2529, 0.0
    %2549 = vadd.xlane.f32.xlu0 %v2548
    %v2550 = vpop.xlane.xlu0 %2549
    %v2551 = vsel %vm1037, %v2531, 0.0
    %2552 = vadd.xlane.f32.xlu0 %v2551
    %v2553 = vpop.xlane.xlu0 %2552
    %v2554 = vsel %vm1037, %v2533, 0.0
    %2555 = vadd.xlane.f32.xlu0 %v2554
    %v2556 = vpop.xlane.xlu0 %2555
    %v2557 = vsel %vm1037, %v2535, 0.0
    %2558 = vadd.xlane.f32.xlu0 %v2557
    %v2559 = vpop.xlane.xlu0 %2558
    %v2560 = vrcp.pop %v2538
    %v2561 = vmul.f32 %v2521, %v2560
    %v2562 = vrcp.pop %v2541
    %v2563 = vmul.f32 %v2523, %v2562
    %v2564 = vrcp.pop %v2544
    %v2565 = vmul.f32 %v2525, %v2564
    %v2566 = vrcp.pop %v2547
    %v2567 = vmul.f32 %v2527, %v2566
    %v2568 = vrcp.pop %v2550
    %v2569 = vmul.f32 %v2529, %v2568
    %v2570 = vrcp.pop %v2553
    %v2571 = vmul.f32 %v2531, %v2570
    %v2572 = vrcp.pop %v2556
    %v2573 = vmul.f32 %v2533, %v2572
    %v2574 = vrcp.pop %v2559
    %v2575 = vmul.f32 %v2535, %v2574
    %v2577 = vsel %vm1037, %v2561, 0
    %v2580 = vsel %vm1037, %v2563, 0
    %2582 = vmatprep.subr.mxu0 0.0
    %2583 = vmatpush1.msra.mxu0 %v2102
    %2584 = vmatprep.subr.mxu0 0.0
    %2585 = vmatpush1.msra.mxu0 %v2105
    %2586 = vmatprep.subr.mxu0 0.0
    %2587 = vmatpush1.msra.mxu0 0.0
    %2588 = vmatprep.subr.mxu0 0.0
    %2589 = vmatpush1.msra.mxu0 0.0
    %2590 = vmatprep.subr.mxu0 0.0
    %2591 = vmatpush1.msra.mxu0 0.0
    %2592 = vmatprep.subr.mxu0 0.0
    %2593 = vmatpush1.msra.mxu0 0.0
    %2594 = vmatprep.subr.mxu0 0.0
    %2595 = vmatpush1.msra.mxu0 0.0
    %2596 = vmatprep.subr.mxu0 0.0
    %2597 = vmatpush1.msra.mxu0 0.0
    %2598 = vmatprep.subr.mxu0 0.0
    %2599 = vmatpush1.msra.mxu0 0.0
    %2600 = vmatprep.subr.mxu0 0.0
    %2601 = vmatpush1.msra.mxu0 0.0
    %2602 = vmatprep.subr.mxu0 0.0
    %2603 = vmatpush1.msra.mxu0 0.0
    %2604 = vmatprep.subr.mxu0 0.0
    %2605 = vmatpush1.msra.mxu0 0.0
    %2606 = vmatprep.subr.mxu0 0.0
    %2607 = vmatpush1.msra.mxu0 0.0
    %2608 = vmatprep.subr.mxu0 0.0
    %2609 = vmatpush1.msra.mxu0 0.0
    %2610 = vmatprep.subr.mxu0 0.0
    %2611 = vmatpush1.msra.mxu0 0.0
    %2612 = vmatprep.subr.mxu0 0.0
    %2613 = vmatpush1.msra.mxu0 0.0
    %2614 = vmatprep.subr.mxu0 0.0
    %2615 = vmatpush1.msra.mxu0 0.0
    %2616 = vmatprep.subr.mxu0 0.0
    %2617 = vmatpush1.msra.mxu0 0.0
    %2618 = vmatprep.subr.mxu0 0.0
    %2619 = vmatpush1.msra.mxu0 0.0
    %2620 = vmatprep.subr.mxu0 0.0
    %2621 = vmatpush1.msra.mxu0 0.0
    %2622 = vmatprep.subr.mxu0 0.0
    %2623 = vmatpush1.msra.mxu0 0.0
    %2624 = vmatprep.subr.mxu0 0.0
    %2625 = vmatpush1.msra.mxu0 0.0
    %2626 = vmatprep.subr.mxu0 0.0
    %2627 = vmatpush1.msra.mxu0 0.0
    %2628 = vmatprep.subr.mxu0 0.0
    %2629 = vmatpush1.msra.mxu0 0.0
    %2630 = vmatprep.subr.mxu0 0.0
    %2631 = vmatpush1.msra.mxu0 0.0
    %2632 = vmatprep.subr.mxu0 0.0
    %2633 = vmatpush1.msra.mxu0 0.0
    %2634 = vmatprep.subr.mxu0 0.0
    %2635 = vmatpush1.msra.mxu0 0.0
    %2636 = vmatprep.subr.mxu0 0.0
    %2637 = vmatpush1.msra.mxu0 0.0
    %2638 = vmatprep.subr.mxu0 0.0
    %2639 = vmatpush1.msra.mxu0 0.0
    %2640 = vmatprep.subr.mxu0 0.0
    %2641 = vmatpush1.msra.mxu0 0.0
    %2642 = vmatprep.subr.mxu0 0.0
    %2643 = vmatpush1.msra.mxu0 0.0
    %2644 = vmatprep.subr.mxu0 0.0
    %2645 = vmatpush1.msra.mxu0 0.0
    %2646 = vmatprep.mubr.f32.mxu0 0.0
    %2647 = vmatmul.mubr.f32.gmra.mrb[0].mxu0 %v2577
    %v2648 = vpop.f32.mrb[0].mxu0
    %v2649 = vadd.f32 0.0, %v2648
    %v2650 = vpop.f32.mrb[0].mxu0
    %2651 = vmatprep.mubr.f32.mxu0 0.0
    %2652 = vmatmul.mubr.f32.gmra.mrb[0].mxu0 %v2580
    %v2653 = vpop.f32.mrb[0].mxu0
    %v2654 = vadd.f32 0.0, %v2653
    %v2655 = vpop.f32.mrb[0].mxu0
    %2656 = vdwg.mxu0
    %v2658 = vsel %vm1037, %v2565, 0
    %v2661 = vsel %vm1037, %v2567, 0
    %2663 = vmatprep.subr.mxu0 0.0
    %2664 = vmatpush1.msra.mxu0 %v2139
    %2665 = vmatprep.subr.mxu0 0.0
    %2666 = vmatpush1.msra.mxu0 %v2141
    %2667 = vmatprep.subr.mxu0 0.0
    %2668 = vmatpush1.msra.mxu0 0.0
    %2669 = vmatprep.subr.mxu0 0.0
    %2670 = vmatpush1.msra.mxu0 0.0
    %2671 = vmatprep.subr.mxu0 0.0
    %2672 = vmatpush1.msra.mxu0 0.0
    %2673 = vmatprep.subr.mxu0 0.0
    %2674 = vmatpush1.msra.mxu0 0.0
    %2675 = vmatprep.subr.mxu0 0.0
    %2676 = vmatpush1.msra.mxu0 0.0
    %2677 = vmatprep.subr.mxu0 0.0
    %2678 = vmatpush1.msra.mxu0 0.0
    %2679 = vmatprep.subr.mxu0 0.0
    %2680 = vmatpush1.msra.mxu0 0.0
    %2681 = vmatprep.subr.mxu0 0.0
    %2682 = vmatpush1.msra.mxu0 0.0
    %2683 = vmatprep.subr.mxu0 0.0
    %2684 = vmatpush1.msra.mxu0 0.0
    %2685 = vmatprep.subr.mxu0 0.0
    %2686 = vmatpush1.msra.mxu0 0.0
    %2687 = vmatprep.subr.mxu0 0.0
    %2688 = vmatpush1.msra.mxu0 0.0
    %2689 = vmatprep.subr.mxu0 0.0
    %2690 = vmatpush1.msra.mxu0 0.0
    %2691 = vmatprep.subr.mxu0 0.0
    %2692 = vmatpush1.msra.mxu0 0.0
    %2693 = vmatprep.subr.mxu0 0.0
    %2694 = vmatpush1.msra.mxu0 0.0
    %2695 = vmatprep.subr.mxu0 0.0
    %2696 = vmatpush1.msra.mxu0 0.0
    %2697 = vmatprep.subr.mxu0 0.0
    %2698 = vmatpush1.msra.mxu0 0.0
    %2699 = vmatprep.subr.mxu0 0.0
    %2700 = vmatpush1.msra.mxu0 0.0
    %2701 = vmatprep.subr.mxu0 0.0
    %2702 = vmatpush1.msra.mxu0 0.0
    %2703 = vmatprep.subr.mxu0 0.0
    %2704 = vmatpush1.msra.mxu0 0.0
    %2705 = vmatprep.subr.mxu0 0.0
    %2706 = vmatpush1.msra.mxu0 0.0
    %2707 = vmatprep.subr.mxu0 0.0
    %2708 = vmatpush1.msra.mxu0 0.0
    %2709 = vmatprep.subr.mxu0 0.0
    %2710 = vmatpush1.msra.mxu0 0.0
    %2711 = vmatprep.subr.mxu0 0.0
    %2712 = vmatpush1.msra.mxu0 0.0
    %2713 = vmatprep.subr.mxu0 0.0
    %2714 = vmatpush1.msra.mxu0 0.0
    %2715 = vmatprep.subr.mxu0 0.0
    %2716 = vmatpush1.msra.mxu0 0.0
    %2717 = vmatprep.subr.mxu0 0.0
    %2718 = vmatpush1.msra.mxu0 0.0
    %2719 = vmatprep.subr.mxu0 0.0
    %2720 = vmatpush1.msra.mxu0 0.0
    %2721 = vmatprep.subr.mxu0 0.0
    %2722 = vmatpush1.msra.mxu0 0.0
    %2723 = vmatprep.subr.mxu0 0.0
    %2724 = vmatpush1.msra.mxu0 0.0
    %2725 = vmatprep.subr.mxu0 0.0
    %2726 = vmatpush1.msra.mxu0 0.0
    %2727 = vmatprep.mubr.f32.mxu0 0.0
    %2728 = vmatmul.mubr.f32.gmra.mrb[0].mxu0 %v2658
    %v2729 = vpop.f32.mrb[0].mxu0
    %v2730 = vadd.f32 0.0, %v2729
    %v2731 = vpop.f32.mrb[0].mxu0
    %2732 = vmatprep.mubr.f32.mxu0 0.0
    %2733 = vmatmul.mubr.f32.gmra.mrb[0].mxu0 %v2661
    %v2734 = vpop.f32.mrb[0].mxu0
    %v2735 = vadd.f32 0.0, %v2734
    %v2736 = vpop.f32.mrb[0].mxu0
    %2737 = vdwg.mxu0
    %v2739 = vsel %vm1037, %v2569, 0
    %v2742 = vsel %vm1037, %v2571, 0
    %2744 = vmatprep.subr.mxu0 0.0
    %2745 = vmatpush1.msra.mxu0 %v2145
    %2746 = vmatprep.subr.mxu0 0.0
    %2747 = vmatpush1.msra.mxu0 %v2147
    %2748 = vmatprep.subr.mxu0 0.0
    %2749 = vmatpush1.msra.mxu0 0.0
    %2750 = vmatprep.subr.mxu0 0.0
    %2751 = vmatpush1.msra.mxu0 0.0
    %2752 = vmatprep.subr.mxu0 0.0
    %2753 = vmatpush1.msra.mxu0 0.0
    %2754 = vmatprep.subr.mxu0 0.0
    %2755 = vmatpush1.msra.mxu0 0.0
    %2756 = vmatprep.subr.mxu0 0.0
    %2757 = vmatpush1.msra.mxu0 0.0
    %2758 = vmatprep.subr.mxu0 0.0
    %2759 = vmatpush1.msra.mxu0 0.0
    %2760 = vmatprep.subr.mxu0 0.0
    %2761 = vmatpush1.msra.mxu0 0.0
    %2762 = vmatprep.subr.mxu0 0.0
    %2763 = vmatpush1.msra.mxu0 0.0
    %2764 = vmatprep.subr.mxu0 0.0
    %2765 = vmatpush1.msra.mxu0 0.0
    %2766 = vmatprep.subr.mxu0 0.0
    %2767 = vmatpush1.msra.mxu0 0.0
    %2768 = vmatprep.subr.mxu0 0.0
    %2769 = vmatpush1.msra.mxu0 0.0
    %2770 = vmatprep.subr.mxu0 0.0
    %2771 = vmatpush1.msra.mxu0 0.0
    %2772 = vmatprep.subr.mxu0 0.0
    %2773 = vmatpush1.msra.mxu0 0.0
    %2774 = vmatprep.subr.mxu0 0.0
    %2775 = vmatpush1.msra.mxu0 0.0
    %2776 = vmatprep.subr.mxu0 0.0
    %2777 = vmatpush1.msra.mxu0 0.0
    %2778 = vmatprep.subr.mxu0 0.0
    %2779 = vmatpush1.msra.mxu0 0.0
    %2780 = vmatprep.subr.mxu0 0.0
    %2781 = vmatpush1.msra.mxu0 0.0
    %2782 = vmatprep.subr.mxu0 0.0
    %2783 = vmatpush1.msra.mxu0 0.0
    %2784 = vmatprep.subr.mxu0 0.0
    %2785 = vmatpush1.msra.mxu0 0.0
    %2786 = vmatprep.subr.mxu0 0.0
    %2787 = vmatpush1.msra.mxu0 0.0
    %2788 = vmatprep.subr.mxu0 0.0
    %2789 = vmatpush1.msra.mxu0 0.0
    %2790 = vmatprep.subr.mxu0 0.0
    %2791 = vmatpush1.msra.mxu0 0.0
    %2792 = vmatprep.subr.mxu0 0.0
    %2793 = vmatpush1.msra.mxu0 0.0
    %2794 = vmatprep.subr.mxu0 0.0
    %2795 = vmatpush1.msra.mxu0 0.0
    %2796 = vmatprep.subr.mxu0 0.0
    %2797 = vmatpush1.msra.mxu0 0.0
    %2798 = vmatprep.subr.mxu0 0.0
    %2799 = vmatpush1.msra.mxu0 0.0
    %2800 = vmatprep.subr.mxu0 0.0
    %2801 = vmatpush1.msra.mxu0 0.0
    %2802 = vmatprep.subr.mxu0 0.0
    %2803 = vmatpush1.msra.mxu0 0.0
    %2804 = vmatprep.subr.mxu0 0.0
    %2805 = vmatpush1.msra.mxu0 0.0
    %2806 = vmatprep.subr.mxu0 0.0
    %2807 = vmatpush1.msra.mxu0 0.0
    %2808 = vmatprep.mubr.f32.mxu0 0.0
    %2809 = vmatmul.mubr.f32.gmra.mrb[0].mxu0 %v2739
    %v2810 = vpop.f32.mrb[0].mxu0
    %v2811 = vadd.f32 0.0, %v2810
    %v2812 = vpop.f32.mrb[0].mxu0
    %2813 = vmatprep.mubr.f32.mxu0 0.0
    %2814 = vmatmul.mubr.f32.gmra.mrb[0].mxu0 %v2742
    %v2815 = vpop.f32.mrb[0].mxu0
    %v2816 = vadd.f32 0.0, %v2815
    %v2817 = vpop.f32.mrb[0].mxu0
    %2818 = vdwg.mxu0
    %v2820 = vsel %vm1037, %v2573, 0
    %v2823 = vsel %vm1037, %v2575, 0
    %2825 = vmatprep.subr.mxu0 0.0
    %2826 = vmatpush1.msra.mxu0 %v2151
    %2827 = vmatprep.subr.mxu0 0.0
    %2828 = vmatpush1.msra.mxu0 %v2153
    %2829 = vmatprep.subr.mxu0 0.0
    %2830 = vmatpush1.msra.mxu0 0.0
    %2831 = vmatprep.subr.mxu0 0.0
    %2832 = vmatpush1.msra.mxu0 0.0
    %2833 = vmatprep.subr.mxu0 0.0
    %2834 = vmatpush1.msra.mxu0 0.0
    %2835 = vmatprep.subr.mxu0 0.0
    %2836 = vmatpush1.msra.mxu0 0.0
    %2837 = vmatprep.subr.mxu0 0.0
    %2838 = vmatpush1.msra.mxu0 0.0
    %2839 = vmatprep.subr.mxu0 0.0
    %2840 = vmatpush1.msra.mxu0 0.0
    %2841 = vmatprep.subr.mxu0 0.0
    %2842 = vmatpush1.msra.mxu0 0.0
    %2843 = vmatprep.subr.mxu0 0.0
    %2844 = vmatpush1.msra.mxu0 0.0
    %2845 = vmatprep.subr.mxu0 0.0
    %2846 = vmatpush1.msra.mxu0 0.0
    %2847 = vmatprep.subr.mxu0 0.0
    %2848 = vmatpush1.msra.mxu0 0.0
    %2849 = vmatprep.subr.mxu0 0.0
    %2850 = vmatpush1.msra.mxu0 0.0
    %2851 = vmatprep.subr.mxu0 0.0
    %2852 = vmatpush1.msra.mxu0 0.0
    %2853 = vmatprep.subr.mxu0 0.0
    %2854 = vmatpush1.msra.mxu0 0.0
    %2855 = vmatprep.subr.mxu0 0.0
    %2856 = vmatpush1.msra.mxu0 0.0
    %2857 = vmatprep.subr.mxu0 0.0
    %2858 = vmatpush1.msra.mxu0 0.0
    %2859 = vmatprep.subr.mxu0 0.0
    %2860 = vmatpush1.msra.mxu0 0.0
    %2861 = vmatprep.subr.mxu0 0.0
    %2862 = vmatpush1.msra.mxu0 0.0
    %2863 = vmatprep.subr.mxu0 0.0
    %2864 = vmatpush1.msra.mxu0 0.0
    %2865 = vmatprep.subr.mxu0 0.0
    %2866 = vmatpush1.msra.mxu0 0.0
    %2867 = vmatprep.subr.mxu0 0.0
    %2868 = vmatpush1.msra.mxu0 0.0
    %2869 = vmatprep.subr.mxu0 0.0
    %2870 = vmatpush1.msra.mxu0 0.0
    %2871 = vmatprep.subr.mxu0 0.0
    %2872 = vmatpush1.msra.mxu0 0.0
    %2873 = vmatprep.subr.mxu0 0.0
    %2874 = vmatpush1.msra.mxu0 0.0
    %2875 = vmatprep.subr.mxu0 0.0
    %2876 = vmatpush1.msra.mxu0 0.0
    %2877 = vmatprep.subr.mxu0 0.0
    %2878 = vmatpush1.msra.mxu0 0.0
    %2879 = vmatprep.subr.mxu0 0.0
    %2880 = vmatpush1.msra.mxu0 0.0
    %2881 = vmatprep.subr.mxu0 0.0
    %2882 = vmatpush1.msra.mxu0 0.0
    %2883 = vmatprep.subr.mxu0 0.0
    %2884 = vmatpush1.msra.mxu0 0.0
    %2885 = vmatprep.subr.mxu0 0.0
    %2886 = vmatpush1.msra.mxu0 0.0
    %2887 = vmatprep.subr.mxu0 0.0
    %2888 = vmatpush1.msra.mxu0 0.0
    %2889 = vmatprep.mubr.f32.mxu0 0.0
    %2890 = vmatmul.mubr.f32.gmra.mrb[0].mxu0 %v2820
    %v2891 = vpop.f32.mrb[0].mxu0
    %v2892 = vadd.f32 0.0, %v2891
    %v2893 = vpop.f32.mrb[0].mxu0
    %2894 = vmatprep.mubr.f32.mxu0 0.0
    %2895 = vmatmul.mubr.f32.gmra.mrb[0].mxu0 %v2823
    %v2896 = vpop.f32.mrb[0].mxu0
    %v2897 = vadd.f32 0.0, %v2896
    %v2898 = vpop.f32.mrb[0].mxu0
    %2899 = vdwg.mxu0
    %2902 = vrot.lane.b32.xlu0 %v2730, 8
    %v2903 = vpop.permute.xlu0 %2902
    %2904 = vrot.lane.b32.xlu0 %v2735, 8
    %v2905 = vpop.permute.xlu0 %2904
    %2910 = vrot.lane.b32.xlu0 %v2811, 16
    %v2911 = vpop.permute.xlu0 %2910
    %2912 = vrot.lane.b32.xlu0 %v2816, 16
    %v2913 = vpop.permute.xlu0 %2912
    %2918 = vrot.lane.b32.xlu0 %v2892, 24
    %v2919 = vpop.permute.xlu0 %2918
    %2920 = vrot.lane.b32.xlu0 %v2897, 24
    %v2921 = vpop.permute.xlu0 %2920
    %v2924 = vsel %vm704, %v2649, %v2903
    %v2925 = vsel %vm704, %v2654, %v2905
    %v2926 = vsel %vm1037, %v2924, %v2911
    %v2927 = vsel %vm1037, %v2925, %v2913
    %v2928 = vsel %vm1478, %v2926, %v2919
    %v2929 = vsel %vm1478, %v2927, %v2921
    %v2930 = vpack.c.bf16 %v2929, %v2928
    %v2935 = vunpack.c.l.b16 %v1783
    %v2936 = vunpack.c.l.b16 %v1784
    %v2937 = vunpack.c.l.b16 %v1785
    %v2938 = vunpack.c.l.b16 %v1786
    %v2939 = vpack.c.b16 %v2936, %v2935
    %v2940 = vpack.c.b16 %v2938, %v2937
    %v2944 = vsel %vm353, %v2930, 0
    %2946 = vmatprep.subr.bf16.mxu0 0
    %2947 = vmatpush1.bf16.msra.mxu0 %v2939
    %2948 = vmatprep.subr.bf16.mxu0 0
    %2949 = vmatpush1.bf16.msra.mxu0 %v2940
    %2950 = vmatprep.subr.bf16.mxu0 0
    %2951 = vmatpush1.bf16.msra.mxu0 0
    %2952 = vmatprep.subr.bf16.mxu0 0
    %2953 = vmatpush1.bf16.msra.mxu0 0
    %2954 = vmatprep.subr.bf16.mxu0 0
    %2955 = vmatpush1.bf16.msra.mxu0 0
    %2956 = vmatprep.subr.bf16.mxu0 0
    %2957 = vmatpush1.bf16.msra.mxu0 0
    %2958 = vmatprep.subr.bf16.mxu0 0
    %2959 = vmatpush1.bf16.msra.mxu0 0
    %2960 = vmatprep.subr.bf16.mxu0 0
    %2961 = vmatpush1.bf16.msra.mxu0 0
    %2962 = vmatprep.subr.bf16.mxu0 0
    %2963 = vmatpush1.bf16.msra.mxu0 0
    %2964 = vmatprep.subr.bf16.mxu0 0
    %2965 = vmatpush1.bf16.msra.mxu0 0
    %2966 = vmatprep.subr.bf16.mxu0 0
    %2967 = vmatpush1.bf16.msra.mxu0 0
    %2968 = vmatprep.subr.bf16.mxu0 0
    %2969 = vmatpush1.bf16.msra.mxu0 0
    %2970 = vmatprep.subr.bf16.mxu0 0
    %2971 = vmatpush1.bf16.msra.mxu0 0
    %2972 = vmatprep.subr.bf16.mxu0 0
    %2973 = vmatpush1.bf16.msra.mxu0 0
    %2974 = vmatprep.subr.bf16.mxu0 0
    %2975 = vmatpush1.bf16.msra.mxu0 0
    %2976 = vmatprep.subr.bf16.mxu0 0
    %2977 = vmatpush1.bf16.msra.mxu0 0
    %2978 = vmatprep.mubr.bf16.mxu0 0
    %2979 = vmatmul.mubr.bf16.gmra.mrb[0].mxu0 %v2944
    %v2980 = vpop.f32.mrb[0].mxu0
    %v2981 = vadd.f32 0.0, %v2980
    %v2982 = vpop.f32.mrb[0].mxu0
    %v2983 = vpop.f32.mrb[0].mxu0
    %v2984 = vadd.f32 0.0, %v2983
    %v2985 = vpop.f32.mrb[0].mxu0
    %2986 = vdwg.mxu0
    %v2987 = vadd.f32 %v1758, %v2981
    %v2988 = vadd.f32 %v1759, %v2984
    %v2989 = vmul.f32 %v2987, %v2987
    %v2990 = vmul.f32 %v2988, %v2988
    %v2991 = vsel %vm353, %v2989, 0.0
    %2992 = vadd.xlane.f32.xlu0 %v2991
    %v2993 = vpop.xlane.xlu0 %2992
    %v2994 = vsel %vm353, %v2990, 0.0
    %2995 = vadd.xlane.f32.xlu0 %v2994
    %v2996 = vpop.xlane.xlu0 %2995
    %v2997 = vmul.f32 %v2993, %v360
    %v2998 = vmul.f32 %v2996, %v360
    %v2999 = vadd.f32 %v2997, 1e-05
    %v3000 = vadd.f32 %v2998, 1e-05
    %v3001 = vrsqrt.pop %v2999
    %v3002 = vrsqrt.pop %v3000
    %v3003 = vmul.f32 %v2987, %v3001
    %v3004 = vmul.f32 %v2988, %v3002
    %v3005 = vlaneseq
    %v3006 = vshrl.u32 %v3005, 7
    %v3007 = vsub.s32 2, %v3006
    %v3008 = vrot.slane %v1761, %v3007
    %v3009 = vmul.f32 %v3003, %v3008
    %v3010 = vmul.f32 %v3004, %v3008
    %v3011 = vpack.c.bf16 %v3010, %v3009
    %v3016 = vunpack.c.l.b16 %v1788
    %v3017 = vunpack.c.l.b16 %v1789
    %v3018 = vunpack.c.l.b16 %v1790
    %v3019 = vunpack.c.l.b16 %v1791
    %v3020 = vpack.c.b16 %v3017, %v3016
    %v3021 = vpack.c.b16 %v3019, %v3018
    %v3025 = vsel %vm353, %v3011, 0
    %3027 = vmatprep.subr.bf16.mxu0 0
    %3028 = vmatpush1.bf16.msra.mxu0 %v3020
    %3029 = vmatprep.subr.bf16.mxu0 0
    %3030 = vmatpush1.bf16.msra.mxu0 %v3021
    %3031 = vmatprep.subr.bf16.mxu0 0
    %3032 = vmatpush1.bf16.msra.mxu0 0
    %3033 = vmatprep.subr.bf16.mxu0 0
    %3034 = vmatpush1.bf16.msra.mxu0 0
    %3035 = vmatprep.subr.bf16.mxu0 0
    %3036 = vmatpush1.bf16.msra.mxu0 0
    %3037 = vmatprep.subr.bf16.mxu0 0
    %3038 = vmatpush1.bf16.msra.mxu0 0
    %3039 = vmatprep.subr.bf16.mxu0 0
    %3040 = vmatpush1.bf16.msra.mxu0 0
    %3041 = vmatprep.subr.bf16.mxu0 0
    %3042 = vmatpush1.bf16.msra.mxu0 0
    %3043 = vmatprep.subr.bf16.mxu0 0
    %3044 = vmatpush1.bf16.msra.mxu0 0
    %3045 = vmatprep.subr.bf16.mxu0 0
    %3046 = vmatpush1.bf16.msra.mxu0 0
    %3047 = vmatprep.subr.bf16.mxu0 0
    %3048 = vmatpush1.bf16.msra.mxu0 0
    %3049 = vmatprep.subr.bf16.mxu0 0
    %3050 = vmatpush1.bf16.msra.mxu0 0
    %3051 = vmatprep.subr.bf16.mxu0 0
    %3052 = vmatpush1.bf16.msra.mxu0 0
    %3053 = vmatprep.subr.bf16.mxu0 0
    %3054 = vmatpush1.bf16.msra.mxu0 0
    %3055 = vmatprep.subr.bf16.mxu0 0
    %3056 = vmatpush1.bf16.msra.mxu0 0
    %3057 = vmatprep.subr.bf16.mxu0 0
    %3058 = vmatpush1.bf16.msra.mxu0 0
    %3059 = vmatprep.mubr.bf16.mxu0 0
    %3060 = vmatmul.mubr.bf16.gmra.mrb[0].mxu0 %v3025
    %v3061 = vpop.f32.mrb[0].mxu0
    %v3062 = vadd.f32 0.0, %v3061
    %v3063 = vpop.f32.mrb[0].mxu0
    %v3064 = vpop.f32.mrb[0].mxu0
    %v3065 = vadd.f32 0.0, %v3064
    %v3066 = vpop.f32.mrb[0].mxu0
    %3067 = vdwg.mxu0
    %v3072 = vunpack.c.l.b16 %v1792
    %v3073 = vunpack.c.l.b16 %v1793
    %v3074 = vunpack.c.l.b16 %v1794
    %v3075 = vunpack.c.l.b16 %v1795
    %v3076 = vpack.c.b16 %v3073, %v3072
    %v3077 = vpack.c.b16 %v3075, %v3074
    %3080 = vmatprep.subr.bf16.mxu0 0
    %3081 = vmatpush1.bf16.msra.mxu0 %v3076
    %3082 = vmatprep.subr.bf16.mxu0 0
    %3083 = vmatpush1.bf16.msra.mxu0 %v3077
    %3084 = vmatprep.subr.bf16.mxu0 0
    %3085 = vmatpush1.bf16.msra.mxu0 0
    %3086 = vmatprep.subr.bf16.mxu0 0
    %3087 = vmatpush1.bf16.msra.mxu0 0
    %3088 = vmatprep.subr.bf16.mxu0 0
    %3089 = vmatpush1.bf16.msra.mxu0 0
    %3090 = vmatprep.subr.bf16.mxu0 0
    %3091 = vmatpush1.bf16.msra.mxu0 0
    %3092 = vmatprep.subr.bf16.mxu0 0
    %3093 = vmatpush1.bf16.msra.mxu0 0
    %3094 = vmatprep.subr.bf16.mxu0 0
    %3095 = vmatpush1.bf16.msra.mxu0 0
    %3096 = vmatprep.subr.bf16.mxu0 0
    %3097 = vmatpush1.bf16.msra.mxu0 0
    %3098 = vmatprep.subr.bf16.mxu0 0
    %3099 = vmatpush1.bf16.msra.mxu0 0
    %3100 = vmatprep.subr.bf16.mxu0 0
    %3101 = vmatpush1.bf16.msra.mxu0 0
    %3102 = vmatprep.subr.bf16.mxu0 0
    %3103 = vmatpush1.bf16.msra.mxu0 0
    %3104 = vmatprep.subr.bf16.mxu0 0
    %3105 = vmatpush1.bf16.msra.mxu0 0
    %3106 = vmatprep.subr.bf16.mxu0 0
    %3107 = vmatpush1.bf16.msra.mxu0 0
    %3108 = vmatprep.subr.bf16.mxu0 0
    %3109 = vmatpush1.bf16.msra.mxu0 0
    %3110 = vmatprep.subr.bf16.mxu0 0
    %3111 = vmatpush1.bf16.msra.mxu0 0
    %3112 = vmatprep.mubr.bf16.mxu0 0
    %3113 = vmatmul.mubr.bf16.gmra.mrb[0].mxu0 %v3025
    %v3114 = vpop.f32.mrb[0].mxu0
    %v3115 = vadd.f32 0.0, %v3114
    %v3116 = vpop.f32.mrb[0].mxu0
    %v3117 = vpop.f32.mrb[0].mxu0
    %v3118 = vadd.f32 0.0, %v3117
    %v3119 = vpop.f32.mrb[0].mxu0
    %3120 = vdwg.mxu0
    %v3121 = vxor.u32 %v3062, 2147483648
    %v3122 = vxor.u32 %v3065, 2147483648
    %v3123 = vmul.f32 %v3121, 1.442695
    %v3124 = vpow.pop %v3123
    %v3125 = vmul.f32 %v3122, 1.442695
    %v3126 = vpow.pop %v3125
    %v3127 = vadd.f32 %v3124, 1.0
    %v3128 = vadd.f32 %v3126, 1.0
    %v3129 = vrcp.pop %v3127
    %v3130 = vmul.f32 1.0, %v3129
    %v3131 = vrcp.pop %v3128
    %v3132 = vmul.f32 1.0, %v3131
    %v3133 = vmul.f32 %v3062, %v3130
    %v3134 = vmul.f32 %v3065, %v3132
    %v3135 = vmul.f32 %v3133, %v3115
    %v3136 = vmul.f32 %v3134, %v3118
    %v3137 = vpack.c.bf16 %v3136, %v3135
    %v3146 = vunpack.c.l.b16 %v1797
    %v3147 = vunpack.c.l.b16 %v1798
    %v3148 = vunpack.c.l.b16 %v1799
    %v3149 = vunpack.c.l.b16 %v1800
    %v3150 = vunpack.c.l.b16 %v1801
    %v3151 = vunpack.c.l.b16 %v1802
    %v3152 = vunpack.c.l.b16 %v1803
    %v3153 = vunpack.c.l.b16 %v1804
    %v3154 = vpack.c.b16 %v3147, %v3146
    %v3155 = vpack.c.b16 %v3149, %v3148
    %v3156 = vpack.c.b16 %v3151, %v3150
    %v3157 = vpack.c.b16 %v3153, %v3152
    %v3163 = vsel %vm1713, %v3137, 0
    %3165 = vmatprep.subr.bf16.mxu0 0
    %3166 = vmatpush1.bf16.msra.mxu0 %v3154
    %3167 = vmatprep.subr.bf16.mxu0 0
    %3168 = vmatpush1.bf16.msra.mxu0 %v3155
    %3169 = vmatprep.subr.bf16.mxu0 0
    %3170 = vmatpush1.bf16.msra.mxu0 %v3156
    %3171 = vmatprep.subr.bf16.mxu0 0
    %3172 = vmatpush1.bf16.msra.mxu0 %v3157
    %3173 = vmatprep.subr.bf16.mxu0 0
    %3174 = vmatpush1.bf16.msra.mxu0 0
    %3175 = vmatprep.subr.bf16.mxu0 0
    %3176 = vmatpush1.bf16.msra.mxu0 0
    %3177 = vmatprep.subr.bf16.mxu0 0
    %3178 = vmatpush1.bf16.msra.mxu0 0
    %3179 = vmatprep.subr.bf16.mxu0 0
    %3180 = vmatpush1.bf16.msra.mxu0 0
    %3181 = vmatprep.subr.bf16.mxu0 0
    %3182 = vmatpush1.bf16.msra.mxu0 0
    %3183 = vmatprep.subr.bf16.mxu0 0
    %3184 = vmatpush1.bf16.msra.mxu0 0
    %3185 = vmatprep.subr.bf16.mxu0 0
    %3186 = vmatpush1.bf16.msra.mxu0 0
    %3187 = vmatprep.subr.bf16.mxu0 0
    %3188 = vmatpush1.bf16.msra.mxu0 0
    %3189 = vmatprep.subr.bf16.mxu0 0
    %3190 = vmatpush1.bf16.msra.mxu0 0
    %3191 = vmatprep.subr.bf16.mxu0 0
    %3192 = vmatpush1.bf16.msra.mxu0 0
    %3193 = vmatprep.subr.bf16.mxu0 0
    %3194 = vmatpush1.bf16.msra.mxu0 0
    %3195 = vmatprep.subr.bf16.mxu0 0
    %3196 = vmatpush1.bf16.msra.mxu0 0
    %3197 = vmatprep.mubr.bf16.mxu0 0
    %3198 = vmatmul.mubr.bf16.gmra.mrb[0].mxu0 %v3163
    %v3199 = vpop.f32.mrb[0].mxu0
    %v3200 = vadd.f32 0.0, %v3199
    %v3201 = vpop.f32.mrb[0].mxu0
    %v3202 = vpop.f32.mrb[0].mxu0
    %v3203 = vadd.f32 0.0, %v3202
    %v3204 = vpop.f32.mrb[0].mxu0
    %3205 = vdwg.mxu0
    %v3206 = vadd.f32 %v2987, %v3200
    %v3207 = vadd.f32 %v2988, %v3203
    %v3208 = vld [vmem:[%s10] sm:$0x3]
    %v3209 = vmul.f32 %v3206, %v3206
    %v3210 = vmul.f32 %v3207, %v3207
    %v3211 = vsel %vm353, %v3209, 0.0
    %3212 = vadd.xlane.f32.xlu0 %v3211
    %v3213 = vpop.xlane.xlu0 %3212
    %v3214 = vsel %vm353, %v3210, 0.0
    %3215 = vadd.xlane.f32.xlu0 %v3214
    %v3216 = vpop.xlane.xlu0 %3215
    %v3217 = vmul.f32 %v3213, %v360
    %v3218 = vmul.f32 %v3216, %v360
    %v3219 = vadd.f32 %v3217, 1e-05
    %v3220 = vadd.f32 %v3218, 1e-05
    %v3221 = vrsqrt.pop %v3219
    %v3222 = vrsqrt.pop %v3220
    %v3223 = vmul.f32 %v3206, %v3221
    %v3224 = vmul.f32 %v3207, %v3222
    %v3225 = vlaneseq
    %v3226 = vshrl.u32 %v3225, 7
    %v3227 = vsub.s32 0, %v3226
    %v3228 = vrot.slane %v3208, %v3227
    %v3229 = vmul.f32 %v3223, %v3228
    %v3230 = vmul.f32 %v3224, %v3228
    %3231 = vst.msk [vmem:[#allocation2] sm:$0xff] %vm353, %v3229
    %3232 = vst.msk [vmem:[#allocation2 + $0x8] sm:$0xff] %vm353, %v3230
    // Predicated region
    $region46: #{_forward_jit.1} parent=1 // pred_check
      _
    $region47: #{_forward_jit.1} parent=1 // pred_check_branch
      %3234 = sbr.rel (0) target = $region49
    $region48: #{_forward_jit.1} parent=1 // pred_region
      %s3236 = ssub.s32 256, 256
      %3237 = vsyncadd [#allocation3], %s3236
      %s3238 = sshll.u32 [#allocation2], 4
      %s3239 = int_to_ptr.vmem [resolvable:$true] %s3238
      %3244 = dma.vmem_to_hbm [thread:$0]  %s3239, 256, %s11, [#allocation3], 128, 128, 8
    $region49: #{_forward_jit.1} parent=1 // pred_fallthru
      _
    // Predicated region
    $region50: #{_forward_jit.1} parent=1 // pred_check
      _
    $region51: #{_forward_jit.1} parent=1 // pred_check_branch
      %3246 = sbr.rel (0) target = $region53
    $region52: #{_forward_jit.1} parent=1 // pred_region
      %3247 = dma.done [#allocation3], 256
    $region53: #{_forward_jit.1} parent=1 // pred_fallthru
      _
    %3248 = vsyncpa [#allocation3], 1

</llo_original>
